<compile_context>
chip_gen: v7x
topology: tpu7x:2x2x1
jax: 0.10.0
libtpu: 0.0.40
codegen_flags: <defaults>
</compile_context>

<pallas_src>
import functools
import numpy as np

import jax
import jax.numpy as jnp
from jax.experimental import pallas as pl
from jax.experimental.pallas import tpu as pltpu

_BF16 = jnp.bfloat16
_F32 = jnp.float32


# ----------------------------------------------------------------------------
# Kernel helpers
# ----------------------------------------------------------------------------
def _decompose(u, moving_mean_fn, w_ref, b_ref, n_kernels):
    """MixtureOfExpertsDecomposition residual (series_decomp_multi).

    residual = u - sum_k moving_mean_k * softmax_k(u * w_k + b_k)
    computed as a running (online-softmax) reduction over k so only a constant
    number of (rows, D) f32 temporaries stay live.
    """
    m = u * w_ref[0] + b_ref[0]            # running max of logits
    s = jnp.ones_like(u)                   # running sum of exp(logit - m)
    acc = moving_mean_fn(0)                # running sum of mm_k * exp(logit_k - m)
    for k in range(1, n_kernels):
        logit = u * w_ref[k] + b_ref[k]
        mm_k = moving_mean_fn(k)
        m_new = jnp.maximum(m, logit)
        alpha = jnp.exp(m - m_new)
        e = jnp.exp(logit - m_new)
        s = alpha * s + e
        acc = alpha * acc + e * mm_k
        m = m_new
    return u - acc / s


# ----------------------------------------------------------------------------
# Fused encoder-layer kernel (attention + decomp + FFN + decomp [+ final norm])
# ----------------------------------------------------------------------------
def encoder_layer_kernel(x_ref, wq_ref, bq_ref, wo_ref, bo_ref,
                         wcr_ref, wci_ref, ffwd_ref, finv_ref, avg_ref,
                         d1w_ref, d1b_ref, d2w_ref, d2b_ref,
                         w1_ref, w2_ref, g_ref, beta_ref,
                         o_ref, spec_ref, rows_ref,
                         *, n_heads, n_kernels, tb, f_chunk,
                         activation, gelu_approx, apply_norm):
    _, L, D = o_ref.shape
    H = n_heads
    E = D // H
    M = wcr_ref.shape[1]          # kept rfft modes
    K = n_kernels
    N = tb * L
    F = w1_ref.shape[1]

    # ---- (tb, L, D) -> (N, D); merging leading dims is layout-free ----------
    x0 = x_ref[...].reshape(N, D)

    # ---- self attention: FourierEnhancedBlock inside MultiHeadLayer ---------
    # FEB-f only consumes the query projection; the key/value projections of the
    # original module do not influence the output and are omitted.
    q = (jnp.dot(x0.astype(_BF16), wq_ref[...],
                 preferred_element_type=_F32) + bq_ref[...])          # (N, D) f32
    q_bf = q.astype(_BF16)

    # forward DFT: ONE stacked [cos; -sin] matmul per sequence -> spectral scratch
    ffwd = ffwd_ref[...]                                              # (2M, L) bf16
    for b in range(tb):
        spec_ref[:, b, :] = jnp.dot(ffwd, q_bf[b * L:(b + 1) * L, :],
                                    preferred_element_type=_F32)      # (2M, D)

    # per-mode complex channel mixing: per head ONE pair of mode-batched matmuls
    # with complex-packed weights ([xr]@[wr|wi] + [xi]@[-wi|wr] = [o_r|o_i]),
    # tb rows and 2E-wide output; results written back in place through
    # lane-slice stores (no lane concatenates).
    dn = (((2,), (1,)), ((0,), (0,)))          # batch over modes, contract E
    for h in range(H):
        lo, hi = h * E, (h + 1) * E
        xr_h = spec_ref[0:M, :, lo:hi].astype(_BF16)                  # (M, tb, E)
        xi_h = spec_ref[M:2 * M, :, lo:hi].astype(_BF16)              # (M, tb, E)
        oh = (jax.lax.dot_general(xr_h, wcr_ref[h], dn,
                                  preferred_element_type=_F32) +
              jax.lax.dot_general(xi_h, wci_ref[h], dn,
                                  preferred_element_type=_F32))       # (M, tb, 2E)
        spec_ref[0:M, :, lo:hi] = oh[:, :, 0:E]                       # o_r
        spec_ref[M:2 * M, :, lo:hi] = oh[:, :, E:2 * E]               # o_i

    # inverse DFT: ONE stacked [icos | isin] matmul per sequence -> row scratch
    finv = finv_ref[...]                                              # (L, 2M) bf16
    for b in range(tb):
        rows_ref[b * L:(b + 1) * L, :] = jnp.dot(
            finv, spec_ref[:, b, :].astype(_BF16),
            preferred_element_type=_F32)                              # (L, D)

    attn = (jnp.dot(rows_ref[...].astype(_BF16), wo_ref[...],
                    preferred_element_type=_F32) + bo_ref[...])       # (N, D)

    # ---- moving-average helper (dense matmul; reuses the row scratch) -------
    # TODO(synk): for long seq_len (esp. v5e) replace with a cumsum-difference
    #             sliding mean (shifted adds) to take this work off the MXU.
    def make_moving_mean(u):
        u_bf = u.astype(_BF16)

        def mov(k):
            for b in range(tb):
                rows_ref[b * L:(b + 1) * L, :] = jnp.dot(
                    avg_ref[k], u_bf[b * L:(b + 1) * L, :],
                    preferred_element_type=_F32)
            return rows_ref[...]

        return mov

    # residual + decomposition 1   (dropout p -> identity in eval)
    u1 = x0 + attn
    s1 = _decompose(u1, make_moving_mean(u1), d1w_ref, d1b_ref, K)

    # ---- pointwise conv FFN (1x1 Conv1d == channel matmul, bias=False) ------
    # F-chunked so only an (N, f_chunk) activation is ever live (v7x VMEM).
    s1_bf = s1.astype(_BF16)
    h2 = None
    for c0 in range(0, F, f_chunk):
        c1 = min(F, c0 + f_chunk)
        h1 = jnp.dot(s1_bf, w1_ref[:, c0:c1], preferred_element_type=_F32)
        if activation == 'relu':
            h1 = jnp.maximum(h1, 0.0)
        else:
            # tanh GELU routes to the EUP (separate VLIW slot); exact erf GELU
            # (torch.nn.GELU default) available via gelu_approx=False.
            h1 = jax.nn.gelu(h1, approximate=gelu_approx)
        part = jnp.dot(h1.astype(_BF16), w2_ref[c0:c1, :],
                       preferred_element_type=_F32)
        h2 = part if h2 is None else h2 + part

    # residual + decomposition 2
    u2 = s1 + h2
    s2 = _decompose(u2, make_moving_mean(u2), d2w_ref, d2b_ref, K)

    # ---- fused SeasonalLayerNorm (last layer only) ---------------------------
    if apply_norm:
        mu = jnp.mean(s2, axis=1, keepdims=True)
        var = jnp.mean(jnp.square(s2 - mu), axis=1, keepdims=True)
        s2 = (s2 - mu) * jax.lax.rsqrt(var + 1e-5) * g_ref[...] + beta_ref[...]
        s3 = s2.reshape(tb, L, D)
        o_ref[...] = s3 - jnp.mean(s3, axis=1, keepdims=True)   # per-batch seq mean
    else:
        o_ref[...] = s2.reshape(tb, L, D)


# ----------------------------------------------------------------------------
# pallas_call plumbing
# ----------------------------------------------------------------------------
def _vmem_capacity_bytes():
    try:
        return int(pltpu.get_tpu_info().vmem_capacity_bytes)
    except Exception:
        return 64 << 20            # conservative (v7x per-TensorCore VMEM)


def _vmem_limit_bytes(tb, L, D, H, M, F, K, f_chunk):
    """Scoped-VMEM request from the resident set, capped at 85% of capacity."""
    E = D // H
    N = tb * L
    bf2, f4 = 2, 4
    weights = (2 * D * D * bf2                       # Wq, Wo
               + 2 * H * M * E * (2 * E) * bf2       # complex-packed spectral weights
               + 2 * (2 * M) * L * bf2               # stacked DFT / iDFT matrices
               + K * L * L * bf2                     # moving-average operators
               + (D * F + F * D) * bf2               # FFN weights
               + 8 * D * f4)                         # biases / gamma / beta
    io_blocks = 2 * (2 * N * D * f4)                 # double-buffered x / out tiles
    scratch = (2 * M * tb * D + N * D) * f4          # spectral + row scratches
    live = (8 * N * D + 2 * N * f_chunk) * f4        # resident f32 temporaries
    need = weights + io_blocks + scratch + live + (4 << 20)
    cap = int(_vmem_capacity_bytes() * 0.85)
    return int(min(cap, max(32 << 20, need)))


def _pick_batch_block(B, L, requested=None):
    """Largest tb with grid = B//tb >= 2, preferring tb*L a multiple of 256."""
    if requested:
        tb = int(requested)
        assert B % tb == 0, "batch must be divisible by batch_block"
        return tb
    divisors = [d for d in range(1, B + 1) if B % d == 0 and B // d >= 2]
    if not divisors:
        return B
    pref = [d for d in divisors if (d * L) % 256 == 0]
    return max(pref) if pref else max(divisors)


def run_encoder_layer(x, lp, consts, gamma, beta, cfg, *, apply_norm, tb):
    B, L, D = x.shape
    H, M, F = cfg['n_heads'], cfg['n_modes'], cfg['d_ff']
    K = len(cfg['kernel_sizes'])
    assert D % H == 0, "d_model must be divisible by n_heads"
    assert B % tb == 0, "batch must be divisible by batch_block"
    f_chunk = min(int(cfg.get('ffn_chunk', 512)), F)

    vmem = pl.BlockSpec(memory_space=pltpu.MemorySpace.VMEM)   # single-buffered
    smem = pl.BlockSpec(memory_space=pltpu.MemorySpace.SMEM)

    kernel = functools.partial(
        encoder_layer_kernel, n_heads=H, n_kernels=K, tb=tb, f_chunk=f_chunk,
        activation=cfg['activation'],
        gelu_approx=bool(cfg.get('gelu_approximate', True)),
        apply_norm=apply_norm)

    return pl.pallas_call(
        kernel,
        grid=(B // tb,),
        in_specs=[
            pl.BlockSpec((tb, L, D), lambda i: (i, 0, 0)),   # x (tb sequences / step)
            vmem, vmem, vmem, vmem,                          # Wq, bq, Wo, bo
            vmem, vmem,                                      # packed spectral weights
            vmem, vmem,                                      # stacked DFT / iDFT
            vmem,                                            # moving-average operators
            smem, smem, smem, smem,                          # decomp Linear(1,K) params
            vmem, vmem,                                      # conv_ffn weights
            vmem, vmem,                                      # seasonal-LN gamma / beta
        ],
        out_specs=pl.BlockSpec((tb, L, D), lambda i: (i, 0, 0)),
        out_shape=jax.ShapeDtypeStruct((B, L, D), jnp.float32),
        scratch_shapes=[
            pltpu.VMEM((2 * M, tb, D), jnp.float32),         # spectral scratch
            pltpu.VMEM((tb * L, D), jnp.float32),            # row scratch
        ],
        compiler_params=pltpu.CompilerParams(
            dimension_semantics=("parallel",),
            vmem_limit_bytes=_vmem_limit_bytes(tb, L, D, H, M, F, K, f_chunk)),
    )(x, lp['wq'], lp['bq'], lp['wo'], lp['bo'], lp['wcr'], lp['wci'],
      consts['ffwd'], consts['finv'], consts['avg'],
      lp['dec1_w'], lp['dec1_b'], lp['dec2_w'], lp['dec2_b'],
      lp['w1'], lp['w2'], gamma, beta)


def fedformer_encoder(x, params, consts, cfg):
    B, L, _ = x.shape
    tb = _pick_batch_block(B, L, cfg.get('batch_block'))
    layers = params['layers']
    for i, lp in enumerate(layers):
        x = run_encoder_layer(x, lp, consts, params['gamma'], params['beta'], cfg,
                              apply_norm=(i == len(layers) - 1), tb=tb)
    return x


# ----------------------------------------------------------------------------
# Deterministic parameter / constant construction
# ----------------------------------------------------------------------------
def build_constants(L, M, kernel_sizes):
    """Stacked DFT matrices (lowest M rfft modes) + moving-average operators."""
    t = np.arange(L, dtype=np.float64)[None, :]            # (1, L)
    m = np.arange(M, dtype=np.float64)[:, None]            # (M, 1)
    ang = 2.0 * np.pi * m * t / L                          # (M, L)
    cos, sin = np.cos(ang), np.sin(ang)

    scale = np.full((M,), 2.0)
    scale[0] = 1.0
    nyquist = (L % 2 == 0) and (M - 1 == L // 2)
    if nyquist:
        scale[-1] = 1.0
    icos = (cos.T * scale[None, :]) / L                    # (L, M)
    isin = (-sin.T * scale[None, :]) / L                   # (L, M)
    isin[:, 0] = 0.0                                       # irfft ignores Im(DC)
    if nyquist:
        isin[:, -1] = 0.0                                  # ... and Im(Nyquist)

    ffwd = np.concatenate([cos, -sin], axis=0)             # (2M, L): -> [xr; xi]
    finv = np.concatenate([icos, isin], axis=1)            # (L, 2M): <- [o_r; o_i]

    avg = np.zeros((len(kernel_sizes), L, L))
    for ki, k in enumerate(kernel_sizes):                  # odd kernel sizes assumed
        pad = (k - 1) // 2
        for i in range(L):
            for j in range(k):
                tt = min(max(i + j - pad, 0), L - 1)       # replicate padding
                avg[ki, i, tt] += 1.0 / k

    bf = lambda a: jnp.asarray(a, _BF16)
    return dict(ffwd=bf(ffwd), finv=bf(finv), avg=bf(avg))


def init_params(key, cfg):
    D, H, M, F = cfg['d_model'], cfg['n_heads'], cfg['n_modes'], cfg['d_ff']
    K = len(cfg['kernel_sizes'])
    E = D // H
    s = 1.0 / np.sqrt(D)
    sf = 1.0 / np.sqrt(F)

    def u(k, shape, lo, hi, dtype=_F32):
        return jax.random.uniform(k, shape, _F32, lo, hi).astype(dtype)

    layers = []
    keys = jax.random.split(key, cfg['e_layers'])
    for li in range(cfg['e_layers']):
        k = jax.random.split(keys[li], 12)
        # complex spectral weights, scale 1/(d_model^2) * U[0,1) (FEDformer init)
        fwr = jax.random.uniform(k[4], (H, M, E, E), _F32) / (D * D)
        fwi = jax.random.uniform(k[5], (H, M, E, E), _F32) / (D * D)
        layers.append(dict(
            wq=u(k[0], (D, D), -s, s, _BF16),
            bq=u(k[1], (1, D), -s, s),
            wo=u(k[2], (D, D), -s, s, _BF16),
            bo=u(k[3], (1, D), -s, s),
            # complex-packed mixing weights:  [xr]@[wr|wi] + [xi]@[-wi|wr] = [o_r|o_i]
            wcr=jnp.concatenate([fwr, fwi], axis=-1).astype(_BF16),    # (H, M, E, 2E)
            wci=jnp.concatenate([-fwi, fwr], axis=-1).astype(_BF16),   # (H, M, E, 2E)
            dec1_w=u(k[6], (K,), -1.0, 1.0),
            dec1_b=u(k[7], (K,), -1.0, 1.0),
            dec2_w=u(k[8], (K,), -1.0, 1.0),
            dec2_b=u(k[9], (K,), -1.0, 1.0),
            w1=u(k[10], (D, F), -s, s, _BF16),
            w2=u(k[11], (F, D), -sf, sf, _BF16),
        ))
    return dict(layers=layers,
                gamma=jnp.ones((1, D), _F32),
                beta=jnp.zeros((1, D), _F32))


# ----------------------------------------------------------------------------
if __name__ == "__main__":
    # NOTE: production configs should keep d_model / d_ff multiples of 128 for
    # lane-dense loads/stores; the demo config is intentionally tiny.
    cfg = dict(e_layers=2, seq_len=16, d_model=32, n_heads=4, n_modes=4,
               d_ff=64, kernel_sizes=(3, 5), activation='relu', dropout=0.0,
               batch_block=None,        # auto: largest tb with grid >= 2
               ffn_chunk=512, gelu_approximate=True)
    B = 4

    key = jax.random.PRNGKey(0)
    kx, kp = jax.random.split(key)
    x = jax.random.normal(kx, (B, cfg['seq_len'], cfg['d_model']), jnp.float32)

    params = init_params(kp, cfg)
    consts = build_constants(cfg['seq_len'], cfg['n_modes'], cfg['kernel_sizes'])

    y = fedformer_encoder(x, params, consts, cfg)
    y = jax.block_until_ready(y)

    assert y.shape == x.shape
    assert bool(jnp.all(jnp.isfinite(y)))
    print("KERNEL_OK")
</pallas_src>

<mosaic_0001>
module attributes {stable_mosaic.version = 11 : i64} {
  func.func @encoder_layer_kernel(%arg0: i32, %arg1: memref<2x16x32xf32, #tpu.memory_space<vmem>>, %arg2: memref<32x32xbf16, #tpu.memory_space<vmem>>, %arg3: memref<1x32xf32, #tpu.memory_space<vmem>>, %arg4: memref<32x32xbf16, #tpu.memory_space<vmem>>, %arg5: memref<1x32xf32, #tpu.memory_space<vmem>>, %arg6: memref<4x4x8x16xbf16, #tpu.memory_space<vmem>>, %arg7: memref<4x4x8x16xbf16, #tpu.memory_space<vmem>>, %arg8: memref<8x16xbf16, #tpu.memory_space<vmem>>, %arg9: memref<16x8xbf16, #tpu.memory_space<vmem>>, %arg10: memref<2x16x16xbf16, #tpu.memory_space<vmem>>, %arg11: memref<2xf32, #tpu.memory_space<smem>>, %arg12: memref<2xf32, #tpu.memory_space<smem>>, %arg13: memref<2xf32, #tpu.memory_space<smem>>, %arg14: memref<2xf32, #tpu.memory_space<smem>>, %arg15: memref<32x64xbf16, #tpu.memory_space<vmem>>, %arg16: memref<64x32xbf16, #tpu.memory_space<vmem>>, %arg17: memref<1x32xf32, #tpu.memory_space<vmem>>, %arg18: memref<1x32xf32, #tpu.memory_space<vmem>>, %arg19: memref<2x16x32xf32, #tpu.memory_space<vmem>>, %arg20: memref<8x2x32xf32, #tpu.memory_space<vmem>>, %arg21: memref<32x32xf32, #tpu.memory_space<vmem>>) attributes {dimension_semantics = [#tpu.dimension_semantics<parallel>], iteration_bounds = array<i64: 2>, scalar_prefetch = 0 : i64, scratch_operands = 2 : i64, tpu.core_type = #tpu.core_type<tc>, window_params = [{transform_indices = @transform_0, window_bounds = array<i64: 2, 16, 32>}, {pipeline_mode = #tpu.pipeline_mode<synchronous>, transform_indices = @transform_1, window_bounds = array<i64: 32, 32>}, {pipeline_mode = #tpu.pipeline_mode<synchronous>, transform_indices = @transform_2, window_bounds = array<i64: 1, 32>}, {pipeline_mode = #tpu.pipeline_mode<synchronous>, transform_indices = @transform_3, window_bounds = array<i64: 32, 32>}, {pipeline_mode = #tpu.pipeline_mode<synchronous>, transform_indices = @transform_4, window_bounds = array<i64: 1, 32>}, {pipeline_mode = #tpu.pipeline_mode<synchronous>, transform_indices = @transform_5, window_bounds = array<i64: 4, 4, 8, 16>}, {pipeline_mode = #tpu.pipeline_mode<synchronous>, transform_indices = @transform_6, window_bounds = array<i64: 4, 4, 8, 16>}, {pipeline_mode = #tpu.pipeline_mode<synchronous>, transform_indices = @transform_7, window_bounds = array<i64: 8, 16>}, {pipeline_mode = #tpu.pipeline_mode<synchronous>, transform_indices = @transform_8, window_bounds = array<i64: 16, 8>}, {pipeline_mode = #tpu.pipeline_mode<synchronous>, transform_indices = @transform_9, window_bounds = array<i64: 2, 16, 16>}, {transform_indices = @transform_10, window_bounds = array<i64: 2>}, {transform_indices = @transform_11, window_bounds = array<i64: 2>}, {transform_indices = @transform_12, window_bounds = array<i64: 2>}, {transform_indices = @transform_13, window_bounds = array<i64: 2>}, {pipeline_mode = #tpu.pipeline_mode<synchronous>, transform_indices = @transform_14, window_bounds = array<i64: 32, 64>}, {pipeline_mode = #tpu.pipeline_mode<synchronous>, transform_indices = @transform_15, window_bounds = array<i64: 64, 32>}, {pipeline_mode = #tpu.pipeline_mode<synchronous>, transform_indices = @transform_16, window_bounds = array<i64: 1, 32>}, {pipeline_mode = #tpu.pipeline_mode<synchronous>, transform_indices = @transform_17, window_bounds = array<i64: 1, 32>}, {transform_indices = @transform_18, window_bounds = array<i64: 2, 16, 32>}]} {
    %c0 = arith.constant 0 : index
    %c0_0 = arith.constant 0 : index
    %c0_1 = arith.constant 0 : index
    %0 = vector.load %arg1[%c0, %c0_0, %c0_1] : memref<2x16x32xf32, #tpu.memory_space<vmem>>, vector<2x16x32xf32>
    %1 = vector.shape_cast %0 : vector<2x16x32xf32> to vector<32x32xf32>
    %2 = arith.truncf %1 : vector<32x32xf32> to vector<32x32xbf16>
    %c0_2 = arith.constant 0 : index
    %c0_3 = arith.constant 0 : index
    %3 = vector.load %arg2[%c0_2, %c0_3] : memref<32x32xbf16, #tpu.memory_space<vmem>>, vector<32x32xbf16>
    %cst = arith.constant dense<0.000000e+00> : vector<32x32xf32>
    %4 = tpu.matmul %2, %3, %cst {dimension_numbers = #tpu.dot_dimension_numbers<[1], [0], [0], [1], [0, 0, 1, 1], [], []>} : vector<32x32xbf16>, vector<32x32xbf16>, vector<32x32xf32> -> vector<32x32xf32>
    %c0_4 = arith.constant 0 : index
    %c0_5 = arith.constant 0 : index
    %5 = vector.load %arg3[%c0_4, %c0_5] : memref<1x32xf32, #tpu.memory_space<vmem>>, vector<1x32xf32>
    %6 = vector.broadcast %5 : vector<1x32xf32> to vector<32x32xf32>
    %7 = arith.addf %4, %6 : vector<32x32xf32>
    %8 = arith.truncf %7 : vector<32x32xf32> to vector<32x32xbf16>
    %c0_6 = arith.constant 0 : index
    %c0_7 = arith.constant 0 : index
    %9 = vector.load %arg8[%c0_6, %c0_7] : memref<8x16xbf16, #tpu.memory_space<vmem>>, vector<8x16xbf16>
    %10 = vector.extract_strided_slice %8 {offsets = [0, 0], sizes = [16, 32], strides = [1, 1]} : vector<32x32xbf16> to vector<16x32xbf16>
    %cst_8 = arith.constant dense<0.000000e+00> : vector<8x32xf32>
    %11 = tpu.matmul %9, %10, %cst_8 {dimension_numbers = #tpu.dot_dimension_numbers<[1], [0], [0], [1], [0, 0, 1, 1], [], []>} : vector<8x16xbf16>, vector<16x32xbf16>, vector<8x32xf32> -> vector<8x32xf32>
    %c0_9 = arith.constant 0 : index
    %c0_10 = arith.constant 0 : index
    %c0_11 = arith.constant 0 : index
    %12 = vector.load %arg20[%c0_9, %c0_10, %c0_11] : memref<8x2x32xf32, #tpu.memory_space<vmem>>, vector<8x1x32xf32>
    %13 = vector.shape_cast %12 : vector<8x1x32xf32> to vector<8x32xf32>
    %14 = vector.shape_cast %11 : vector<8x32xf32> to vector<8x1x32xf32>
    tpu.vector_store %arg20[%c0_9, %c0_10, %c0_11], %14 {strides = array<i32>} : memref<8x2x32xf32, #tpu.memory_space<vmem>>, vector<8x1x32xf32>,
    %15 = vector.extract_strided_slice %8 {offsets = [16, 0], sizes = [16, 32], strides = [1, 1]} : vector<32x32xbf16> to vector<16x32xbf16>
    %cst_12 = arith.constant dense<0.000000e+00> : vector<8x32xf32>
    %16 = tpu.matmul %9, %15, %cst_12 {dimension_numbers = #tpu.dot_dimension_numbers<[1], [0], [0], [1], [0, 0, 1, 1], [], []>} : vector<8x16xbf16>, vector<16x32xbf16>, vector<8x32xf32> -> vector<8x32xf32>
    %c0_13 = arith.constant 0 : index
    %c1 = arith.constant 1 : index
    %c0_14 = arith.constant 0 : index
    %17 = vector.load %arg20[%c0_13, %c1, %c0_14] : memref<8x2x32xf32, #tpu.memory_space<vmem>>, vector<8x1x32xf32>
    %18 = vector.shape_cast %17 : vector<8x1x32xf32> to vector<8x32xf32>
    %19 = vector.shape_cast %16 : vector<8x32xf32> to vector<8x1x32xf32>
    tpu.vector_store %arg20[%c0_13, %c1, %c0_14], %19 {strides = array<i32>} : memref<8x2x32xf32, #tpu.memory_space<vmem>>, vector<8x1x32xf32>,
    %c0_15 = arith.constant 0 : index
    %c0_16 = arith.constant 0 : index
    %c0_17 = arith.constant 0 : index
    %20 = vector.load %arg20[%c0_15, %c0_16, %c0_17] : memref<8x2x32xf32, #tpu.memory_space<vmem>>, vector<4x2x8xf32>
    %21 = arith.truncf %20 : vector<4x2x8xf32> to vector<4x2x8xbf16>
    %c4 = arith.constant 4 : index
    %c0_18 = arith.constant 0 : index
    %c0_19 = arith.constant 0 : index
    %22 = vector.load %arg20[%c4, %c0_18, %c0_19] : memref<8x2x32xf32, #tpu.memory_space<vmem>>, vector<4x2x8xf32>
    %23 = arith.truncf %22 : vector<4x2x8xf32> to vector<4x2x8xbf16>
    %c0_20 = arith.constant 0 : index
    %c0_21 = arith.constant 0 : index
    %c0_22 = arith.constant 0 : index
    %c0_23 = arith.constant 0 : index
    %24 = vector.load %arg6[%c0_20, %c0_21, %c0_22, %c0_23] : memref<4x4x8x16xbf16, #tpu.memory_space<vmem>>, vector<1x4x8x16xbf16>
    %25 = vector.shape_cast %24 : vector<1x4x8x16xbf16> to vector<4x8x16xbf16>
    %cst_24 = arith.constant dense<0.000000e+00> : vector<4x2x16xf32>
    %26 = tpu.matmul %21, %25, %cst_24 {dimension_numbers = #tpu.dot_dimension_numbers<[2], [1], [1], [2], [0, 0, 0, 1, 1, 2], [0], [0]>} : vector<4x2x8xbf16>, vector<4x8x16xbf16>, vector<4x2x16xf32> -> vector<4x2x16xf32>
    %c0_25 = arith.constant 0 : index
    %c0_26 = arith.constant 0 : index
    %c0_27 = arith.constant 0 : index
    %c0_28 = arith.constant 0 : index
    %27 = vector.load %arg7[%c0_25, %c0_26, %c0_27, %c0_28] : memref<4x4x8x16xbf16, #tpu.memory_space<vmem>>, vector<1x4x8x16xbf16>
    %28 = vector.shape_cast %27 : vector<1x4x8x16xbf16> to vector<4x8x16xbf16>
    %cst_29 = arith.constant dense<0.000000e+00> : vector<4x2x16xf32>
    %29 = tpu.matmul %23, %28, %cst_29 {dimension_numbers = #tpu.dot_dimension_numbers<[2], [1], [1], [2], [0, 0, 0, 1, 1, 2], [0], [0]>} : vector<4x2x8xbf16>, vector<4x8x16xbf16>, vector<4x2x16xf32> -> vector<4x2x16xf32>
    %30 = arith.addf %26, %29 : vector<4x2x16xf32>
    %31 = vector.extract_strided_slice %30 {offsets = [0, 0, 0], sizes = [4, 2, 8], strides = [1, 1, 1]} : vector<4x2x16xf32> to vector<4x2x8xf32>
    %c0_30 = arith.constant 0 : index
    %c0_31 = arith.constant 0 : index
    %c0_32 = arith.constant 0 : index
    %32 = vector.load %arg20[%c0_30, %c0_31, %c0_32] : memref<8x2x32xf32, #tpu.memory_space<vmem>>, vector<4x2x8xf32>
    tpu.vector_store %arg20[%c0_30, %c0_31, %c0_32], %31 {strides = array<i32>} : memref<8x2x32xf32, #tpu.memory_space<vmem>>, vector<4x2x8xf32>,
    %33 = vector.extract_strided_slice %30 {offsets = [0, 0, 8], sizes = [4, 2, 8], strides = [1, 1, 1]} : vector<4x2x16xf32> to vector<4x2x8xf32>
    %c4_33 = arith.constant 4 : index
    %c0_34 = arith.constant 0 : index
    %c0_35 = arith.constant 0 : index
    %34 = vector.load %arg20[%c4_33, %c0_34, %c0_35] : memref<8x2x32xf32, #tpu.memory_space<vmem>>, vector<4x2x8xf32>
    tpu.vector_store %arg20[%c4_33, %c0_34, %c0_35], %33 {strides = array<i32>} : memref<8x2x32xf32, #tpu.memory_space<vmem>>, vector<4x2x8xf32>,
    %c0_36 = arith.constant 0 : index
    %c0_37 = arith.constant 0 : index
    %c8 = arith.constant 8 : index
    %35 = vector.load %arg20[%c0_36, %c0_37, %c8] : memref<8x2x32xf32, #tpu.memory_space<vmem>>, vector<4x2x8xf32>
    %36 = arith.truncf %35 : vector<4x2x8xf32> to vector<4x2x8xbf16>
    %c4_38 = arith.constant 4 : index
    %c0_39 = arith.constant 0 : index
    %c8_40 = arith.constant 8 : index
    %37 = vector.load %arg20[%c4_38, %c0_39, %c8_40] : memref<8x2x32xf32, #tpu.memory_space<vmem>>, vector<4x2x8xf32>
    %38 = arith.truncf %37 : vector<4x2x8xf32> to vector<4x2x8xbf16>
    %c1_41 = arith.constant 1 : index
    %c0_42 = arith.constant 0 : index
    %c0_43 = arith.constant 0 : index
    %c0_44 = arith.constant 0 : index
    %39 = vector.load %arg6[%c1_41, %c0_42, %c0_43, %c0_44] : memref<4x4x8x16xbf16, #tpu.memory_space<vmem>>, vector<1x4x8x16xbf16>
    %40 = vector.shape_cast %39 : vector<1x4x8x16xbf16> to vector<4x8x16xbf16>
    %cst_45 = arith.constant dense<0.000000e+00> : vector<4x2x16xf32>
    %41 = tpu.matmul %36, %40, %cst_45 {dimension_numbers = #tpu.dot_dimension_numbers<[2], [1], [1], [2], [0, 0, 0, 1, 1, 2], [0], [0]>} : vector<4x2x8xbf16>, vector<4x8x16xbf16>, vector<4x2x16xf32> -> vector<4x2x16xf32>
    %c1_46 = arith.constant 1 : index
    %c0_47 = arith.constant 0 : index
    %c0_48 = arith.constant 0 : index
    %c0_49 = arith.constant 0 : index
    %42 = vector.load %arg7[%c1_46, %c0_47, %c0_48, %c0_49] : memref<4x4x8x16xbf16, #tpu.memory_space<vmem>>, vector<1x4x8x16xbf16>
    %43 = vector.shape_cast %42 : vector<1x4x8x16xbf16> to vector<4x8x16xbf16>
    %cst_50 = arith.constant dense<0.000000e+00> : vector<4x2x16xf32>
    %44 = tpu.matmul %38, %43, %cst_50 {dimension_numbers = #tpu.dot_dimension_numbers<[2], [1], [1], [2], [0, 0, 0, 1, 1, 2], [0], [0]>} : vector<4x2x8xbf16>, vector<4x8x16xbf16>, vector<4x2x16xf32> -> vector<4x2x16xf32>
    %45 = arith.addf %41, %44 : vector<4x2x16xf32>
    %46 = vector.extract_strided_slice %45 {offsets = [0, 0, 0], sizes = [4, 2, 8], strides = [1, 1, 1]} : vector<4x2x16xf32> to vector<4x2x8xf32>
    %c0_51 = arith.constant 0 : index
    %c0_52 = arith.constant 0 : index
    %c8_53 = arith.constant 8 : index
    %47 = vector.load %arg20[%c0_51, %c0_52, %c8_53] : memref<8x2x32xf32, #tpu.memory_space<vmem>>, vector<4x2x8xf32>
    tpu.vector_store %arg20[%c0_51, %c0_52, %c8_53], %46 {strides = array<i32>} : memref<8x2x32xf32, #tpu.memory_space<vmem>>, vector<4x2x8xf32>,
    %48 = vector.extract_strided_slice %45 {offsets = [0, 0, 8], sizes = [4, 2, 8], strides = [1, 1, 1]} : vector<4x2x16xf32> to vector<4x2x8xf32>
    %c4_54 = arith.constant 4 : index
    %c0_55 = arith.constant 0 : index
    %c8_56 = arith.constant 8 : index
    %49 = vector.load %arg20[%c4_54, %c0_55, %c8_56] : memref<8x2x32xf32, #tpu.memory_space<vmem>>, vector<4x2x8xf32>
    tpu.vector_store %arg20[%c4_54, %c0_55, %c8_56], %48 {strides = array<i32>} : memref<8x2x32xf32, #tpu.memory_space<vmem>>, vector<4x2x8xf32>,
    %c0_57 = arith.constant 0 : index
    %c0_58 = arith.constant 0 : index
    %c16 = arith.constant 16 : index
    %50 = vector.load %arg20[%c0_57, %c0_58, %c16] : memref<8x2x32xf32, #tpu.memory_space<vmem>>, vector<4x2x8xf32>
    %51 = arith.truncf %50 : vector<4x2x8xf32> to vector<4x2x8xbf16>
    %c4_59 = arith.constant 4 : index
    %c0_60 = arith.constant 0 : index
    %c16_61 = arith.constant 16 : index
    %52 = vector.load %arg20[%c4_59, %c0_60, %c16_61] : memref<8x2x32xf32, #tpu.memory_space<vmem>>, vector<4x2x8xf32>
    %53 = arith.truncf %52 : vector<4x2x8xf32> to vector<4x2x8xbf16>
    %c2 = arith.constant 2 : index
    %c0_62 = arith.constant 0 : index
    %c0_63 = arith.constant 0 : index
    %c0_64 = arith.constant 0 : index
    %54 = vector.load %arg6[%c2, %c0_62, %c0_63, %c0_64] : memref<4x4x8x16xbf16, #tpu.memory_space<vmem>>, vector<1x4x8x16xbf16>
    %55 = vector.shape_cast %54 : vector<1x4x8x16xbf16> to vector<4x8x16xbf16>
    %cst_65 = arith.constant dense<0.000000e+00> : vector<4x2x16xf32>
    %56 = tpu.matmul %51, %55, %cst_65 {dimension_numbers = #tpu.dot_dimension_numbers<[2], [1], [1], [2], [0, 0, 0, 1, 1, 2], [0], [0]>} : vector<4x2x8xbf16>, vector<4x8x16xbf16>, vector<4x2x16xf32> -> vector<4x2x16xf32>
    %c2_66 = arith.constant 2 : index
    %c0_67 = arith.constant 0 : index
    %c0_68 = arith.constant 0 : index
    %c0_69 = arith.constant 0 : index
    %57 = vector.load %arg7[%c2_66, %c0_67, %c0_68, %c0_69] : memref<4x4x8x16xbf16, #tpu.memory_space<vmem>>, vector<1x4x8x16xbf16>
    %58 = vector.shape_cast %57 : vector<1x4x8x16xbf16> to vector<4x8x16xbf16>
    %cst_70 = arith.constant dense<0.000000e+00> : vector<4x2x16xf32>
    %59 = tpu.matmul %53, %58, %cst_70 {dimension_numbers = #tpu.dot_dimension_numbers<[2], [1], [1], [2], [0, 0, 0, 1, 1, 2], [0], [0]>} : vector<4x2x8xbf16>, vector<4x8x16xbf16>, vector<4x2x16xf32> -> vector<4x2x16xf32>
    %60 = arith.addf %56, %59 : vector<4x2x16xf32>
    %61 = vector.extract_strided_slice %60 {offsets = [0, 0, 0], sizes = [4, 2, 8], strides = [1, 1, 1]} : vector<4x2x16xf32> to vector<4x2x8xf32>
    %c0_71 = arith.constant 0 : index
    %c0_72 = arith.constant 0 : index
    %c16_73 = arith.constant 16 : index
    %62 = vector.load %arg20[%c0_71, %c0_72, %c16_73] : memref<8x2x32xf32, #tpu.memory_space<vmem>>, vector<4x2x8xf32>
    tpu.vector_store %arg20[%c0_71, %c0_72, %c16_73], %61 {strides = array<i32>} : memref<8x2x32xf32, #tpu.memory_space<vmem>>, vector<4x2x8xf32>,
    %63 = vector.extract_strided_slice %60 {offsets = [0, 0, 8], sizes = [4, 2, 8], strides = [1, 1, 1]} : vector<4x2x16xf32> to vector<4x2x8xf32>
    %c4_74 = arith.constant 4 : index
    %c0_75 = arith.constant 0 : index
    %c16_76 = arith.constant 16 : index
    %64 = vector.load %arg20[%c4_74, %c0_75, %c16_76] : memref<8x2x32xf32, #tpu.memory_space<vmem>>, vector<4x2x8xf32>
    tpu.vector_store %arg20[%c4_74, %c0_75, %c16_76], %63 {strides = array<i32>} : memref<8x2x32xf32, #tpu.memory_space<vmem>>, vector<4x2x8xf32>,
    %c0_77 = arith.constant 0 : index
    %c0_78 = arith.constant 0 : index
    %c24 = arith.constant 24 : index
    %65 = vector.load %arg20[%c0_77, %c0_78, %c24] : memref<8x2x32xf32, #tpu.memory_space<vmem>>, vector<4x2x8xf32>
    %66 = arith.truncf %65 : vector<4x2x8xf32> to vector<4x2x8xbf16>
    %c4_79 = arith.constant 4 : index
    %c0_80 = arith.constant 0 : index
    %c24_81 = arith.constant 24 : index
    %67 = vector.load %arg20[%c4_79, %c0_80, %c24_81] : memref<8x2x32xf32, #tpu.memory_space<vmem>>, vector<4x2x8xf32>
    %68 = arith.truncf %67 : vector<4x2x8xf32> to vector<4x2x8xbf16>
    %c3 = arith.constant 3 : index
    %c0_82 = arith.constant 0 : index
    %c0_83 = arith.constant 0 : index
    %c0_84 = arith.constant 0 : index
    %69 = vector.load %arg6[%c3, %c0_82, %c0_83, %c0_84] : memref<4x4x8x16xbf16, #tpu.memory_space<vmem>>, vector<1x4x8x16xbf16>
    %70 = vector.shape_cast %69 : vector<1x4x8x16xbf16> to vector<4x8x16xbf16>
    %cst_85 = arith.constant dense<0.000000e+00> : vector<4x2x16xf32>
    %71 = tpu.matmul %66, %70, %cst_85 {dimension_numbers = #tpu.dot_dimension_numbers<[2], [1], [1], [2], [0, 0, 0, 1, 1, 2], [0], [0]>} : vector<4x2x8xbf16>, vector<4x8x16xbf16>, vector<4x2x16xf32> -> vector<4x2x16xf32>
    %c3_86 = arith.constant 3 : index
    %c0_87 = arith.constant 0 : index
    %c0_88 = arith.constant 0 : index
    %c0_89 = arith.constant 0 : index
    %72 = vector.load %arg7[%c3_86, %c0_87, %c0_88, %c0_89] : memref<4x4x8x16xbf16, #tpu.memory_space<vmem>>, vector<1x4x8x16xbf16>
    %73 = vector.shape_cast %72 : vector<1x4x8x16xbf16> to vector<4x8x16xbf16>
    %cst_90 = arith.constant dense<0.000000e+00> : vector<4x2x16xf32>
    %74 = tpu.matmul %68, %73, %cst_90 {dimension_numbers = #tpu.dot_dimension_numbers<[2], [1], [1], [2], [0, 0, 0, 1, 1, 2], [0], [0]>} : vector<4x2x8xbf16>, vector<4x8x16xbf16>, vector<4x2x16xf32> -> vector<4x2x16xf32>
    %75 = arith.addf %71, %74 : vector<4x2x16xf32>
    %76 = vector.extract_strided_slice %75 {offsets = [0, 0, 0], sizes = [4, 2, 8], strides = [1, 1, 1]} : vector<4x2x16xf32> to vector<4x2x8xf32>
    %c0_91 = arith.constant 0 : index
    %c0_92 = arith.constant 0 : index
    %c24_93 = arith.constant 24 : index
    %77 = vector.load %arg20[%c0_91, %c0_92, %c24_93] : memref<8x2x32xf32, #tpu.memory_space<vmem>>, vector<4x2x8xf32>
    tpu.vector_store %arg20[%c0_91, %c0_92, %c24_93], %76 {strides = array<i32>} : memref<8x2x32xf32, #tpu.memory_space<vmem>>, vector<4x2x8xf32>,
    %78 = vector.extract_strided_slice %75 {offsets = [0, 0, 8], sizes = [4, 2, 8], strides = [1, 1, 1]} : vector<4x2x16xf32> to vector<4x2x8xf32>
    %c4_94 = arith.constant 4 : index
    %c0_95 = arith.constant 0 : index
    %c24_96 = arith.constant 24 : index
    %79 = vector.load %arg20[%c4_94, %c0_95, %c24_96] : memref<8x2x32xf32, #tpu.memory_space<vmem>>, vector<4x2x8xf32>
    tpu.vector_store %arg20[%c4_94, %c0_95, %c24_96], %78 {strides = array<i32>} : memref<8x2x32xf32, #tpu.memory_space<vmem>>, vector<4x2x8xf32>,
    %c0_97 = arith.constant 0 : index
    %c0_98 = arith.constant 0 : index
    %80 = vector.load %arg9[%c0_97, %c0_98] : memref<16x8xbf16, #tpu.memory_space<vmem>>, vector<16x8xbf16>
    %c0_99 = arith.constant 0 : index
    %c0_100 = arith.constant 0 : index
    %c0_101 = arith.constant 0 : index
    %81 = vector.load %arg20[%c0_99, %c0_100, %c0_101] : memref<8x2x32xf32, #tpu.memory_space<vmem>>, vector<8x1x32xf32>
    %82 = vector.shape_cast %81 : vector<8x1x32xf32> to vector<8x32xf32>
    %83 = arith.truncf %82 : vector<8x32xf32> to vector<8x32xbf16>
    %cst_102 = arith.constant dense<0.000000e+00> : vector<16x32xf32>
    %84 = tpu.matmul %80, %83, %cst_102 {dimension_numbers = #tpu.dot_dimension_numbers<[1], [0], [0], [1], [0, 0, 1, 1], [], []>} : vector<16x8xbf16>, vector<8x32xbf16>, vector<16x32xf32> -> vector<16x32xf32>
    %c0_103 = arith.constant 0 : index
    %c0_104 = arith.constant 0 : index
    %85 = vector.load %arg21[%c0_103, %c0_104] : memref<32x32xf32, #tpu.memory_space<vmem>>, vector<16x32xf32>
    tpu.vector_store %arg21[%c0_103, %c0_104], %84 {strides = array<i32>} : memref<32x32xf32, #tpu.memory_space<vmem>>, vector<16x32xf32>,
    %c0_105 = arith.constant 0 : index
    %c1_106 = arith.constant 1 : index
    %c0_107 = arith.constant 0 : index
    %86 = vector.load %arg20[%c0_105, %c1_106, %c0_107] : memref<8x2x32xf32, #tpu.memory_space<vmem>>, vector<8x1x32xf32>
    %87 = vector.shape_cast %86 : vector<8x1x32xf32> to vector<8x32xf32>
    %88 = arith.truncf %87 : vector<8x32xf32> to vector<8x32xbf16>
    %cst_108 = arith.constant dense<0.000000e+00> : vector<16x32xf32>
    %89 = tpu.matmul %80, %88, %cst_108 {dimension_numbers = #tpu.dot_dimension_numbers<[1], [0], [0], [1], [0, 0, 1, 1], [], []>} : vector<16x8xbf16>, vector<8x32xbf16>, vector<16x32xf32> -> vector<16x32xf32>
    %c16_109 = arith.constant 16 : index
    %c0_110 = arith.constant 0 : index
    %90 = vector.load %arg21[%c16_109, %c0_110] : memref<32x32xf32, #tpu.memory_space<vmem>>, vector<16x32xf32>
    tpu.vector_store %arg21[%c16_109, %c0_110], %89 {strides = array<i32>} : memref<32x32xf32, #tpu.memory_space<vmem>>, vector<16x32xf32>,
    %c0_111 = arith.constant 0 : index
    %c0_112 = arith.constant 0 : index
    %91 = vector.load %arg21[%c0_111, %c0_112] : memref<32x32xf32, #tpu.memory_space<vmem>>, vector<32x32xf32>
    %92 = arith.truncf %91 : vector<32x32xf32> to vector<32x32xbf16>
    %c0_113 = arith.constant 0 : index
    %c0_114 = arith.constant 0 : index
    %93 = vector.load %arg4[%c0_113, %c0_114] : memref<32x32xbf16, #tpu.memory_space<vmem>>, vector<32x32xbf16>
    %cst_115 = arith.constant dense<0.000000e+00> : vector<32x32xf32>
    %94 = tpu.matmul %92, %93, %cst_115 {dimension_numbers = #tpu.dot_dimension_numbers<[1], [0], [0], [1], [0, 0, 1, 1], [], []>} : vector<32x32xbf16>, vector<32x32xbf16>, vector<32x32xf32> -> vector<32x32xf32>
    %c0_116 = arith.constant 0 : index
    %c0_117 = arith.constant 0 : index
    %95 = vector.load %arg5[%c0_116, %c0_117] : memref<1x32xf32, #tpu.memory_space<vmem>>, vector<1x32xf32>
    %96 = vector.broadcast %95 : vector<1x32xf32> to vector<32x32xf32>
    %97 = arith.addf %94, %96 : vector<32x32xf32>
    %98 = arith.addf %1, %97 : vector<32x32xf32>
    %99 = arith.truncf %98 : vector<32x32xf32> to vector<32x32xbf16>
    %c0_118 = arith.constant 0 : index
    %100 = memref.load %arg11[%c0_118] : memref<2xf32, #tpu.memory_space<smem>>
    %101 = vector.broadcast %100 : f32 to vector<32x32xf32>
    %102 = arith.mulf %98, %101 : vector<32x32xf32>
    %c0_119 = arith.constant 0 : index
    %103 = memref.load %arg12[%c0_119] : memref<2xf32, #tpu.memory_space<smem>>
    %104 = vector.broadcast %103 : f32 to vector<32x32xf32>
    %105 = arith.addf %102, %104 : vector<32x32xf32>
    %cst_120 = arith.constant 1.000000e+00 : f32
    %106 = vector.broadcast %cst_120 : f32 to vector<32x32xf32>
    %c0_121 = arith.constant 0 : index
    %c0_122 = arith.constant 0 : index
    %c0_123 = arith.constant 0 : index
    %107 = vector.load %arg10[%c0_121, %c0_122, %c0_123] : memref<2x16x16xbf16, #tpu.memory_space<vmem>>, vector<1x16x16xbf16>
    %108 = vector.shape_cast %107 : vector<1x16x16xbf16> to vector<16x16xbf16>
    %109 = vector.extract_strided_slice %99 {offsets = [0, 0], sizes = [16, 32], strides = [1, 1]} : vector<32x32xbf16> to vector<16x32xbf16>
    %cst_124 = arith.constant dense<0.000000e+00> : vector<16x32xf32>
    %110 = tpu.matmul %108, %109, %cst_124 {dimension_numbers = #tpu.dot_dimension_numbers<[1], [0], [0], [1], [0, 0, 1, 1], [], []>} : vector<16x16xbf16>, vector<16x32xbf16>, vector<16x32xf32> -> vector<16x32xf32>
    %c0_125 = arith.constant 0 : index
    %c0_126 = arith.constant 0 : index
    %111 = vector.load %arg21[%c0_125, %c0_126] : memref<32x32xf32, #tpu.memory_space<vmem>>, vector<16x32xf32>
    tpu.vector_store %arg21[%c0_125, %c0_126], %110 {strides = array<i32>} : memref<32x32xf32, #tpu.memory_space<vmem>>, vector<16x32xf32>,
    %c0_127 = arith.constant 0 : index
    %c0_128 = arith.constant 0 : index
    %c0_129 = arith.constant 0 : index
    %112 = vector.load %arg10[%c0_127, %c0_128, %c0_129] : memref<2x16x16xbf16, #tpu.memory_space<vmem>>, vector<1x16x16xbf16>
    %113 = vector.shape_cast %112 : vector<1x16x16xbf16> to vector<16x16xbf16>
    %114 = vector.extract_strided_slice %99 {offsets = [16, 0], sizes = [16, 32], strides = [1, 1]} : vector<32x32xbf16> to vector<16x32xbf16>
    %cst_130 = arith.constant dense<0.000000e+00> : vector<16x32xf32>
    %115 = tpu.matmul %113, %114, %cst_130 {dimension_numbers = #tpu.dot_dimension_numbers<[1], [0], [0], [1], [0, 0, 1, 1], [], []>} : vector<16x16xbf16>, vector<16x32xbf16>, vector<16x32xf32> -> vector<16x32xf32>
    %c16_131 = arith.constant 16 : index
    %c0_132 = arith.constant 0 : index
    %116 = vector.load %arg21[%c16_131, %c0_132] : memref<32x32xf32, #tpu.memory_space<vmem>>, vector<16x32xf32>
    tpu.vector_store %arg21[%c16_131, %c0_132], %115 {strides = array<i32>} : memref<32x32xf32, #tpu.memory_space<vmem>>, vector<16x32xf32>,
    %c0_133 = arith.constant 0 : index
    %c0_134 = arith.constant 0 : index
    %117 = vector.load %arg21[%c0_133, %c0_134] : memref<32x32xf32, #tpu.memory_space<vmem>>, vector<32x32xf32>
    %c1_135 = arith.constant 1 : index
    %118 = memref.load %arg11[%c1_135] : memref<2xf32, #tpu.memory_space<smem>>
    %119 = vector.broadcast %118 : f32 to vector<32x32xf32>
    %120 = arith.mulf %98, %119 : vector<32x32xf32>
    %c1_136 = arith.constant 1 : index
    %121 = memref.load %arg12[%c1_136] : memref<2xf32, #tpu.memory_space<smem>>
    %122 = vector.broadcast %121 : f32 to vector<32x32xf32>
    %123 = arith.addf %120, %122 : vector<32x32xf32>
    %c1_137 = arith.constant 1 : index
    %c0_138 = arith.constant 0 : index
    %c0_139 = arith.constant 0 : index
    %124 = vector.load %arg10[%c1_137, %c0_138, %c0_139] : memref<2x16x16xbf16, #tpu.memory_space<vmem>>, vector<1x16x16xbf16>
    %125 = vector.shape_cast %124 : vector<1x16x16xbf16> to vector<16x16xbf16>
    %126 = vector.extract_strided_slice %99 {offsets = [0, 0], sizes = [16, 32], strides = [1, 1]} : vector<32x32xbf16> to vector<16x32xbf16>
    %cst_140 = arith.constant dense<0.000000e+00> : vector<16x32xf32>
    %127 = tpu.matmul %125, %126, %cst_140 {dimension_numbers = #tpu.dot_dimension_numbers<[1], [0], [0], [1], [0, 0, 1, 1], [], []>} : vector<16x16xbf16>, vector<16x32xbf16>, vector<16x32xf32> -> vector<16x32xf32>
    %c0_141 = arith.constant 0 : index
    %c0_142 = arith.constant 0 : index
    %128 = vector.load %arg21[%c0_141, %c0_142] : memref<32x32xf32, #tpu.memory_space<vmem>>, vector<16x32xf32>
    tpu.vector_store %arg21[%c0_141, %c0_142], %127 {strides = array<i32>} : memref<32x32xf32, #tpu.memory_space<vmem>>, vector<16x32xf32>,
    %c1_143 = arith.constant 1 : index
    %c0_144 = arith.constant 0 : index
    %c0_145 = arith.constant 0 : index
    %129 = vector.load %arg10[%c1_143, %c0_144, %c0_145] : memref<2x16x16xbf16, #tpu.memory_space<vmem>>, vector<1x16x16xbf16>
    %130 = vector.shape_cast %129 : vector<1x16x16xbf16> to vector<16x16xbf16>
    %131 = vector.extract_strided_slice %99 {offsets = [16, 0], sizes = [16, 32], strides = [1, 1]} : vector<32x32xbf16> to vector<16x32xbf16>
    %cst_146 = arith.constant dense<0.000000e+00> : vector<16x32xf32>
    %132 = tpu.matmul %130, %131, %cst_146 {dimension_numbers = #tpu.dot_dimension_numbers<[1], [0], [0], [1], [0, 0, 1, 1], [], []>} : vector<16x16xbf16>, vector<16x32xbf16>, vector<16x32xf32> -> vector<16x32xf32>
    %c16_147 = arith.constant 16 : index
    %c0_148 = arith.constant 0 : index
    %133 = vector.load %arg21[%c16_147, %c0_148] : memref<32x32xf32, #tpu.memory_space<vmem>>, vector<16x32xf32>
    tpu.vector_store %arg21[%c16_147, %c0_148], %132 {strides = array<i32>} : memref<32x32xf32, #tpu.memory_space<vmem>>, vector<16x32xf32>,
    %c0_149 = arith.constant 0 : index
    %c0_150 = arith.constant 0 : index
    %134 = vector.load %arg21[%c0_149, %c0_150] : memref<32x32xf32, #tpu.memory_space<vmem>>, vector<32x32xf32>
    %135 = arith.maximumf %105, %123 : vector<32x32xf32>
    %136 = arith.subf %105, %135 : vector<32x32xf32>
    %137 = math.exp %136 : vector<32x32xf32>
    %138 = arith.subf %123, %135 : vector<32x32xf32>
    %139 = math.exp %138 : vector<32x32xf32>
    %140 = arith.mulf %137, %106 : vector<32x32xf32>
    %141 = arith.addf %140, %139 : vector<32x32xf32>
    %142 = arith.mulf %137, %117 : vector<32x32xf32>
    %143 = arith.mulf %139, %134 : vector<32x32xf32>
    %144 = arith.addf %142, %143 : vector<32x32xf32>
    %145 = arith.divf %144, %141 : vector<32x32xf32>
    %146 = arith.subf %98, %145 : vector<32x32xf32>
    %147 = arith.truncf %146 : vector<32x32xf32> to vector<32x32xbf16>
    %c0_151 = arith.constant 0 : index
    %c0_152 = arith.constant 0 : index
    %148 = vector.load %arg15[%c0_151, %c0_152] : memref<32x64xbf16, #tpu.memory_space<vmem>>, vector<32x64xbf16>
    %cst_153 = arith.constant dense<0.000000e+00> : vector<32x64xf32>
    %149 = tpu.matmul %147, %148, %cst_153 {dimension_numbers = #tpu.dot_dimension_numbers<[1], [0], [0], [1], [0, 0, 1, 1], [], []>} : vector<32x32xbf16>, vector<32x64xbf16>, vector<32x64xf32> -> vector<32x64xf32>
    %cst_154 = arith.constant 0.000000e+00 : f32
    %150 = vector.broadcast %cst_154 : f32 to vector<32x64xf32>
    %151 = arith.maximumf %149, %150 : vector<32x64xf32>
    %152 = arith.truncf %151 : vector<32x64xf32> to vector<32x64xbf16>
    %c0_155 = arith.constant 0 : index
    %c0_156 = arith.constant 0 : index
    %153 = vector.load %arg16[%c0_155, %c0_156] : memref<64x32xbf16, #tpu.memory_space<vmem>>, vector<64x32xbf16>
    %cst_157 = arith.constant dense<0.000000e+00> : vector<32x32xf32>
    %154 = tpu.matmul %152, %153, %cst_157 {dimension_numbers = #tpu.dot_dimension_numbers<[1], [0], [0], [1], [0, 0, 1, 1], [], []>} : vector<32x64xbf16>, vector<64x32xbf16>, vector<32x32xf32> -> vector<32x32xf32>
    %155 = arith.addf %146, %154 : vector<32x32xf32>
    %156 = arith.truncf %155 : vector<32x32xf32> to vector<32x32xbf16>
    %c0_158 = arith.constant 0 : index
    %157 = memref.load %arg13[%c0_158] : memref<2xf32, #tpu.memory_space<smem>>
    %158 = vector.broadcast %157 : f32 to vector<32x32xf32>
    %159 = arith.mulf %155, %158 : vector<32x32xf32>
    %c0_159 = arith.constant 0 : index
    %160 = memref.load %arg14[%c0_159] : memref<2xf32, #tpu.memory_space<smem>>
    %161 = vector.broadcast %160 : f32 to vector<32x32xf32>
    %162 = arith.addf %159, %161 : vector<32x32xf32>
    %cst_160 = arith.constant 1.000000e+00 : f32
    %163 = vector.broadcast %cst_160 : f32 to vector<32x32xf32>
    %c0_161 = arith.constant 0 : index
    %c0_162 = arith.constant 0 : index
    %c0_163 = arith.constant 0 : index
    %164 = vector.load %arg10[%c0_161, %c0_162, %c0_163] : memref<2x16x16xbf16, #tpu.memory_space<vmem>>, vector<1x16x16xbf16>
    %165 = vector.shape_cast %164 : vector<1x16x16xbf16> to vector<16x16xbf16>
    %166 = vector.extract_strided_slice %156 {offsets = [0, 0], sizes = [16, 32], strides = [1, 1]} : vector<32x32xbf16> to vector<16x32xbf16>
    %cst_164 = arith.constant dense<0.000000e+00> : vector<16x32xf32>
    %167 = tpu.matmul %165, %166, %cst_164 {dimension_numbers = #tpu.dot_dimension_numbers<[1], [0], [0], [1], [0, 0, 1, 1], [], []>} : vector<16x16xbf16>, vector<16x32xbf16>, vector<16x32xf32> -> vector<16x32xf32>
    %c0_165 = arith.constant 0 : index
    %c0_166 = arith.constant 0 : index
    %168 = vector.load %arg21[%c0_165, %c0_166] : memref<32x32xf32, #tpu.memory_space<vmem>>, vector<16x32xf32>
    tpu.vector_store %arg21[%c0_165, %c0_166], %167 {strides = array<i32>} : memref<32x32xf32, #tpu.memory_space<vmem>>, vector<16x32xf32>,
    %c0_167 = arith.constant 0 : index
    %c0_168 = arith.constant 0 : index
    %c0_169 = arith.constant 0 : index
    %169 = vector.load %arg10[%c0_167, %c0_168, %c0_169] : memref<2x16x16xbf16, #tpu.memory_space<vmem>>, vector<1x16x16xbf16>
    %170 = vector.shape_cast %169 : vector<1x16x16xbf16> to vector<16x16xbf16>
    %171 = vector.extract_strided_slice %156 {offsets = [16, 0], sizes = [16, 32], strides = [1, 1]} : vector<32x32xbf16> to vector<16x32xbf16>
    %cst_170 = arith.constant dense<0.000000e+00> : vector<16x32xf32>
    %172 = tpu.matmul %170, %171, %cst_170 {dimension_numbers = #tpu.dot_dimension_numbers<[1], [0], [0], [1], [0, 0, 1, 1], [], []>} : vector<16x16xbf16>, vector<16x32xbf16>, vector<16x32xf32> -> vector<16x32xf32>
    %c16_171 = arith.constant 16 : index
    %c0_172 = arith.constant 0 : index
    %173 = vector.load %arg21[%c16_171, %c0_172] : memref<32x32xf32, #tpu.memory_space<vmem>>, vector<16x32xf32>
    tpu.vector_store %arg21[%c16_171, %c0_172], %172 {strides = array<i32>} : memref<32x32xf32, #tpu.memory_space<vmem>>, vector<16x32xf32>,
    %c0_173 = arith.constant 0 : index
    %c0_174 = arith.constant 0 : index
    %174 = vector.load %arg21[%c0_173, %c0_174] : memref<32x32xf32, #tpu.memory_space<vmem>>, vector<32x32xf32>
    %c1_175 = arith.constant 1 : index
    %175 = memref.load %arg13[%c1_175] : memref<2xf32, #tpu.memory_space<smem>>
    %176 = vector.broadcast %175 : f32 to vector<32x32xf32>
    %177 = arith.mulf %155, %176 : vector<32x32xf32>
    %c1_176 = arith.constant 1 : index
    %178 = memref.load %arg14[%c1_176] : memref<2xf32, #tpu.memory_space<smem>>
    %179 = vector.broadcast %178 : f32 to vector<32x32xf32>
    %180 = arith.addf %177, %179 : vector<32x32xf32>
    %c1_177 = arith.constant 1 : index
    %c0_178 = arith.constant 0 : index
    %c0_179 = arith.constant 0 : index
    %181 = vector.load %arg10[%c1_177, %c0_178, %c0_179] : memref<2x16x16xbf16, #tpu.memory_space<vmem>>, vector<1x16x16xbf16>
    %182 = vector.shape_cast %181 : vector<1x16x16xbf16> to vector<16x16xbf16>
    %183 = vector.extract_strided_slice %156 {offsets = [0, 0], sizes = [16, 32], strides = [1, 1]} : vector<32x32xbf16> to vector<16x32xbf16>
    %cst_180 = arith.constant dense<0.000000e+00> : vector<16x32xf32>
    %184 = tpu.matmul %182, %183, %cst_180 {dimension_numbers = #tpu.dot_dimension_numbers<[1], [0], [0], [1], [0, 0, 1, 1], [], []>} : vector<16x16xbf16>, vector<16x32xbf16>, vector<16x32xf32> -> vector<16x32xf32>
    %c0_181 = arith.constant 0 : index
    %c0_182 = arith.constant 0 : index
    %185 = vector.load %arg21[%c0_181, %c0_182] : memref<32x32xf32, #tpu.memory_space<vmem>>, vector<16x32xf32>
    tpu.vector_store %arg21[%c0_181, %c0_182], %184 {strides = array<i32>} : memref<32x32xf32, #tpu.memory_space<vmem>>, vector<16x32xf32>,
    %c1_183 = arith.constant 1 : index
    %c0_184 = arith.constant 0 : index
    %c0_185 = arith.constant 0 : index
    %186 = vector.load %arg10[%c1_183, %c0_184, %c0_185] : memref<2x16x16xbf16, #tpu.memory_space<vmem>>, vector<1x16x16xbf16>
    %187 = vector.shape_cast %186 : vector<1x16x16xbf16> to vector<16x16xbf16>
    %188 = vector.extract_strided_slice %156 {offsets = [16, 0], sizes = [16, 32], strides = [1, 1]} : vector<32x32xbf16> to vector<16x32xbf16>
    %cst_186 = arith.constant dense<0.000000e+00> : vector<16x32xf32>
    %189 = tpu.matmul %187, %188, %cst_186 {dimension_numbers = #tpu.dot_dimension_numbers<[1], [0], [0], [1], [0, 0, 1, 1], [], []>} : vector<16x16xbf16>, vector<16x32xbf16>, vector<16x32xf32> -> vector<16x32xf32>
    %c16_187 = arith.constant 16 : index
    %c0_188 = arith.constant 0 : index
    %190 = vector.load %arg21[%c16_187, %c0_188] : memref<32x32xf32, #tpu.memory_space<vmem>>, vector<16x32xf32>
    tpu.vector_store %arg21[%c16_187, %c0_188], %189 {strides = array<i32>} : memref<32x32xf32, #tpu.memory_space<vmem>>, vector<16x32xf32>,
    %c0_189 = arith.constant 0 : index
    %c0_190 = arith.constant 0 : index
    %191 = vector.load %arg21[%c0_189, %c0_190] : memref<32x32xf32, #tpu.memory_space<vmem>>, vector<32x32xf32>
    %192 = arith.maximumf %162, %180 : vector<32x32xf32>
    %193 = arith.subf %162, %192 : vector<32x32xf32>
    %194 = math.exp %193 : vector<32x32xf32>
    %195 = arith.subf %180, %192 : vector<32x32xf32>
    %196 = math.exp %195 : vector<32x32xf32>
    %197 = arith.mulf %194, %163 : vector<32x32xf32>
    %198 = arith.addf %197, %196 : vector<32x32xf32>
    %199 = arith.mulf %194, %174 : vector<32x32xf32>
    %200 = arith.mulf %196, %191 : vector<32x32xf32>
    %201 = arith.addf %199, %200 : vector<32x32xf32>
    %202 = arith.divf %201, %198 : vector<32x32xf32>
    %203 = arith.subf %155, %202 : vector<32x32xf32>
    %204 = vector.shape_cast %203 : vector<32x32xf32> to vector<2x16x32xf32>
    %c0_191 = arith.constant 0 : index
    %c0_192 = arith.constant 0 : index
    %c0_193 = arith.constant 0 : index
    %205 = vector.load %arg19[%c0_191, %c0_192, %c0_193] : memref<2x16x32xf32, #tpu.memory_space<vmem>>, vector<2x16x32xf32>
    tpu.vector_store %arg19[%c0_191, %c0_192, %c0_193], %204 {strides = array<i32>} : memref<2x16x32xf32, #tpu.memory_space<vmem>>, vector<2x16x32xf32>,
    return
  }
  func.func @transform_0(%arg0: i32) -> (i32, i32, i32) {
    %c0_i32 = arith.constant 0 : i32
    %c0_i32_0 = arith.constant 0 : i32
    %c0_i32_1 = arith.constant 0 : i32
    return %arg0, %c0_i32, %c0_i32_0 : i32, i32, i32
  }
  func.func @transform_1(%arg0: i32) -> (i32, i32) {
    %c0_i32 = arith.constant 0 : i32
    %c0_i32_0 = arith.constant 0 : i32
    %c0_i32_1 = arith.constant 0 : i32
    return %c0_i32, %c0_i32_0 : i32, i32
  }
  func.func @transform_2(%arg0: i32) -> (i32, i32) {
    %c0_i32 = arith.constant 0 : i32
    %c0_i32_0 = arith.constant 0 : i32
    %c0_i32_1 = arith.constant 0 : i32
    return %c0_i32, %c0_i32_0 : i32, i32
  }
  func.func @transform_3(%arg0: i32) -> (i32, i32) {
    %c0_i32 = arith.constant 0 : i32
    %c0_i32_0 = arith.constant 0 : i32
    %c0_i32_1 = arith.constant 0 : i32
    return %c0_i32, %c0_i32_0 : i32, i32
  }
  func.func @transform_4(%arg0: i32) -> (i32, i32) {
    %c0_i32 = arith.constant 0 : i32
    %c0_i32_0 = arith.constant 0 : i32
    %c0_i32_1 = arith.constant 0 : i32
    return %c0_i32, %c0_i32_0 : i32, i32
  }
  func.func @transform_5(%arg0: i32) -> (i32, i32, i32, i32) {
    %c0_i32 = arith.constant 0 : i32
    %c0_i32_0 = arith.constant 0 : i32
    %c0_i32_1 = arith.constant 0 : i32
    %c0_i32_2 = arith.constant 0 : i32
    %c0_i32_3 = arith.constant 0 : i32
    return %c0_i32, %c0_i32_0, %c0_i32_1, %c0_i32_2 : i32, i32, i32, i32
  }
  func.func @transform_6(%arg0: i32) -> (i32, i32, i32, i32) {
    %c0_i32 = arith.constant 0 : i32
    %c0_i32_0 = arith.constant 0 : i32
    %c0_i32_1 = arith.constant 0 : i32
    %c0_i32_2 = arith.constant 0 : i32
    %c0_i32_3 = arith.constant 0 : i32
    return %c0_i32, %c0_i32_0, %c0_i32_1, %c0_i32_2 : i32, i32, i32, i32
  }
  func.func @transform_7(%arg0: i32) -> (i32, i32) {
    %c0_i32 = arith.constant 0 : i32
    %c0_i32_0 = arith.constant 0 : i32
    %c0_i32_1 = arith.constant 0 : i32
    return %c0_i32, %c0_i32_0 : i32, i32
  }
  func.func @transform_8(%arg0: i32) -> (i32, i32) {
    %c0_i32 = arith.constant 0 : i32
    %c0_i32_0 = arith.constant 0 : i32
    %c0_i32_1 = arith.constant 0 : i32
    return %c0_i32, %c0_i32_0 : i32, i32
  }
  func.func @transform_9(%arg0: i32) -> (i32, i32, i32) {
    %c0_i32 = arith.constant 0 : i32
    %c0_i32_0 = arith.constant 0 : i32
    %c0_i32_1 = arith.constant 0 : i32
    %c0_i32_2 = arith.constant 0 : i32
    return %c0_i32, %c0_i32_0, %c0_i32_1 : i32, i32, i32
  }
  func.func @transform_10(%arg0: i32) -> i32 {
    %c0_i32 = arith.constant 0 : i32
    %c0_i32_0 = arith.constant 0 : i32
    return %c0_i32 : i32
  }
  func.func @transform_11(%arg0: i32) -> i32 {
    %c0_i32 = arith.constant 0 : i32
    %c0_i32_0 = arith.constant 0 : i32
    return %c0_i32 : i32
  }
  func.func @transform_12(%arg0: i32) -> i32 {
    %c0_i32 = arith.constant 0 : i32
    %c0_i32_0 = arith.constant 0 : i32
    return %c0_i32 : i32
  }
  func.func @transform_13(%arg0: i32) -> i32 {
    %c0_i32 = arith.constant 0 : i32
    %c0_i32_0 = arith.constant 0 : i32
    return %c0_i32 : i32
  }
  func.func @transform_14(%arg0: i32) -> (i32, i32) {
    %c0_i32 = arith.constant 0 : i32
    %c0_i32_0 = arith.constant 0 : i32
    %c0_i32_1 = arith.constant 0 : i32
    return %c0_i32, %c0_i32_0 : i32, i32
  }
  func.func @transform_15(%arg0: i32) -> (i32, i32) {
    %c0_i32 = arith.constant 0 : i32
    %c0_i32_0 = arith.constant 0 : i32
    %c0_i32_1 = arith.constant 0 : i32
    return %c0_i32, %c0_i32_0 : i32, i32
  }
  func.func @transform_16(%arg0: i32) -> (i32, i32) {
    %c0_i32 = arith.constant 0 : i32
    %c0_i32_0 = arith.constant 0 : i32
    %c0_i32_1 = arith.constant 0 : i32
    return %c0_i32, %c0_i32_0 : i32, i32
  }
  func.func @transform_17(%arg0: i32) -> (i32, i32) {
    %c0_i32 = arith.constant 0 : i32
    %c0_i32_0 = arith.constant 0 : i32
    %c0_i32_1 = arith.constant 0 : i32
    return %c0_i32, %c0_i32_0 : i32, i32
  }
  func.func @transform_18(%arg0: i32) -> (i32, i32, i32) {
    %c0_i32 = arith.constant 0 : i32
    %c0_i32_0 = arith.constant 0 : i32
    %c0_i32_1 = arith.constant 0 : i32
    return %arg0, %c0_i32, %c0_i32_0 : i32, i32, i32
  }
}

</mosaic_0001>

<llo_original>
// kernel: tpu_custom_call.1
$region0: #{tpu_custom_call.1}
  #allocation0 [shape = 'u32[]', space=smem, size = 0x4, offset = 0x4, fixed_abs, tag = 'smem constant byte address 0x4 - core index']
  #allocation1 [shape = 'u32[144,128]{1,0:T(1,128)}', space=vmem, size = 0x12000, scoped, tag = 'internal scratch']
  #allocation2 [shape = 'f32[8,2,32]{2,1,0:T(2,128)}', space=vmem, size = 0x2000, scoped, tag = 'scratch operand']
  #allocation3 [shape = 'f32[32,32]{1,0:T(8,128)}', space=vmem, size = 0x4000, scoped, tag = 'scratch operand']
  %s0 = inlined_call_operand.hbm [shape: f32[4,16,32], index: 0, kind: input, shape index: {}]
  %s1 = inlined_call_operand.hbm [shape: bf16[32,32], index: 1, kind: input, shape index: {}]
  %s2 = inlined_call_operand.vmem [shape: f32[1,32], index: 2, kind: input, shape index: {}]
  %s3 = inlined_call_operand.hbm [shape: bf16[32,32], index: 3, kind: input, shape index: {}]
  %s4 = inlined_call_operand.hbm [shape: f32[1,32], index: 4, kind: input, shape index: {}]
  %s5 = inlined_call_operand.vmem [shape: bf16[4,4,8,16], index: 5, kind: input, shape index: {}]
  %s6 = inlined_call_operand.hbm [shape: bf16[4,4,8,16], index: 6, kind: input, shape index: {}]
  %s7 = inlined_call_operand.hbm [shape: bf16[8,16], index: 7, kind: input, shape index: {}]
  %s8 = inlined_call_operand.vmem [shape: bf16[16,8], index: 8, kind: input, shape index: {}]
  %s9 = inlined_call_operand.hbm [shape: bf16[2,16,16], index: 9, kind: input, shape index: {}]
  %s10 = inlined_call_operand.hbm [shape: f32[2], index: 10, kind: input, shape index: {}]
  %s11 = inlined_call_operand.vmem [shape: f32[2], index: 11, kind: input, shape index: {}]
  %s12 = inlined_call_operand.vmem [shape: f32[2], index: 12, kind: input, shape index: {}]
  %s13 = inlined_call_operand.vmem [shape: f32[2], index: 13, kind: input, shape index: {}]
  %s14 = inlined_call_operand.vmem [shape: bf16[32,64], index: 14, kind: input, shape index: {}]
  %s15 = inlined_call_operand.vmem [shape: bf16[64,32], index: 15, kind: input, shape index: {}]
  %s16 = inlined_call_operand.vmem [shape: f32[1,32], index: 16, kind: input, shape index: {}]
  %s17 = inlined_call_operand.vmem [shape: f32[1,32], index: 17, kind: input, shape index: {}]
  %s18 = inlined_call_operand.hbm [shape: f32[4,16,32], index: 18, kind: output, shape index: {}]
  %s19 = sld [smem:[#allocation0]]
  $region149: #{tpu_custom_call.1} parent=0
    _
  %s21 = ssub.s32 1, %s19
  %s22 = scalar_select 0, %s21, %s19
  $region1: #{tpu_custom_call.1} parent=0
    #allocation4 [shape = 'u8[32768]{0}', space=vmem, size = 0x8000, scoped, tag = 'input window, operand 0']
    #allocation5 [shape = 's32[2]{0}', space=sflag, size = 0x8, scoped, tag = 'scoped memory for tpu_custom_call.1']
    #allocation6 [shape = 's32[2]{0}', space=sflag, size = 0x8, scoped, tag = 'scoped memory for tpu_custom_call.1']
    #allocation7 [shape = 's32[2]{0}', space=sflag, size = 0x8, scoped, tag = 'scoped memory for tpu_custom_call.1']
    #allocation8 [shape = 's32[2]{0}', space=sflag, size = 0x8, scoped, tag = 'scoped memory for tpu_custom_call.1']
    #allocation9 [shape = 'u8[8192]{0}', space=vmem, size = 0x2000, scoped, tag = 'input window, operand 1, single buffered']
    #allocation10 [shape = 's32[1]{0}', space=sflag, size = 0x4, scoped, tag = 'scoped memory for tpu_custom_call.1']
    #allocation11 [shape = 'u8[8192]{0}', space=vmem, size = 0x2000, scoped, tag = 'input window, operand 3, single buffered']
    #allocation12 [shape = 'u8[512]{0}', space=vmem, size = 0x400, scoped, tag = 'input window, operand 4, single buffered']
    #allocation13 [shape = 's32[1]{0}', space=sflag, size = 0x4, scoped, tag = 'scoped memory for tpu_custom_call.1']
    #allocation14 [shape = 'u8[32768]{0}', space=vmem, size = 0x8000, scoped, tag = 'input window, operand 6, single buffered']
    #allocation15 [shape = 'u8[2048]{0}', space=vmem, size = 0x800, scoped, tag = 'input window, operand 7, single buffered']
    #allocation16 [shape = 's32[1]{0}', space=sflag, size = 0x4, scoped, tag = 'scoped memory for tpu_custom_call.1']
    #allocation17 [shape = 'u8[8192]{0}', space=vmem, size = 0x2000, scoped, tag = 'input window, operand 9, single buffered']
    #allocation18 [shape = 'u8[512]{0}', space=smem, size = 0x200, scoped, tag = 'input window, operand 10, single buffered']
    #allocation19 [shape = 'u8[512]{0}', space=smem, size = 0x200, scoped, tag = 'input window, operand 11, single buffered']
    #allocation20 [shape = 'u8[512]{0}', space=smem, size = 0x200, scoped, tag = 'input window, operand 12, single buffered']
    #allocation21 [shape = 's32[1]{0}', space=sflag, size = 0x4, scoped, tag = 'scoped memory for tpu_custom_call.1']
    #allocation22 [shape = 'u8[512]{0}', space=smem, size = 0x200, scoped, tag = 'input window, operand 13, single buffered']
    #allocation23 [shape = 'u8[32768]{0}', space=vmem, size = 0x8000, scoped, tag = 'output window, operand 0']
    %23 = vsyncpa [#allocation5], 0
    %s24 = scalar_lea.sflag [#allocation5], 1
    %25 = vsyncpa %s24, 0
    %26 = vsyncpa [#allocation10], 0
    %27 = vsyncpa [#allocation13], 0
    %28 = vsyncpa [#allocation16], 0
    %29 = vsyncpa [#allocation7], 0
    %30 = vsyncpa [#allocation8], 0
    %31 = vsyncpa [#allocation21], 0
    %32 = vsyncpa [#allocation6], 0
    %s33 = scalar_lea.sflag [#allocation6], 1
    %34 = vsyncpa %s33, 0
    loop: start=0, step=1, limit=4
    $region2: #{tpu_custom_call.1} parent=1 // loop_pre_header
      _
    $region3: #{tpu_custom_call.1} parent=1 // loop_header
      %s36 = sphi 0, %s40
      %p37 = scmp.ge.s32.totalorder %s36, 4
      %s46 = sphi 0, %s48
      %s49 = sphi 0, %s46
      %s50 = sphi 0, %s49
      %s66 = sphi 0, %s50
      %s70 = sphi 0, %s70
      %s72 = sphi 0, %s70
      %s73 = sphi 0, %s72
      %s87 = sphi 0, %s73
      %s91 = sphi 0, %s91
      %s93 = sphi 0, %s91
      %s94 = sphi 0, %s93
      %s108 = sphi 0, %s94
      %s112 = sphi 0, %s112
      %s114 = sphi 0, %s112
      %s115 = sphi 0, %s114
      %s129 = sphi 0, %s115
      %s133 = sphi 0, %s133
      %s135 = sphi 0, %s133
      %s136 = sphi 0, %s135
      %s150 = sphi 0, %s136
      %s154 = sphi 0, %s154
      %s156 = sphi 0, %s154
      %s157 = sphi 0, %s156
      %s171 = sphi 0, %s157
      %s175 = sphi 0, %s175
      %s177 = sphi 0, %s175
      %s178 = sphi 0, %s177
      %s192 = sphi 0, %s178
      %s196 = sphi 0, %s196
      %s198 = sphi 0, %s196
      %s199 = sphi 0, %s198
      %s213 = sphi 0, %s199
      %s217 = sphi 0, %s217
      %s219 = sphi 0, %s217
      %s220 = sphi 0, %s219
      %s234 = sphi 0, %s220
      %s238 = sphi 0, %s238
      %s240 = sphi 0, %s238
      %s241 = sphi 0, %s240
      %s255 = sphi 0, %s241
      %s259 = sphi 0, %s259
      %s261 = sphi 0, %s259
      %s262 = sphi 0, %s261
      %s276 = sphi 0, %s262
      %s280 = sphi 0, %s280
      %s282 = sphi 0, %s280
      %s283 = sphi 0, %s282
      %s297 = sphi 0, %s283
      %s301 = sphi 0, %s301
      %s303 = sphi 0, %s301
      %s304 = sphi 0, %s303
      %s318 = sphi 0, %s304
      %s322 = sphi 0, %s322
      %s324 = sphi 0, %s322
      %s325 = sphi 0, %s324
      %s339 = sphi 0, %s325
      %s343 = sphi 0, %s343
      %s345 = sphi 0, %s343
      %s346 = sphi 0, %s345
      %s360 = sphi 0, %s346
      %s364 = sphi 0, %s364
      %s366 = sphi 0, %s364
      %s367 = sphi 0, %s366
      %s381 = sphi 0, %s367
      %s385 = sphi 0, %s385
      %s387 = sphi 0, %s385
      %s388 = sphi 0, %s387
      %s402 = sphi 0, %s388
      %s406 = sphi 0, %s406
      %s408 = sphi 0, %s406
      %s409 = sphi 0, %s408
      %s423 = sphi 0, %s409
      %s429 = sphi 0, %s431
      %s432 = sphi 0, %s429
      %s433 = sphi 0, %s432
      %s449 = sphi 0, %s433
    $region4: #{tpu_custom_call.1} parent=1 // loop_header_branch
      %39 = sbr.rel (%p37) target = $region8
    $region5: #{tpu_custom_call.1} parent=1 // loop_body
      %s41 = ssub.s32 %s36, 1
      %s42 = ssub.s32 %s36, 2
      %s43 = sadd.s32 %s36, 1
      %s44 = ssub.s32 %s36, %s43
      %p45 = scmp.eq.s32.totalorder %s44, 0
      %s47 = sadd.s32 %s46, 1
      %s48 = scalar_select %p45, %s46, %s47
      %p51 = pneg %p45
      %p52 = scmp.eq.s32.totalorder %s36, 1
      %p53 = por %p51, %p52
      %p54 = scmp.ne.s32.totalorder %s46, %s49
      %p55 = scmp.eq.s32.totalorder %s36, 0
      %p56 = por %p54, %p55
      %p57 = scmp.ne.s32.totalorder %s46, %s49
      %p58 = scmp.eq.s32.totalorder %s41, 1
      %p59 = por %p57, %p58
      %p60 = scmp.ne.s32.totalorder %s49, %s50
      %p61 = scmp.eq.s32.totalorder %s41, 0
      %p62 = por %p60, %p61
      %p63 = scmp.ne.s32.totalorder %s49, %s50
      %p64 = scmp.eq.s32.totalorder %s42, 1
      %p65 = por %p63, %p64
      %p67 = scmp.ne.s32.totalorder %s50, %s66
      %p68 = scmp.eq.s32.totalorder %s42, 0
      %p69 = por %p67, %p68
      %s71 = sadd.s32 %s70, 1
      %p74 = scmp.eq.s32.totalorder %s36, 1
      %p75 = scmp.ne.s32.totalorder %s70, %s72
      %p76 = scmp.eq.s32.totalorder %s36, 0
      %p77 = por %p75, %p76
      %p78 = scmp.ne.s32.totalorder %s70, %s72
      %p79 = scmp.eq.s32.totalorder %s41, 1
      %p80 = por %p78, %p79
      %p81 = scmp.ne.s32.totalorder %s72, %s73
      %p82 = scmp.eq.s32.totalorder %s41, 0
      %p83 = por %p81, %p82
      %p84 = scmp.ne.s32.totalorder %s72, %s73
      %p85 = scmp.eq.s32.totalorder %s42, 1
      %p86 = por %p84, %p85
      %p88 = scmp.ne.s32.totalorder %s73, %s87
      %p89 = scmp.eq.s32.totalorder %s42, 0
      %p90 = por %p88, %p89
      %s92 = sadd.s32 %s91, 1
      %p95 = scmp.eq.s32.totalorder %s36, 1
      %p96 = scmp.ne.s32.totalorder %s91, %s93
      %p97 = scmp.eq.s32.totalorder %s36, 0
      %p98 = por %p96, %p97
      %p99 = scmp.ne.s32.totalorder %s91, %s93
      %p100 = scmp.eq.s32.totalorder %s41, 1
      %p101 = por %p99, %p100
      %p102 = scmp.ne.s32.totalorder %s93, %s94
      %p103 = scmp.eq.s32.totalorder %s41, 0
      %p104 = por %p102, %p103
      %p105 = scmp.ne.s32.totalorder %s93, %s94
      %p106 = scmp.eq.s32.totalorder %s42, 1
      %p107 = por %p105, %p106
      %p109 = scmp.ne.s32.totalorder %s94, %s108
      %p110 = scmp.eq.s32.totalorder %s42, 0
      %p111 = por %p109, %p110
      %s113 = sadd.s32 %s112, 1
      %p116 = scmp.eq.s32.totalorder %s36, 1
      %p117 = scmp.ne.s32.totalorder %s112, %s114
      %p118 = scmp.eq.s32.totalorder %s36, 0
      %p119 = por %p117, %p118
      %p120 = scmp.ne.s32.totalorder %s112, %s114
      %p121 = scmp.eq.s32.totalorder %s41, 1
      %p122 = por %p120, %p121
      %p123 = scmp.ne.s32.totalorder %s114, %s115
      %p124 = scmp.eq.s32.totalorder %s41, 0
      %p125 = por %p123, %p124
      %p126 = scmp.ne.s32.totalorder %s114, %s115
      %p127 = scmp.eq.s32.totalorder %s42, 1
      %p128 = por %p126, %p127
      %p130 = scmp.ne.s32.totalorder %s115, %s129
      %p131 = scmp.eq.s32.totalorder %s42, 0
      %p132 = por %p130, %p131
      %s134 = sadd.s32 %s133, 1
      %p137 = scmp.eq.s32.totalorder %s36, 1
      %p138 = scmp.ne.s32.totalorder %s133, %s135
      %p139 = scmp.eq.s32.totalorder %s36, 0
      %p140 = por %p138, %p139
      %p141 = scmp.ne.s32.totalorder %s133, %s135
      %p142 = scmp.eq.s32.totalorder %s41, 1
      %p143 = por %p141, %p142
      %p144 = scmp.ne.s32.totalorder %s135, %s136
      %p145 = scmp.eq.s32.totalorder %s41, 0
      %p146 = por %p144, %p145
      %p147 = scmp.ne.s32.totalorder %s135, %s136
      %p148 = scmp.eq.s32.totalorder %s42, 1
      %p149 = por %p147, %p148
      %p151 = scmp.ne.s32.totalorder %s136, %s150
      %p152 = scmp.eq.s32.totalorder %s42, 0
      %p153 = por %p151, %p152
      %s155 = sadd.s32 %s154, 1
      %p158 = scmp.eq.s32.totalorder %s36, 1
      %p159 = scmp.ne.s32.totalorder %s154, %s156
      %p160 = scmp.eq.s32.totalorder %s36, 0
      %p161 = por %p159, %p160
      %p162 = scmp.ne.s32.totalorder %s154, %s156
      %p163 = scmp.eq.s32.totalorder %s41, 1
      %p164 = por %p162, %p163
      %p165 = scmp.ne.s32.totalorder %s156, %s157
      %p166 = scmp.eq.s32.totalorder %s41, 0
      %p167 = por %p165, %p166
      %p168 = scmp.ne.s32.totalorder %s156, %s157
      %p169 = scmp.eq.s32.totalorder %s42, 1
      %p170 = por %p168, %p169
      %p172 = scmp.ne.s32.totalorder %s157, %s171
      %p173 = scmp.eq.s32.totalorder %s42, 0
      %p174 = por %p172, %p173
      %s176 = sadd.s32 %s175, 1
      %p179 = scmp.eq.s32.totalorder %s36, 1
      %p180 = scmp.ne.s32.totalorder %s175, %s177
      %p181 = scmp.eq.s32.totalorder %s36, 0
      %p182 = por %p180, %p181
      %p183 = scmp.ne.s32.totalorder %s175, %s177
      %p184 = scmp.eq.s32.totalorder %s41, 1
      %p185 = por %p183, %p184
      %p186 = scmp.ne.s32.totalorder %s177, %s178
      %p187 = scmp.eq.s32.totalorder %s41, 0
      %p188 = por %p186, %p187
      %p189 = scmp.ne.s32.totalorder %s177, %s178
      %p190 = scmp.eq.s32.totalorder %s42, 1
      %p191 = por %p189, %p190
      %p193 = scmp.ne.s32.totalorder %s178, %s192
      %p194 = scmp.eq.s32.totalorder %s42, 0
      %p195 = por %p193, %p194
      %s197 = sadd.s32 %s196, 1
      %p200 = scmp.eq.s32.totalorder %s36, 1
      %p201 = scmp.ne.s32.totalorder %s196, %s198
      %p202 = scmp.eq.s32.totalorder %s36, 0
      %p203 = por %p201, %p202
      %p204 = scmp.ne.s32.totalorder %s196, %s198
      %p205 = scmp.eq.s32.totalorder %s41, 1
      %p206 = por %p204, %p205
      %p207 = scmp.ne.s32.totalorder %s198, %s199
      %p208 = scmp.eq.s32.totalorder %s41, 0
      %p209 = por %p207, %p208
      %p210 = scmp.ne.s32.totalorder %s198, %s199
      %p211 = scmp.eq.s32.totalorder %s42, 1
      %p212 = por %p210, %p211
      %p214 = scmp.ne.s32.totalorder %s199, %s213
      %p215 = scmp.eq.s32.totalorder %s42, 0
      %p216 = por %p214, %p215
      %s218 = sadd.s32 %s217, 1
      %p221 = scmp.eq.s32.totalorder %s36, 1
      %p222 = scmp.ne.s32.totalorder %s217, %s219
      %p223 = scmp.eq.s32.totalorder %s36, 0
      %p224 = por %p222, %p223
      %p225 = scmp.ne.s32.totalorder %s217, %s219
      %p226 = scmp.eq.s32.totalorder %s41, 1
      %p227 = por %p225, %p226
      %p228 = scmp.ne.s32.totalorder %s219, %s220
      %p229 = scmp.eq.s32.totalorder %s41, 0
      %p230 = por %p228, %p229
      %p231 = scmp.ne.s32.totalorder %s219, %s220
      %p232 = scmp.eq.s32.totalorder %s42, 1
      %p233 = por %p231, %p232
      %p235 = scmp.ne.s32.totalorder %s220, %s234
      %p236 = scmp.eq.s32.totalorder %s42, 0
      %p237 = por %p235, %p236
      %s239 = sadd.s32 %s238, 1
      %p242 = scmp.eq.s32.totalorder %s36, 1
      %p243 = scmp.ne.s32.totalorder %s238, %s240
      %p244 = scmp.eq.s32.totalorder %s36, 0
      %p245 = por %p243, %p244
      %p246 = scmp.ne.s32.totalorder %s238, %s240
      %p247 = scmp.eq.s32.totalorder %s41, 1
      %p248 = por %p246, %p247
      %p249 = scmp.ne.s32.totalorder %s240, %s241
      %p250 = scmp.eq.s32.totalorder %s41, 0
      %p251 = por %p249, %p250
      %p252 = scmp.ne.s32.totalorder %s240, %s241
      %p253 = scmp.eq.s32.totalorder %s42, 1
      %p254 = por %p252, %p253
      %p256 = scmp.ne.s32.totalorder %s241, %s255
      %p257 = scmp.eq.s32.totalorder %s42, 0
      %p258 = por %p256, %p257
      %s260 = sadd.s32 %s259, 1
      %p263 = scmp.eq.s32.totalorder %s36, 1
      %p264 = scmp.ne.s32.totalorder %s259, %s261
      %p265 = scmp.eq.s32.totalorder %s36, 0
      %p266 = por %p264, %p265
      %p267 = scmp.ne.s32.totalorder %s259, %s261
      %p268 = scmp.eq.s32.totalorder %s41, 1
      %p269 = por %p267, %p268
      %p270 = scmp.ne.s32.totalorder %s261, %s262
      %p271 = scmp.eq.s32.totalorder %s41, 0
      %p272 = por %p270, %p271
      %p273 = scmp.ne.s32.totalorder %s261, %s262
      %p274 = scmp.eq.s32.totalorder %s42, 1
      %p275 = por %p273, %p274
      %p277 = scmp.ne.s32.totalorder %s262, %s276
      %p278 = scmp.eq.s32.totalorder %s42, 0
      %p279 = por %p277, %p278
      %s281 = sadd.s32 %s280, 1
      %p284 = scmp.eq.s32.totalorder %s36, 1
      %p285 = scmp.ne.s32.totalorder %s280, %s282
      %p286 = scmp.eq.s32.totalorder %s36, 0
      %p287 = por %p285, %p286
      %p288 = scmp.ne.s32.totalorder %s280, %s282
      %p289 = scmp.eq.s32.totalorder %s41, 1
      %p290 = por %p288, %p289
      %p291 = scmp.ne.s32.totalorder %s282, %s283
      %p292 = scmp.eq.s32.totalorder %s41, 0
      %p293 = por %p291, %p292
      %p294 = scmp.ne.s32.totalorder %s282, %s283
      %p295 = scmp.eq.s32.totalorder %s42, 1
      %p296 = por %p294, %p295
      %p298 = scmp.ne.s32.totalorder %s283, %s297
      %p299 = scmp.eq.s32.totalorder %s42, 0
      %p300 = por %p298, %p299
      %s302 = sadd.s32 %s301, 1
      %p305 = scmp.eq.s32.totalorder %s36, 1
      %p306 = scmp.ne.s32.totalorder %s301, %s303
      %p307 = scmp.eq.s32.totalorder %s36, 0
      %p308 = por %p306, %p307
      %p309 = scmp.ne.s32.totalorder %s301, %s303
      %p310 = scmp.eq.s32.totalorder %s41, 1
      %p311 = por %p309, %p310
      %p312 = scmp.ne.s32.totalorder %s303, %s304
      %p313 = scmp.eq.s32.totalorder %s41, 0
      %p314 = por %p312, %p313
      %p315 = scmp.ne.s32.totalorder %s303, %s304
      %p316 = scmp.eq.s32.totalorder %s42, 1
      %p317 = por %p315, %p316
      %p319 = scmp.ne.s32.totalorder %s304, %s318
      %p320 = scmp.eq.s32.totalorder %s42, 0
      %p321 = por %p319, %p320
      %s323 = sadd.s32 %s322, 1
      %p326 = scmp.eq.s32.totalorder %s36, 1
      %p327 = scmp.ne.s32.totalorder %s322, %s324
      %p328 = scmp.eq.s32.totalorder %s36, 0
      %p329 = por %p327, %p328
      %p330 = scmp.ne.s32.totalorder %s322, %s324
      %p331 = scmp.eq.s32.totalorder %s41, 1
      %p332 = por %p330, %p331
      %p333 = scmp.ne.s32.totalorder %s324, %s325
      %p334 = scmp.eq.s32.totalorder %s41, 0
      %p335 = por %p333, %p334
      %p336 = scmp.ne.s32.totalorder %s324, %s325
      %p337 = scmp.eq.s32.totalorder %s42, 1
      %p338 = por %p336, %p337
      %p340 = scmp.ne.s32.totalorder %s325, %s339
      %p341 = scmp.eq.s32.totalorder %s42, 0
      %p342 = por %p340, %p341
      %s344 = sadd.s32 %s343, 1
      %p347 = scmp.eq.s32.totalorder %s36, 1
      %p348 = scmp.ne.s32.totalorder %s343, %s345
      %p349 = scmp.eq.s32.totalorder %s36, 0
      %p350 = por %p348, %p349
      %p351 = scmp.ne.s32.totalorder %s343, %s345
      %p352 = scmp.eq.s32.totalorder %s41, 1
      %p353 = por %p351, %p352
      %p354 = scmp.ne.s32.totalorder %s345, %s346
      %p355 = scmp.eq.s32.totalorder %s41, 0
      %p356 = por %p354, %p355
      %p357 = scmp.ne.s32.totalorder %s345, %s346
      %p358 = scmp.eq.s32.totalorder %s42, 1
      %p359 = por %p357, %p358
      %p361 = scmp.ne.s32.totalorder %s346, %s360
      %p362 = scmp.eq.s32.totalorder %s42, 0
      %p363 = por %p361, %p362
      %s365 = sadd.s32 %s364, 1
      %p368 = scmp.eq.s32.totalorder %s36, 1
      %p369 = scmp.ne.s32.totalorder %s364, %s366
      %p370 = scmp.eq.s32.totalorder %s36, 0
      %p371 = por %p369, %p370
      %p372 = scmp.ne.s32.totalorder %s364, %s366
      %p373 = scmp.eq.s32.totalorder %s41, 1
      %p374 = por %p372, %p373
      %p375 = scmp.ne.s32.totalorder %s366, %s367
      %p376 = scmp.eq.s32.totalorder %s41, 0
      %p377 = por %p375, %p376
      %p378 = scmp.ne.s32.totalorder %s366, %s367
      %p379 = scmp.eq.s32.totalorder %s42, 1
      %p380 = por %p378, %p379
      %p382 = scmp.ne.s32.totalorder %s367, %s381
      %p383 = scmp.eq.s32.totalorder %s42, 0
      %p384 = por %p382, %p383
      %s386 = sadd.s32 %s385, 1
      %p389 = scmp.eq.s32.totalorder %s36, 1
      %p390 = scmp.ne.s32.totalorder %s385, %s387
      %p391 = scmp.eq.s32.totalorder %s36, 0
      %p392 = por %p390, %p391
      %p393 = scmp.ne.s32.totalorder %s385, %s387
      %p394 = scmp.eq.s32.totalorder %s41, 1
      %p395 = por %p393, %p394
      %p396 = scmp.ne.s32.totalorder %s387, %s388
      %p397 = scmp.eq.s32.totalorder %s41, 0
      %p398 = por %p396, %p397
      %p399 = scmp.ne.s32.totalorder %s387, %s388
      %p400 = scmp.eq.s32.totalorder %s42, 1
      %p401 = por %p399, %p400
      %p403 = scmp.ne.s32.totalorder %s388, %s402
      %p404 = scmp.eq.s32.totalorder %s42, 0
      %p405 = por %p403, %p404
      %s407 = sadd.s32 %s406, 1
      %p410 = scmp.eq.s32.totalorder %s36, 1
      %p411 = scmp.ne.s32.totalorder %s406, %s408
      %p412 = scmp.eq.s32.totalorder %s36, 0
      %p413 = por %p411, %p412
      %p414 = scmp.ne.s32.totalorder %s406, %s408
      %p415 = scmp.eq.s32.totalorder %s41, 1
      %p416 = por %p414, %p415
      %p417 = scmp.ne.s32.totalorder %s408, %s409
      %p418 = scmp.eq.s32.totalorder %s41, 0
      %p419 = por %p417, %p418
      %p420 = scmp.ne.s32.totalorder %s408, %s409
      %p421 = scmp.eq.s32.totalorder %s42, 1
      %p422 = por %p420, %p421
      %p424 = scmp.ne.s32.totalorder %s409, %s423
      %p425 = scmp.eq.s32.totalorder %s42, 0
      %p426 = por %p424, %p425
      %s427 = ssub.s32 %s36, %s43
      %p428 = scmp.eq.s32.totalorder %s427, 0
      %s430 = sadd.s32 %s429, 1
      %s431 = scalar_select %p428, %s429, %s430
      %p434 = pneg %p428
      %p435 = scmp.eq.s32.totalorder %s36, 1
      %p436 = por %p434, %p435
      %p437 = scmp.ne.s32.totalorder %s429, %s432
      %p438 = scmp.eq.s32.totalorder %s36, 0
      %p439 = por %p437, %p438
      %p440 = scmp.ne.s32.totalorder %s429, %s432
      %p441 = scmp.eq.s32.totalorder %s41, 1
      %p442 = por %p440, %p441
      %p443 = scmp.ne.s32.totalorder %s432, %s433
      %p444 = scmp.eq.s32.totalorder %s41, 0
      %p445 = por %p443, %p444
      %p446 = scmp.ne.s32.totalorder %s432, %s433
      %p447 = scmp.eq.s32.totalorder %s42, 1
      %p448 = por %p446, %p447
      %p450 = scmp.ne.s32.totalorder %s433, %s449
      %p451 = scmp.eq.s32.totalorder %s42, 0
      %p452 = por %p450, %p451
      %p453 = scmp.le.s32.totalorder 1, %s36
      %p454 = scmp.lt.s32.totalorder %s36, 3
      %p455 = pnand %p453, %p454
      %p456 = pneg %p455
      // Predicated region
      $region9: #{tpu_custom_call.1} parent=5 // pred_check
        _
      $region10: #{tpu_custom_call.1} parent=5 // pred_check_branch
        %458 = sbr.rel (%p455) target = $region12
      $region11: #{tpu_custom_call.1} parent=5 // pred_region
        %s459 = ssub.s32 %s36, 1
        // Predicated region
        $region13: #{tpu_custom_call.1} parent=11 // pred_check
          %p460 = pneg %p83
        $region14: #{tpu_custom_call.1} parent=11 // pred_check_branch
          %462 = sbr.rel (%p460) target = $region16
        $region15: #{tpu_custom_call.1} parent=11 // pred_region
          %s464 = ssub.s32 256, 256
          %465 = vsyncadd [#allocation10], %s464
          %s466 = sshll.u32 [#allocation9], 4
          %s467 = int_to_ptr.vmem [resolvable:$true] %s466
          %472 = dma.hbm_to_vmem [thread:$0]  %s1, 256, %s467, [#allocation10], 64, 64, 4
        $region16: #{tpu_custom_call.1} parent=11 // pred_fallthru
          _
        // Predicated region
        $region17: #{tpu_custom_call.1} parent=11 // pred_check
          %p473 = pneg %p104
        $region18: #{tpu_custom_call.1} parent=11 // pred_check_branch
          %475 = sbr.rel (%p473) target = $region20
        $region19: #{tpu_custom_call.1} parent=11 // pred_region
          _
        $region20: #{tpu_custom_call.1} parent=11 // pred_fallthru
          _
        // Predicated region
        $region21: #{tpu_custom_call.1} parent=11 // pred_check
          %p476 = pneg %p125
        $region22: #{tpu_custom_call.1} parent=11 // pred_check_branch
          %478 = sbr.rel (%p476) target = $region24
        $region23: #{tpu_custom_call.1} parent=11 // pred_region
          %s480 = ssub.s32 256, 256
          %481 = vsyncadd [#allocation10], %s480
          %s482 = sshll.u32 [#allocation11], 4
          %s483 = int_to_ptr.vmem [resolvable:$true] %s482
          %488 = dma.hbm_to_vmem [thread:$0]  %s3, 256, %s483, [#allocation10], 64, 64, 4
        $region24: #{tpu_custom_call.1} parent=11 // pred_fallthru
          _
        // Predicated region
        $region25: #{tpu_custom_call.1} parent=11 // pred_check
          %p489 = pneg %p146
        $region26: #{tpu_custom_call.1} parent=11 // pred_check_branch
          %491 = sbr.rel (%p489) target = $region28
        $region27: #{tpu_custom_call.1} parent=11 // pred_region
          %s493 = ssub.s32 16, 16
          %494 = vsyncadd [#allocation13], %s493
          %s496 = sshll.u32 [#allocation12], 4
          %s497 = int_to_ptr.vmem [resolvable:$true] %s496
          %499 = dma.hbm_to_vmem [thread:$0]  %s4, 16, %s497, [#allocation13]
        $region28: #{tpu_custom_call.1} parent=11 // pred_fallthru
          _
        // Predicated region
        $region29: #{tpu_custom_call.1} parent=11 // pred_check
          %p500 = pneg %p167
        $region30: #{tpu_custom_call.1} parent=11 // pred_check_branch
          %502 = sbr.rel (%p500) target = $region32
        $region31: #{tpu_custom_call.1} parent=11 // pred_region
          _
        $region32: #{tpu_custom_call.1} parent=11 // pred_fallthru
          _
        // Predicated region
        $region33: #{tpu_custom_call.1} parent=11 // pred_check
          %p503 = pneg %p188
        $region34: #{tpu_custom_call.1} parent=11 // pred_check_branch
          %505 = sbr.rel (%p503) target = $region36
        $region35: #{tpu_custom_call.1} parent=11 // pred_region
          %s507 = ssub.s32 1024, 1024
          %508 = vsyncadd [#allocation13], %s507
          %s509 = sshll.u32 [#allocation14], 4
          %s510 = int_to_ptr.vmem [resolvable:$true] %s509
          %515 = dma.hbm_to_vmem [thread:$0]  %s6, 1024, %s510, [#allocation13], 64, 64, 4
        $region36: #{tpu_custom_call.1} parent=11 // pred_fallthru
          _
        // Predicated region
        $region37: #{tpu_custom_call.1} parent=11 // pred_check
          %p516 = pneg %p209
        $region38: #{tpu_custom_call.1} parent=11 // pred_check_branch
          %518 = sbr.rel (%p516) target = $region40
        $region39: #{tpu_custom_call.1} parent=11 // pred_region
          %s520 = ssub.s32 64, 64
          %521 = vsyncadd [#allocation16], %s520
          %s523 = sshll.u32 [#allocation15], 4
          %s524 = int_to_ptr.vmem [resolvable:$true] %s523
          %526 = dma.hbm_to_vmem [thread:$0]  %s7, 64, %s524, [#allocation16]
        $region40: #{tpu_custom_call.1} parent=11 // pred_fallthru
          _
        // Predicated region
        $region41: #{tpu_custom_call.1} parent=11 // pred_check
          %p527 = pneg %p230
        $region42: #{tpu_custom_call.1} parent=11 // pred_check_branch
          %529 = sbr.rel (%p527) target = $region44
        $region43: #{tpu_custom_call.1} parent=11 // pred_region
          _
        $region44: #{tpu_custom_call.1} parent=11 // pred_fallthru
          _
        // Predicated region
        $region45: #{tpu_custom_call.1} parent=11 // pred_check
          %p530 = pneg %p251
        $region46: #{tpu_custom_call.1} parent=11 // pred_check_branch
          %532 = sbr.rel (%p530) target = $region48
        $region47: #{tpu_custom_call.1} parent=11 // pred_region
          %s534 = ssub.s32 256, 256
          %535 = vsyncadd [#allocation16], %s534
          %s536 = sshll.u32 [#allocation17], 4
          %s537 = int_to_ptr.vmem [resolvable:$true] %s536
          %542 = dma.hbm_to_vmem [thread:$0]  %s9, 256, %s537, [#allocation16], 64, 64, 4
        $region48: #{tpu_custom_call.1} parent=11 // pred_fallthru
          _
        // Predicated region
        $region49: #{tpu_custom_call.1} parent=11 // pred_check
          %p543 = pneg %p272
        $region50: #{tpu_custom_call.1} parent=11 // pred_check_branch
          %545 = sbr.rel (%p543) target = $region52
        $region51: #{tpu_custom_call.1} parent=11 // pred_region
          %s547 = ssub.s32 16, 16
          %548 = vsyncadd [#allocation7], %s547
          %551 = dma.hbm_to_smem %s10, 16, [#allocation18], [#allocation7]
        $region52: #{tpu_custom_call.1} parent=11 // pred_fallthru
          _
        // Predicated region
        $region53: #{tpu_custom_call.1} parent=11 // pred_check
          %p552 = pneg %p293
        $region54: #{tpu_custom_call.1} parent=11 // pred_check_branch
          %554 = sbr.rel (%p552) target = $region56
        $region55: #{tpu_custom_call.1} parent=11 // pred_region
          %s556 = ssub.s32 16, 16
          %557 = vsyncadd [#allocation8], %s556
          %s559 = sshll.u32 %s11, 4
          %s560 = int_to_ptr.vmem [resolvable:$true] %s559
          %562 = dma.vmem_to_smem %s560, 16, [#allocation19], [#allocation8]
        $region56: #{tpu_custom_call.1} parent=11 // pred_fallthru
          _
        // Predicated region
        $region57: #{tpu_custom_call.1} parent=11 // pred_check
          %p563 = pneg %p314
        $region58: #{tpu_custom_call.1} parent=11 // pred_check_branch
          %565 = sbr.rel (%p563) target = $region60
        $region59: #{tpu_custom_call.1} parent=11 // pred_region
          %s567 = ssub.s32 16, 16
          %568 = vsyncadd [#allocation21], %s567
          %s570 = sshll.u32 %s12, 4
          %s571 = int_to_ptr.vmem [resolvable:$true] %s570
          %573 = dma.vmem_to_smem %s571, 16, [#allocation20], [#allocation21]
        $region60: #{tpu_custom_call.1} parent=11 // pred_fallthru
          _
        // Predicated region
        $region61: #{tpu_custom_call.1} parent=11 // pred_check
          %p574 = pneg %p335
        $region62: #{tpu_custom_call.1} parent=11 // pred_check_branch
          %576 = sbr.rel (%p574) target = $region64
        $region63: #{tpu_custom_call.1} parent=11 // pred_region
          %s578 = ssub.s32 16, 16
          %579 = vsyncadd [#allocation21], %s578
          %s581 = sshll.u32 %s13, 4
          %s582 = int_to_ptr.vmem [resolvable:$true] %s581
          %584 = dma.vmem_to_smem %s582, 16, [#allocation22], [#allocation21]
        $region64: #{tpu_custom_call.1} parent=11 // pred_fallthru
          _
        // Predicated region
        $region65: #{tpu_custom_call.1} parent=11 // pred_check
          %p585 = pneg %p356
        $region66: #{tpu_custom_call.1} parent=11 // pred_check_branch
          %587 = sbr.rel (%p585) target = $region68
        $region67: #{tpu_custom_call.1} parent=11 // pred_region
          _
        $region68: #{tpu_custom_call.1} parent=11 // pred_fallthru
          _
        // Predicated region
        $region69: #{tpu_custom_call.1} parent=11 // pred_check
          %p588 = pneg %p377
        $region70: #{tpu_custom_call.1} parent=11 // pred_check_branch
          %590 = sbr.rel (%p588) target = $region72
        $region71: #{tpu_custom_call.1} parent=11 // pred_region
          _
        $region72: #{tpu_custom_call.1} parent=11 // pred_fallthru
          _
        // Predicated region
        $region73: #{tpu_custom_call.1} parent=11 // pred_check
          %p591 = pneg %p398
        $region74: #{tpu_custom_call.1} parent=11 // pred_check_branch
          %593 = sbr.rel (%p591) target = $region76
        $region75: #{tpu_custom_call.1} parent=11 // pred_region
          _
        $region76: #{tpu_custom_call.1} parent=11 // pred_fallthru
          _
        // Predicated region
        $region77: #{tpu_custom_call.1} parent=11 // pred_check
          %p594 = pneg %p419
        $region78: #{tpu_custom_call.1} parent=11 // pred_check_branch
          %596 = sbr.rel (%p594) target = $region80
        $region79: #{tpu_custom_call.1} parent=11 // pred_region
          _
        $region80: #{tpu_custom_call.1} parent=11 // pred_fallthru
          _
      $region12: #{tpu_custom_call.1} parent=5 // pred_fallthru
        _
      %p597 = scmp.lt.s32.totalorder %s36, 2
      // Predicated region
      $region81: #{tpu_custom_call.1} parent=5 // pred_check
        %p598 = pneg %p597
      $region82: #{tpu_custom_call.1} parent=5 // pred_check_branch
        %600 = sbr.rel (%p598) target = $region84
      $region83: #{tpu_custom_call.1} parent=5 // pred_region
        // Predicated region
        $region85: #{tpu_custom_call.1} parent=83 // pred_check
          %p601 = pneg %p56
        $region86: #{tpu_custom_call.1} parent=83 // pred_check_branch
          %603 = sbr.rel (%p601) target = $region88
        $region87: #{tpu_custom_call.1} parent=83 // pred_region
          %s604 = sand.u32 %s46, 1
          %s605 = scalar_lea.sflag [#allocation5], %s604
          %s606 = sand.u32 %s46, 1
          %s607 = smul.addr %s606, 32
          %s608 = scalar_lea.vmem [#allocation4], %s607
          %s609 = smul.u32 2, %s36
          %s611 = ssub.s32 512, 512
          %612 = vsyncadd %s605, %s611
          %s613 = smul.addr %s609, 2
          %s614 = smul.addr %s613, 128
          %s615 = scalar_lea.hbm %s0, %s614
          %s616 = sshll.u32 %s608, 4
          %s617 = int_to_ptr.vmem [resolvable:$true] %s616
          %622 = dma.hbm_to_vmem [thread:$0]  %s615, 512, %s617, %s605, 128, 128, 8
        $region88: #{tpu_custom_call.1} parent=83 // pred_fallthru
          _
      $region84: #{tpu_custom_call.1} parent=5 // pred_fallthru
        _
      %p623 = scmp.le.s32.totalorder 1, %s36
      %p624 = scmp.lt.s32.totalorder %s36, 3
      %p625 = pnand %p623, %p624
      %p626 = pneg %p625
      // Predicated region
      $region89: #{tpu_custom_call.1} parent=5 // pred_check
        _
      $region90: #{tpu_custom_call.1} parent=5 // pred_check_branch
        %628 = sbr.rel (%p625) target = $region92
      $region91: #{tpu_custom_call.1} parent=5 // pred_region
        %s629 = ssub.s32 %s36, 1
        %s630 = sand.u32 %s49, 1
        %s631 = scalar_lea.sflag [#allocation5], %s630
        %s632 = sand.u32 %s49, 1
        %s633 = smul.addr %s632, 32
        %s634 = scalar_lea.vmem [#allocation4], %s633
        // Predicated region
        $region93: #{tpu_custom_call.1} parent=91 // pred_check
          %p635 = pneg %p62
        $region94: #{tpu_custom_call.1} parent=91 // pred_check_branch
          %637 = sbr.rel (%p635) target = $region96
        $region95: #{tpu_custom_call.1} parent=91 // pred_region
          %638 = dma.done %s631, 512
        $region96: #{tpu_custom_call.1} parent=91 // pred_fallthru
          _
        // Predicated region
        $region97: #{tpu_custom_call.1} parent=91 // pred_check
          %p639 = pneg %p83
        $region98: #{tpu_custom_call.1} parent=91 // pred_check_branch
          %641 = sbr.rel (%p639) target = $region100
        $region99: #{tpu_custom_call.1} parent=91 // pred_region
          %642 = dma.done [#allocation10], 256
        $region100: #{tpu_custom_call.1} parent=91 // pred_fallthru
          _
        // Predicated region
        $region101: #{tpu_custom_call.1} parent=91 // pred_check
          %p643 = pneg %p125
        $region102: #{tpu_custom_call.1} parent=91 // pred_check_branch
          %645 = sbr.rel (%p643) target = $region104
        $region103: #{tpu_custom_call.1} parent=91 // pred_region
          %646 = dma.done [#allocation10], 256
        $region104: #{tpu_custom_call.1} parent=91 // pred_fallthru
          _
        // Predicated region
        $region105: #{tpu_custom_call.1} parent=91 // pred_check
          %p647 = pneg %p146
        $region106: #{tpu_custom_call.1} parent=91 // pred_check_branch
          %649 = sbr.rel (%p647) target = $region108
        $region107: #{tpu_custom_call.1} parent=91 // pred_region
          %650 = dma.done [#allocation13], 16
        $region108: #{tpu_custom_call.1} parent=91 // pred_fallthru
          _
        // Predicated region
        $region109: #{tpu_custom_call.1} parent=91 // pred_check
          %p651 = pneg %p188
        $region110: #{tpu_custom_call.1} parent=91 // pred_check_branch
          %653 = sbr.rel (%p651) target = $region112
        $region111: #{tpu_custom_call.1} parent=91 // pred_region
          %654 = dma.done [#allocation13], 1024
        $region112: #{tpu_custom_call.1} parent=91 // pred_fallthru
          _
        // Predicated region
        $region113: #{tpu_custom_call.1} parent=91 // pred_check
          %p655 = pneg %p209
        $region114: #{tpu_custom_call.1} parent=91 // pred_check_branch
          %657 = sbr.rel (%p655) target = $region116
        $region115: #{tpu_custom_call.1} parent=91 // pred_region
          %658 = dma.done [#allocation16], 64
        $region116: #{tpu_custom_call.1} parent=91 // pred_fallthru
          _
        // Predicated region
        $region117: #{tpu_custom_call.1} parent=91 // pred_check
          %p659 = pneg %p251
        $region118: #{tpu_custom_call.1} parent=91 // pred_check_branch
          %661 = sbr.rel (%p659) target = $region120
        $region119: #{tpu_custom_call.1} parent=91 // pred_region
          %662 = dma.done [#allocation16], 256
        $region120: #{tpu_custom_call.1} parent=91 // pred_fallthru
          _
        // Predicated region
        $region121: #{tpu_custom_call.1} parent=91 // pred_check
          %p663 = pneg %p272
        $region122: #{tpu_custom_call.1} parent=91 // pred_check_branch
          %665 = sbr.rel (%p663) target = $region124
        $region123: #{tpu_custom_call.1} parent=91 // pred_region
          %666 = dma.done [#allocation7], 16
        $region124: #{tpu_custom_call.1} parent=91 // pred_fallthru
          _
        // Predicated region
        $region125: #{tpu_custom_call.1} parent=91 // pred_check
          %p667 = pneg %p293
        $region126: #{tpu_custom_call.1} parent=91 // pred_check_branch
          %669 = sbr.rel (%p667) target = $region128
        $region127: #{tpu_custom_call.1} parent=91 // pred_region
          %670 = dma.done [#allocation8], 16
        $region128: #{tpu_custom_call.1} parent=91 // pred_fallthru
          _
        // Predicated region
        $region129: #{tpu_custom_call.1} parent=91 // pred_check
          %p671 = pneg %p314
        $region130: #{tpu_custom_call.1} parent=91 // pred_check_branch
          %673 = sbr.rel (%p671) target = $region132
        $region131: #{tpu_custom_call.1} parent=91 // pred_region
          %674 = dma.done [#allocation21], 16
        $region132: #{tpu_custom_call.1} parent=91 // pred_fallthru
          _
        // Predicated region
        $region133: #{tpu_custom_call.1} parent=91 // pred_check
          %p675 = pneg %p335
        $region134: #{tpu_custom_call.1} parent=91 // pred_check_branch
          %677 = sbr.rel (%p675) target = $region136
        $region135: #{tpu_custom_call.1} parent=91 // pred_region
          %678 = dma.done [#allocation21], 16
        $region136: #{tpu_custom_call.1} parent=91 // pred_fallthru
          _
        %679 = sfence
        %s680 = sand.u32 %s49, 1
        %s681 = scalar_lea.sflag [#allocation5], %s680
        %s682 = sand.u32 %s49, 1
        %s683 = smul.addr %s682, 32
        %s684 = scalar_lea.vmem [#allocation4], %s683
        %p685 = pneg %p62
        %p686 = pneg %p59
        %p687 = pneg %p83
        %p688 = pneg %p80
        %p689 = pneg %p104
        %p690 = pneg %p101
        %p691 = pneg %p125
        %p692 = pneg %p122
        %p693 = pneg %p146
        %p694 = pneg %p143
        %p695 = pneg %p167
        %p696 = pneg %p164
        %p697 = pneg %p188
        %p698 = pneg %p185
        %p699 = pneg %p209
        %p700 = pneg %p206
        %p701 = pneg %p230
        %p702 = pneg %p227
        %p703 = pneg %p251
        %p704 = pneg %p248
        %p705 = pneg %p272
        %p706 = pneg %p269
        %p707 = pneg %p293
        %p708 = pneg %p290
        %p709 = pneg %p314
        %p710 = pneg %p311
        %p711 = pneg %p335
        %p712 = pneg %p332
        %p713 = pneg %p356
        %p714 = pneg %p353
        %p715 = pneg %p377
        %p716 = pneg %p374
        %p717 = pneg %p398
        %p718 = pneg %p395
        %p719 = pneg %p419
        %p720 = pneg %p416
        %p721 = pneg %p445
        %p722 = pneg %p442
        %s723 = sand.u32 %s432, 1
        %s724 = scalar_lea.sflag [#allocation6], %s723
        %s725 = sand.u32 %s432, 1
        %s726 = smul.addr %s725, 32
        %s727 = scalar_lea.vmem [#allocation23], %s726
        %s728 = smul.u32 2, %s41
        %s729 = smul.u32 2, %s41
        %v731 = vld [vmem:[%s634] sm:$0xff]
        %v732 = vld [vmem:[%s634 + $0x8] sm:$0xff]
        %v733 = vld [vmem:[%s634 + $0x10] sm:$0xff]
        %v734 = vld [vmem:[%s634 + $0x18] sm:$0xff]
        %v735 = vpack.c.bf16 %v732, %v731
        %v736 = vpack.c.bf16 %v734, %v733
        %v737 = vld [vmem:[#allocation9] sm:$0xf]
        %v738 = vld [vmem:[#allocation9 + $0x4] sm:$0xf]
        %v739 = vld [vmem:[#allocation9 + $0x8] sm:$0xf]
        %v740 = vld [vmem:[#allocation9 + $0xc] sm:$0xf]
        %v741 = vld [vmem:[%s2] sm:$0x1]
        %v743 = vlaneseq
        %v744 = vshrl.u32 %v743, 7
        %v745 = vsub.s32 0, %v744
        %v746 = vrot.slane %v741, %v745
        %v752 = vunpack.c.l.b16 %v737
        %v753 = vunpack.c.l.b16 %v738
        %v754 = vunpack.c.l.b16 %v739
        %v755 = vunpack.c.l.b16 %v740
        %v756 = vpack.c.b16 %v753, %v752
        %v757 = vpack.c.b16 %v755, %v754
        %vm760 = vcmask 261120
        %v762 = vsel %vm760, %v735, 0
        %v765 = vsel %vm760, %v736, 0
        %767 = vmatprep.subr.bf16.mxu0 0
        %768 = vmatpush1.bf16.msra.mxu0 %v756
        %769 = vmatprep.subr.bf16.mxu0 0
        %770 = vmatpush1.bf16.msra.mxu0 %v757
        %771 = vmatprep.subr.bf16.mxu0 0
        %772 = vmatpush1.bf16.msra.mxu0 0
        %773 = vmatprep.subr.bf16.mxu0 0
        %774 = vmatpush1.bf16.msra.mxu0 0
        %775 = vmatprep.subr.bf16.mxu0 0
        %776 = vmatpush1.bf16.msra.mxu0 0
        %777 = vmatprep.subr.bf16.mxu0 0
        %778 = vmatpush1.bf16.msra.mxu0 0
        %779 = vmatprep.subr.bf16.mxu0 0
        %780 = vmatpush1.bf16.msra.mxu0 0
        %781 = vmatprep.subr.bf16.mxu0 0
        %782 = vmatpush1.bf16.msra.mxu0 0
        %783 = vmatprep.subr.bf16.mxu0 0
        %784 = vmatpush1.bf16.msra.mxu0 0
        %785 = vmatprep.subr.bf16.mxu0 0
        %786 = vmatpush1.bf16.msra.mxu0 0
        %787 = vmatprep.subr.bf16.mxu0 0
        %788 = vmatpush1.bf16.msra.mxu0 0
        %789 = vmatprep.subr.bf16.mxu0 0
        %790 = vmatpush1.bf16.msra.mxu0 0
        %791 = vmatprep.subr.bf16.mxu0 0
        %792 = vmatpush1.bf16.msra.mxu0 0
        %793 = vmatprep.subr.bf16.mxu0 0
        %794 = vmatpush1.bf16.msra.mxu0 0
        %795 = vmatprep.subr.bf16.mxu0 0
        %796 = vmatpush1.bf16.msra.mxu0 0
        %797 = vmatprep.subr.bf16.mxu0 0
        %798 = vmatpush1.bf16.msra.mxu0 0
        %799 = vmatprep.mubr.bf16.mxu0 0
        %800 = vmatmul.mubr.bf16.gmra.mrb[0].mxu0 %v762
        %v801 = vpop.f32.mrb[0].mxu0
        %v802 = vadd.f32 %v746, %v801
        %v803 = vpop.f32.mrb[0].mxu0
        %v804 = vpop.f32.mrb[0].mxu0
        %v805 = vadd.f32 %v746, %v804
        %v806 = vpop.f32.mrb[0].mxu0
        %807 = vmatprep.mubr.bf16.mxu0 0
        %808 = vmatmul.mubr.bf16.gmra.mrb[0].mxu0 %v765
        %v809 = vpop.f32.mrb[0].mxu0
        %v810 = vadd.f32 %v746, %v809
        %v811 = vpop.f32.mrb[0].mxu0
        %v812 = vpop.f32.mrb[0].mxu0
        %v813 = vadd.f32 %v746, %v812
        %v814 = vpop.f32.mrb[0].mxu0
        %815 = vdwg.mxu0
        %v816 = vpack.c.bf16 %v805, %v802
        %v817 = vpack.c.bf16 %v813, %v810
        %v818 = vld [vmem:[#allocation15] sm:$0xf]
        %vm819 = vcmask 130048
        %v821 = vsel %vm819, %v818, 0
        %823 = vmatprep.subr.bf16.mxu0 0
        %824 = vmatpush1.bf16.msra.mxu0 %v816
        %825 = vmatprep.subr.bf16.mxu0 0
        %826 = vmatpush1.bf16.msra.mxu0 0
        %827 = vmatprep.subr.bf16.mxu0 0
        %828 = vmatpush1.bf16.msra.mxu0 0
        %829 = vmatprep.subr.bf16.mxu0 0
        %830 = vmatpush1.bf16.msra.mxu0 0
        %831 = vmatprep.subr.bf16.mxu0 0
        %832 = vmatpush1.bf16.msra.mxu0 0
        %833 = vmatprep.subr.bf16.mxu0 0
        %834 = vmatpush1.bf16.msra.mxu0 0
        %835 = vmatprep.subr.bf16.mxu0 0
        %836 = vmatpush1.bf16.msra.mxu0 0
        %837 = vmatprep.subr.bf16.mxu0 0
        %838 = vmatpush1.bf16.msra.mxu0 0
        %839 = vmatprep.subr.bf16.mxu0 0
        %840 = vmatpush1.bf16.msra.mxu0 0
        %841 = vmatprep.subr.bf16.mxu0 0
        %842 = vmatpush1.bf16.msra.mxu0 0
        %843 = vmatprep.subr.bf16.mxu0 0
        %844 = vmatpush1.bf16.msra.mxu0 0
        %845 = vmatprep.subr.bf16.mxu0 0
        %846 = vmatpush1.bf16.msra.mxu0 0
        %847 = vmatprep.subr.bf16.mxu0 0
        %848 = vmatpush1.bf16.msra.mxu0 0
        %849 = vmatprep.subr.bf16.mxu0 0
        %850 = vmatpush1.bf16.msra.mxu0 0
        %851 = vmatprep.subr.bf16.mxu0 0
        %852 = vmatpush1.bf16.msra.mxu0 0
        %853 = vmatprep.subr.bf16.mxu0 0
        %854 = vmatpush1.bf16.msra.mxu0 0
        %855 = vmatprep.mubr.bf16.mxu0 0
        %856 = vmatmul.mubr.bf16.gmra.mrb[0].mxu0 %v821
        %v857 = vpop.f32.mrb[0].mxu0
        %v858 = vadd.f32 0.0, %v857
        %v859 = vpop.f32.mrb[0].mxu0
        %v860 = vpop.f32.mrb[0].mxu0
        %v861 = vpop.f32.mrb[0].mxu0
        %862 = vdwg.mxu0
        %v864 = vcombine.high %v858, %v858
        %v866 = vunpack.c.l.s4 1966171168
        %v867 = vunpack.c.0.s8 %v866
        %v868 = vlaneseq
        %v869 = vshrl.u32 %v868, 7
        %v870 = vsub.s32 %v867, %v869
        %v871 = vrot.slane %v858, %v870
        %v873 = vunpack.c.l.s4 1966171168
        %v874 = vunpack.c.0.s8 %v873
        %v875 = vlaneseq
        %v876 = vshrl.u32 %v875, 7
        %v877 = vsub.s32 %v874, %v876
        %v878 = vrot.slane %v864, %v877
        %v879 = vcombine.high %v871, %v871
        %v880 = vcombine.high %v878, %v878
        %v882 = vunpack.c.l.s4 1966171168
        %v883 = vunpack.c.0.s8 %v882
        %v884 = vlaneseq
        %v885 = vshrl.u32 %v884, 7
        %v886 = vsub.s32 %v883, %v885
        %v887 = vrot.slane %v871, %v886
        %v889 = vunpack.c.l.s4 1966171168
        %v890 = vunpack.c.0.s8 %v889
        %v891 = vlaneseq
        %v892 = vshrl.u32 %v891, 7
        %v893 = vsub.s32 %v890, %v892
        %v894 = vrot.slane %v878, %v893
        %v896 = vunpack.c.l.s4 1966171168
        %v897 = vunpack.c.0.s8 %v896
        %v898 = vlaneseq
        %v899 = vshrl.u32 %v898, 7
        %v900 = vsub.s32 %v897, %v899
        %v901 = vrot.slane %v879, %v900
        %v903 = vunpack.c.l.s4 1966171168
        %v904 = vunpack.c.0.s8 %v903
        %v905 = vlaneseq
        %v906 = vshrl.u32 %v905, 7
        %v907 = vsub.s32 %v904, %v906
        %v908 = vrot.slane %v880, %v907
        %v909 = vcombine.high %v887, %v887
        %v910 = vcombine.high %v894, %v894
        %v911 = vcombine.high %v901, %v901
        %v912 = vcombine.high %v908, %v908
        %vm921 = vcmask 253952
        %922 = vst.msk [vmem:[#allocation2] sm:$0x1] %vm921, %v887
        %923 = vst.msk [vmem:[#allocation2 + $0x2] sm:$0x1] %vm921, %v901
        %924 = vst.msk [vmem:[#allocation2 + $0x4] sm:$0x1] %vm921, %v909
        %925 = vst.msk [vmem:[#allocation2 + $0x6] sm:$0x1] %vm921, %v911
        %926 = vst.msk [vmem:[#allocation2 + $0x8] sm:$0x1] %vm921, %v894
        %927 = vst.msk [vmem:[#allocation2 + $0xa] sm:$0x1] %vm921, %v908
        %928 = vst.msk [vmem:[#allocation2 + $0xc] sm:$0x1] %vm921, %v910
        %929 = vst.msk [vmem:[#allocation2 + $0xe] sm:$0x1] %vm921, %v912
        %930 = vmatprep.subr.bf16.mxu0 0
        %931 = vmatpush1.bf16.msra.mxu0 %v817
        %932 = vmatprep.subr.bf16.mxu0 0
        %933 = vmatpush1.bf16.msra.mxu0 0
        %934 = vmatprep.subr.bf16.mxu0 0
        %935 = vmatpush1.bf16.msra.mxu0 0
        %936 = vmatprep.subr.bf16.mxu0 0
        %937 = vmatpush1.bf16.msra.mxu0 0
        %938 = vmatprep.subr.bf16.mxu0 0
        %939 = vmatpush1.bf16.msra.mxu0 0
        %940 = vmatprep.subr.bf16.mxu0 0
        %941 = vmatpush1.bf16.msra.mxu0 0
        %942 = vmatprep.subr.bf16.mxu0 0
        %943 = vmatpush1.bf16.msra.mxu0 0
        %944 = vmatprep.subr.bf16.mxu0 0
        %945 = vmatpush1.bf16.msra.mxu0 0
        %946 = vmatprep.subr.bf16.mxu0 0
        %947 = vmatpush1.bf16.msra.mxu0 0
        %948 = vmatprep.subr.bf16.mxu0 0
        %949 = vmatpush1.bf16.msra.mxu0 0
        %950 = vmatprep.subr.bf16.mxu0 0
        %951 = vmatpush1.bf16.msra.mxu0 0
        %952 = vmatprep.subr.bf16.mxu0 0
        %953 = vmatpush1.bf16.msra.mxu0 0
        %954 = vmatprep.subr.bf16.mxu0 0
        %955 = vmatpush1.bf16.msra.mxu0 0
        %956 = vmatprep.subr.bf16.mxu0 0
        %957 = vmatpush1.bf16.msra.mxu0 0
        %958 = vmatprep.subr.bf16.mxu0 0
        %959 = vmatpush1.bf16.msra.mxu0 0
        %960 = vmatprep.subr.bf16.mxu0 0
        %961 = vmatpush1.bf16.msra.mxu0 0
        %962 = vmatprep.mubr.bf16.mxu0 0
        %963 = vmatmul.mubr.bf16.gmra.mrb[0].mxu0 %v821
        %v964 = vpop.f32.mrb[0].mxu0
        %v965 = vadd.f32 0.0, %v964
        %v966 = vpop.f32.mrb[0].mxu0
        %v967 = vpop.f32.mrb[0].mxu0
        %v968 = vpop.f32.mrb[0].mxu0
        %969 = vdwg.mxu0
        %v971 = vcombine.high %v965, %v965
        %v973 = vunpack.c.l.s4 1966171168
        %v974 = vunpack.c.0.s8 %v973
        %v975 = vlaneseq
        %v976 = vshrl.u32 %v975, 7
        %v977 = vsub.s32 %v974, %v976
        %v978 = vrot.slane %v965, %v977
        %v980 = vunpack.c.l.s4 1966171168
        %v981 = vunpack.c.0.s8 %v980
        %v982 = vlaneseq
        %v983 = vshrl.u32 %v982, 7
        %v984 = vsub.s32 %v981, %v983
        %v985 = vrot.slane %v971, %v984
        %v986 = vcombine.high %v978, %v978
        %v987 = vcombine.high %v985, %v985
        %v989 = vunpack.c.l.s4 1966171168
        %v990 = vunpack.c.0.s8 %v989
        %v991 = vlaneseq
        %v992 = vshrl.u32 %v991, 7
        %v993 = vsub.s32 %v990, %v992
        %v994 = vrot.slane %v978, %v993
        %v996 = vunpack.c.l.s4 1966171168
        %v997 = vunpack.c.0.s8 %v996
        %v998 = vlaneseq
        %v999 = vshrl.u32 %v998, 7
        %v1000 = vsub.s32 %v997, %v999
        %v1001 = vrot.slane %v985, %v1000
        %v1003 = vunpack.c.l.s4 1966171168
        %v1004 = vunpack.c.0.s8 %v1003
        %v1005 = vlaneseq
        %v1006 = vshrl.u32 %v1005, 7
        %v1007 = vsub.s32 %v1004, %v1006
        %v1008 = vrot.slane %v986, %v1007
        %v1010 = vunpack.c.l.s4 1966171168
        %v1011 = vunpack.c.0.s8 %v1010
        %v1012 = vlaneseq
        %v1013 = vshrl.u32 %v1012, 7
        %v1014 = vsub.s32 %v1011, %v1013
        %v1015 = vrot.slane %v987, %v1014
        %v1016 = vcombine.high %v994, %v994
        %v1017 = vcombine.high %v1001, %v1001
        %v1018 = vcombine.high %v1008, %v1008
        %v1019 = vcombine.high %v1015, %v1015
        %1028 = vst.msk [vmem:[#allocation2 + $0x1] sm:$0x1] %vm921, %v994
        %1029 = vst.msk [vmem:[#allocation2 + $0x3] sm:$0x1] %vm921, %v1008
        %1030 = vst.msk [vmem:[#allocation2 + $0x5] sm:$0x1] %vm921, %v1016
        %1031 = vst.msk [vmem:[#allocation2 + $0x7] sm:$0x1] %vm921, %v1018
        %1032 = vst.msk [vmem:[#allocation2 + $0x9] sm:$0x1] %vm921, %v1001
        %1033 = vst.msk [vmem:[#allocation2 + $0xb] sm:$0x1] %vm921, %v1015
        %1034 = vst.msk [vmem:[#allocation2 + $0xd] sm:$0x1] %vm921, %v1017
        %1035 = vst.msk [vmem:[#allocation2 + $0xf] sm:$0x1] %vm921, %v1019
        %v1036 = vld [vmem:[#allocation2] sm:$0x3]
        %v1037 = vld [vmem:[#allocation2 + $0x2] sm:$0x3]
        %v1038 = vld [vmem:[#allocation2 + $0x4] sm:$0x3]
        %v1039 = vld [vmem:[#allocation2 + $0x6] sm:$0x3]
        %v1040 = vpack.c.bf16 %v1036, %v1036
        %v1041 = vpack.c.bf16 %v1037, %v1037
        %v1042 = vpack.c.bf16 %v1038, %v1038
        %v1043 = vpack.c.bf16 %v1039, %v1039
        %s1044 = scalar_lea.vmem [#allocation2], 8
        %v1045 = vld [vmem:[%s1044] sm:$0x3]
        %v1046 = vld [vmem:[%s1044 + $0x2] sm:$0x3]
        %v1047 = vld [vmem:[%s1044 + $0x4] sm:$0x3]
        %v1048 = vld [vmem:[%s1044 + $0x6] sm:$0x3]
        %v1049 = vpack.c.bf16 %v1045, %v1045
        %v1050 = vpack.c.bf16 %v1046, %v1046
        %v1051 = vpack.c.bf16 %v1047, %v1047
        %v1052 = vpack.c.bf16 %v1048, %v1048
        %v1053 = vld [vmem:[%s5] sm:$0xf]
        %v1054 = vld [vmem:[%s5 + $0x4] sm:$0xf]
        %v1055 = vld [vmem:[%s5 + $0x8] sm:$0xf]
        %v1056 = vld [vmem:[%s5 + $0xc] sm:$0xf]
        %v1057 = vld [vmem:[#allocation14] sm:$0xf]
        %v1058 = vld [vmem:[#allocation14 + $0x4] sm:$0xf]
        %v1059 = vld [vmem:[#allocation14 + $0x8] sm:$0xf]
        %v1060 = vld [vmem:[#allocation14 + $0xc] sm:$0xf]
        %vm1061 = vcmask 64512
        %v1063 = vsel %vm1061, %v1049, 0
        %vm1065 = vcmask 1043456
        %v1067 = vsel %vm1065, %v1057, 0
        %1069 = vmatprep.subr.bf16.mxu0 0
        %1070 = vmatpush1.bf16.msra.mxu0 %v1067
        %1071 = vmatprep.subr.bf16.mxu0 0
        %1072 = vmatpush1.bf16.msra.mxu0 0
        %1073 = vmatprep.subr.bf16.mxu0 0
        %1074 = vmatpush1.bf16.msra.mxu0 0
        %1075 = vmatprep.subr.bf16.mxu0 0
        %1076 = vmatpush1.bf16.msra.mxu0 0
        %1077 = vmatprep.subr.bf16.mxu0 0
        %1078 = vmatpush1.bf16.msra.mxu0 0
        %1079 = vmatprep.subr.bf16.mxu0 0
        %1080 = vmatpush1.bf16.msra.mxu0 0
        %1081 = vmatprep.subr.bf16.mxu0 0
        %1082 = vmatpush1.bf16.msra.mxu0 0
        %1083 = vmatprep.subr.bf16.mxu0 0
        %1084 = vmatpush1.bf16.msra.mxu0 0
        %1085 = vmatprep.subr.bf16.mxu0 0
        %1086 = vmatpush1.bf16.msra.mxu0 0
        %1087 = vmatprep.subr.bf16.mxu0 0
        %1088 = vmatpush1.bf16.msra.mxu0 0
        %1089 = vmatprep.subr.bf16.mxu0 0
        %1090 = vmatpush1.bf16.msra.mxu0 0
        %1091 = vmatprep.subr.bf16.mxu0 0
        %1092 = vmatpush1.bf16.msra.mxu0 0
        %1093 = vmatprep.subr.bf16.mxu0 0
        %1094 = vmatpush1.bf16.msra.mxu0 0
        %1095 = vmatprep.subr.bf16.mxu0 0
        %1096 = vmatpush1.bf16.msra.mxu0 0
        %1097 = vmatprep.subr.bf16.mxu0 0
        %1098 = vmatpush1.bf16.msra.mxu0 0
        %1099 = vmatprep.subr.bf16.mxu0 0
        %1100 = vmatpush1.bf16.msra.mxu0 0
        %1101 = vmatprep.mubr.bf16.mxu0 0
        %1102 = vmatmul.mubr.bf16.gmra.mrb[0].mxu0 %v1063
        %v1103 = vpop.f32.mrb[0].mxu0
        %v1104 = vadd.f32 0.0, %v1103
        %v1105 = vpop.f32.mrb[0].mxu0
        %v1106 = vpop.f32.mrb[0].mxu0
        %v1107 = vpop.f32.mrb[0].mxu0
        %1108 = vdwg.mxu0
        %v1110 = vsel %vm1061, %v1050, 0
        %v1113 = vsel %vm1065, %v1058, 0
        %1115 = vmatprep.subr.bf16.mxu0 0
        %1116 = vmatpush1.bf16.msra.mxu0 %v1113
        %1117 = vmatprep.subr.bf16.mxu0 0
        %1118 = vmatpush1.bf16.msra.mxu0 0
        %1119 = vmatprep.subr.bf16.mxu0 0
        %1120 = vmatpush1.bf16.msra.mxu0 0
        %1121 = vmatprep.subr.bf16.mxu0 0
        %1122 = vmatpush1.bf16.msra.mxu0 0
        %1123 = vmatprep.subr.bf16.mxu0 0
        %1124 = vmatpush1.bf16.msra.mxu0 0
        %1125 = vmatprep.subr.bf16.mxu0 0
        %1126 = vmatpush1.bf16.msra.mxu0 0
        %1127 = vmatprep.subr.bf16.mxu0 0
        %1128 = vmatpush1.bf16.msra.mxu0 0
        %1129 = vmatprep.subr.bf16.mxu0 0
        %1130 = vmatpush1.bf16.msra.mxu0 0
        %1131 = vmatprep.subr.bf16.mxu0 0
        %1132 = vmatpush1.bf16.msra.mxu0 0
        %1133 = vmatprep.subr.bf16.mxu0 0
        %1134 = vmatpush1.bf16.msra.mxu0 0
        %1135 = vmatprep.subr.bf16.mxu0 0
        %1136 = vmatpush1.bf16.msra.mxu0 0
        %1137 = vmatprep.subr.bf16.mxu0 0
        %1138 = vmatpush1.bf16.msra.mxu0 0
        %1139 = vmatprep.subr.bf16.mxu0 0
        %1140 = vmatpush1.bf16.msra.mxu0 0
        %1141 = vmatprep.subr.bf16.mxu0 0
        %1142 = vmatpush1.bf16.msra.mxu0 0
        %1143 = vmatprep.subr.bf16.mxu0 0
        %1144 = vmatpush1.bf16.msra.mxu0 0
        %1145 = vmatprep.subr.bf16.mxu0 0
        %1146 = vmatpush1.bf16.msra.mxu0 0
        %1147 = vmatprep.mubr.bf16.mxu0 0
        %1148 = vmatmul.mubr.bf16.gmra.mrb[0].mxu0 %v1110
        %v1149 = vpop.f32.mrb[0].mxu0
        %v1150 = vadd.f32 0.0, %v1149
        %v1151 = vpop.f32.mrb[0].mxu0
        %v1152 = vpop.f32.mrb[0].mxu0
        %v1153 = vpop.f32.mrb[0].mxu0
        %1154 = vdwg.mxu0
        %v1156 = vsel %vm1061, %v1051, 0
        %v1159 = vsel %vm1065, %v1059, 0
        %1161 = vmatprep.subr.bf16.mxu0 0
        %1162 = vmatpush1.bf16.msra.mxu0 %v1159
        %1163 = vmatprep.subr.bf16.mxu0 0
        %1164 = vmatpush1.bf16.msra.mxu0 0
        %1165 = vmatprep.subr.bf16.mxu0 0
        %1166 = vmatpush1.bf16.msra.mxu0 0
        %1167 = vmatprep.subr.bf16.mxu0 0
        %1168 = vmatpush1.bf16.msra.mxu0 0
        %1169 = vmatprep.subr.bf16.mxu0 0
        %1170 = vmatpush1.bf16.msra.mxu0 0
        %1171 = vmatprep.subr.bf16.mxu0 0
        %1172 = vmatpush1.bf16.msra.mxu0 0
        %1173 = vmatprep.subr.bf16.mxu0 0
        %1174 = vmatpush1.bf16.msra.mxu0 0
        %1175 = vmatprep.subr.bf16.mxu0 0
        %1176 = vmatpush1.bf16.msra.mxu0 0
        %1177 = vmatprep.subr.bf16.mxu0 0
        %1178 = vmatpush1.bf16.msra.mxu0 0
        %1179 = vmatprep.subr.bf16.mxu0 0
        %1180 = vmatpush1.bf16.msra.mxu0 0
        %1181 = vmatprep.subr.bf16.mxu0 0
        %1182 = vmatpush1.bf16.msra.mxu0 0
        %1183 = vmatprep.subr.bf16.mxu0 0
        %1184 = vmatpush1.bf16.msra.mxu0 0
        %1185 = vmatprep.subr.bf16.mxu0 0
        %1186 = vmatpush1.bf16.msra.mxu0 0
        %1187 = vmatprep.subr.bf16.mxu0 0
        %1188 = vmatpush1.bf16.msra.mxu0 0
        %1189 = vmatprep.subr.bf16.mxu0 0
        %1190 = vmatpush1.bf16.msra.mxu0 0
        %1191 = vmatprep.subr.bf16.mxu0 0
        %1192 = vmatpush1.bf16.msra.mxu0 0
        %1193 = vmatprep.mubr.bf16.mxu0 0
        %1194 = vmatmul.mubr.bf16.gmra.mrb[0].mxu0 %v1156
        %v1195 = vpop.f32.mrb[0].mxu0
        %v1196 = vadd.f32 0.0, %v1195
        %v1197 = vpop.f32.mrb[0].mxu0
        %v1198 = vpop.f32.mrb[0].mxu0
        %v1199 = vpop.f32.mrb[0].mxu0
        %1200 = vdwg.mxu0
        %v1202 = vsel %vm1061, %v1052, 0
        %v1205 = vsel %vm1065, %v1060, 0
        %1207 = vmatprep.subr.bf16.mxu0 0
        %1208 = vmatpush1.bf16.msra.mxu0 %v1205
        %1209 = vmatprep.subr.bf16.mxu0 0
        %1210 = vmatpush1.bf16.msra.mxu0 0
        %1211 = vmatprep.subr.bf16.mxu0 0
        %1212 = vmatpush1.bf16.msra.mxu0 0
        %1213 = vmatprep.subr.bf16.mxu0 0
        %1214 = vmatpush1.bf16.msra.mxu0 0
        %1215 = vmatprep.subr.bf16.mxu0 0
        %1216 = vmatpush1.bf16.msra.mxu0 0
        %1217 = vmatprep.subr.bf16.mxu0 0
        %1218 = vmatpush1.bf16.msra.mxu0 0
        %1219 = vmatprep.subr.bf16.mxu0 0
        %1220 = vmatpush1.bf16.msra.mxu0 0
        %1221 = vmatprep.subr.bf16.mxu0 0
        %1222 = vmatpush1.bf16.msra.mxu0 0
        %1223 = vmatprep.subr.bf16.mxu0 0
        %1224 = vmatpush1.bf16.msra.mxu0 0
        %1225 = vmatprep.subr.bf16.mxu0 0
        %1226 = vmatpush1.bf16.msra.mxu0 0
        %1227 = vmatprep.subr.bf16.mxu0 0
        %1228 = vmatpush1.bf16.msra.mxu0 0
        %1229 = vmatprep.subr.bf16.mxu0 0
        %1230 = vmatpush1.bf16.msra.mxu0 0
        %1231 = vmatprep.subr.bf16.mxu0 0
        %1232 = vmatpush1.bf16.msra.mxu0 0
        %1233 = vmatprep.subr.bf16.mxu0 0
        %1234 = vmatpush1.bf16.msra.mxu0 0
        %1235 = vmatprep.subr.bf16.mxu0 0
        %1236 = vmatpush1.bf16.msra.mxu0 0
        %1237 = vmatprep.subr.bf16.mxu0 0
        %1238 = vmatpush1.bf16.msra.mxu0 0
        %1239 = vmatprep.mubr.bf16.mxu0 0
        %1240 = vmatmul.mubr.bf16.gmra.mrb[0].mxu0 %v1202
        %v1241 = vpop.f32.mrb[0].mxu0
        %v1242 = vadd.f32 0.0, %v1241
        %v1243 = vpop.f32.mrb[0].mxu0
        %v1244 = vpop.f32.mrb[0].mxu0
        %v1245 = vpop.f32.mrb[0].mxu0
        %1246 = vdwg.mxu0
        %v1248 = vsel %vm1061, %v1040, 0
        %v1251 = vsel %vm1065, %v1053, 0
        %1253 = vmatprep.subr.bf16.mxu0 0
        %1254 = vmatpush1.bf16.msra.mxu0 %v1251
        %1255 = vmatprep.subr.bf16.mxu0 0
        %1256 = vmatpush1.bf16.msra.mxu0 0
        %1257 = vmatprep.subr.bf16.mxu0 0
        %1258 = vmatpush1.bf16.msra.mxu0 0
        %1259 = vmatprep.subr.bf16.mxu0 0
        %1260 = vmatpush1.bf16.msra.mxu0 0
        %1261 = vmatprep.subr.bf16.mxu0 0
        %1262 = vmatpush1.bf16.msra.mxu0 0
        %1263 = vmatprep.subr.bf16.mxu0 0
        %1264 = vmatpush1.bf16.msra.mxu0 0
        %1265 = vmatprep.subr.bf16.mxu0 0
        %1266 = vmatpush1.bf16.msra.mxu0 0
        %1267 = vmatprep.subr.bf16.mxu0 0
        %1268 = vmatpush1.bf16.msra.mxu0 0
        %1269 = vmatprep.subr.bf16.mxu0 0
        %1270 = vmatpush1.bf16.msra.mxu0 0
        %1271 = vmatprep.subr.bf16.mxu0 0
        %1272 = vmatpush1.bf16.msra.mxu0 0
        %1273 = vmatprep.subr.bf16.mxu0 0
        %1274 = vmatpush1.bf16.msra.mxu0 0
        %1275 = vmatprep.subr.bf16.mxu0 0
        %1276 = vmatpush1.bf16.msra.mxu0 0
        %1277 = vmatprep.subr.bf16.mxu0 0
        %1278 = vmatpush1.bf16.msra.mxu0 0
        %1279 = vmatprep.subr.bf16.mxu0 0
        %1280 = vmatpush1.bf16.msra.mxu0 0
        %1281 = vmatprep.subr.bf16.mxu0 0
        %1282 = vmatpush1.bf16.msra.mxu0 0
        %1283 = vmatprep.subr.bf16.mxu0 0
        %1284 = vmatpush1.bf16.msra.mxu0 0
        %1285 = vmatprep.mubr.bf16.mxu0 0
        %1286 = vmatmul.mubr.bf16.gmra.mrb[0].mxu0 %v1248
        %v1287 = vpop.f32.mrb[0].mxu0
        %v1288 = vadd.f32 %v1104, %v1287
        %v1289 = vpop.f32.mrb[0].mxu0
        %v1290 = vpop.f32.mrb[0].mxu0
        %v1291 = vpop.f32.mrb[0].mxu0
        %1292 = vdwg.mxu0
        %v1294 = vsel %vm1061, %v1041, 0
        %v1297 = vsel %vm1065, %v1054, 0
        %1299 = vmatprep.subr.bf16.mxu0 0
        %1300 = vmatpush1.bf16.msra.mxu0 %v1297
        %1301 = vmatprep.subr.bf16.mxu0 0
        %1302 = vmatpush1.bf16.msra.mxu0 0
        %1303 = vmatprep.subr.bf16.mxu0 0
        %1304 = vmatpush1.bf16.msra.mxu0 0
        %1305 = vmatprep.subr.bf16.mxu0 0
        %1306 = vmatpush1.bf16.msra.mxu0 0
        %1307 = vmatprep.subr.bf16.mxu0 0
        %1308 = vmatpush1.bf16.msra.mxu0 0
        %1309 = vmatprep.subr.bf16.mxu0 0
        %1310 = vmatpush1.bf16.msra.mxu0 0
        %1311 = vmatprep.subr.bf16.mxu0 0
        %1312 = vmatpush1.bf16.msra.mxu0 0
        %1313 = vmatprep.subr.bf16.mxu0 0
        %1314 = vmatpush1.bf16.msra.mxu0 0
        %1315 = vmatprep.subr.bf16.mxu0 0
        %1316 = vmatpush1.bf16.msra.mxu0 0
        %1317 = vmatprep.subr.bf16.mxu0 0
        %1318 = vmatpush1.bf16.msra.mxu0 0
        %1319 = vmatprep.subr.bf16.mxu0 0
        %1320 = vmatpush1.bf16.msra.mxu0 0
        %1321 = vmatprep.subr.bf16.mxu0 0
        %1322 = vmatpush1.bf16.msra.mxu0 0
        %1323 = vmatprep.subr.bf16.mxu0 0
        %1324 = vmatpush1.bf16.msra.mxu0 0
        %1325 = vmatprep.subr.bf16.mxu0 0
        %1326 = vmatpush1.bf16.msra.mxu0 0
        %1327 = vmatprep.subr.bf16.mxu0 0
        %1328 = vmatpush1.bf16.msra.mxu0 0
        %1329 = vmatprep.subr.bf16.mxu0 0
        %1330 = vmatpush1.bf16.msra.mxu0 0
        %1331 = vmatprep.mubr.bf16.mxu0 0
        %1332 = vmatmul.mubr.bf16.gmra.mrb[0].mxu0 %v1294
        %v1333 = vpop.f32.mrb[0].mxu0
        %v1334 = vadd.f32 %v1150, %v1333
        %v1335 = vpop.f32.mrb[0].mxu0
        %v1336 = vpop.f32.mrb[0].mxu0
        %v1337 = vpop.f32.mrb[0].mxu0
        %1338 = vdwg.mxu0
        %v1340 = vsel %vm1061, %v1042, 0
        %v1343 = vsel %vm1065, %v1055, 0
        %1345 = vmatprep.subr.bf16.mxu0 0
        %1346 = vmatpush1.bf16.msra.mxu0 %v1343
        %1347 = vmatprep.subr.bf16.mxu0 0
        %1348 = vmatpush1.bf16.msra.mxu0 0
        %1349 = vmatprep.subr.bf16.mxu0 0
        %1350 = vmatpush1.bf16.msra.mxu0 0
        %1351 = vmatprep.subr.bf16.mxu0 0
        %1352 = vmatpush1.bf16.msra.mxu0 0
        %1353 = vmatprep.subr.bf16.mxu0 0
        %1354 = vmatpush1.bf16.msra.mxu0 0
        %1355 = vmatprep.subr.bf16.mxu0 0
        %1356 = vmatpush1.bf16.msra.mxu0 0
        %1357 = vmatprep.subr.bf16.mxu0 0
        %1358 = vmatpush1.bf16.msra.mxu0 0
        %1359 = vmatprep.subr.bf16.mxu0 0
        %1360 = vmatpush1.bf16.msra.mxu0 0
        %1361 = vmatprep.subr.bf16.mxu0 0
        %1362 = vmatpush1.bf16.msra.mxu0 0
        %1363 = vmatprep.subr.bf16.mxu0 0
        %1364 = vmatpush1.bf16.msra.mxu0 0
        %1365 = vmatprep.subr.bf16.mxu0 0
        %1366 = vmatpush1.bf16.msra.mxu0 0
        %1367 = vmatprep.subr.bf16.mxu0 0
        %1368 = vmatpush1.bf16.msra.mxu0 0
        %1369 = vmatprep.subr.bf16.mxu0 0
        %1370 = vmatpush1.bf16.msra.mxu0 0
        %1371 = vmatprep.subr.bf16.mxu0 0
        %1372 = vmatpush1.bf16.msra.mxu0 0
        %1373 = vmatprep.subr.bf16.mxu0 0
        %1374 = vmatpush1.bf16.msra.mxu0 0
        %1375 = vmatprep.subr.bf16.mxu0 0
        %1376 = vmatpush1.bf16.msra.mxu0 0
        %1377 = vmatprep.mubr.bf16.mxu0 0
        %1378 = vmatmul.mubr.bf16.gmra.mrb[0].mxu0 %v1340
        %v1379 = vpop.f32.mrb[0].mxu0
        %v1380 = vadd.f32 %v1196, %v1379
        %v1381 = vpop.f32.mrb[0].mxu0
        %v1382 = vpop.f32.mrb[0].mxu0
        %v1383 = vpop.f32.mrb[0].mxu0
        %1384 = vdwg.mxu0
        %v1386 = vsel %vm1061, %v1043, 0
        %v1389 = vsel %vm1065, %v1056, 0
        %1391 = vmatprep.subr.bf16.mxu0 0
        %1392 = vmatpush1.bf16.msra.mxu0 %v1389
        %1393 = vmatprep.subr.bf16.mxu0 0
        %1394 = vmatpush1.bf16.msra.mxu0 0
        %1395 = vmatprep.subr.bf16.mxu0 0
        %1396 = vmatpush1.bf16.msra.mxu0 0
        %1397 = vmatprep.subr.bf16.mxu0 0
        %1398 = vmatpush1.bf16.msra.mxu0 0
        %1399 = vmatprep.subr.bf16.mxu0 0
        %1400 = vmatpush1.bf16.msra.mxu0 0
        %1401 = vmatprep.subr.bf16.mxu0 0
        %1402 = vmatpush1.bf16.msra.mxu0 0
        %1403 = vmatprep.subr.bf16.mxu0 0
        %1404 = vmatpush1.bf16.msra.mxu0 0
        %1405 = vmatprep.subr.bf16.mxu0 0
        %1406 = vmatpush1.bf16.msra.mxu0 0
        %1407 = vmatprep.subr.bf16.mxu0 0
        %1408 = vmatpush1.bf16.msra.mxu0 0
        %1409 = vmatprep.subr.bf16.mxu0 0
        %1410 = vmatpush1.bf16.msra.mxu0 0
        %1411 = vmatprep.subr.bf16.mxu0 0
        %1412 = vmatpush1.bf16.msra.mxu0 0
        %1413 = vmatprep.subr.bf16.mxu0 0
        %1414 = vmatpush1.bf16.msra.mxu0 0
        %1415 = vmatprep.subr.bf16.mxu0 0
        %1416 = vmatpush1.bf16.msra.mxu0 0
        %1417 = vmatprep.subr.bf16.mxu0 0
        %1418 = vmatpush1.bf16.msra.mxu0 0
        %1419 = vmatprep.subr.bf16.mxu0 0
        %1420 = vmatpush1.bf16.msra.mxu0 0
        %1421 = vmatprep.subr.bf16.mxu0 0
        %1422 = vmatpush1.bf16.msra.mxu0 0
        %1423 = vmatprep.mubr.bf16.mxu0 0
        %1424 = vmatmul.mubr.bf16.gmra.mrb[0].mxu0 %v1386
        %v1425 = vpop.f32.mrb[0].mxu0
        %v1426 = vadd.f32 %v1242, %v1425
        %v1427 = vpop.f32.mrb[0].mxu0
        %v1428 = vpop.f32.mrb[0].mxu0
        %v1429 = vpop.f32.mrb[0].mxu0
        %1430 = vdwg.mxu0
        %vm1431 = vcmask 58368
        %1432 = vst.msk [vmem:[#allocation2] sm:$0x3] %vm1431, %v1288
        %1433 = vst.msk [vmem:[#allocation2 + $0x2] sm:$0x3] %vm1431, %v1334
        %1434 = vst.msk [vmem:[#allocation2 + $0x4] sm:$0x3] %vm1431, %v1380
        %1435 = vst.msk [vmem:[#allocation2 + $0x6] sm:$0x3] %vm1431, %v1426
        %1440 = vrot.lane.b32.xlu0 %v1288, 120
        %v1441 = vpop.permute.xlu0 %1440
        %1442 = vrot.lane.b32.xlu0 %v1334, 120
        %v1443 = vpop.permute.xlu0 %1442
        %1444 = vrot.lane.b32.xlu0 %v1380, 120
        %v1445 = vpop.permute.xlu0 %1444
        %1446 = vrot.lane.b32.xlu0 %v1426, 120
        %v1447 = vpop.permute.xlu0 %1446
        %1452 = vst.msk [vmem:[%s1044] sm:$0x3] %vm1431, %v1441
        %1453 = vst.msk [vmem:[%s1044 + $0x2] sm:$0x3] %vm1431, %v1443
        %1454 = vst.msk [vmem:[%s1044 + $0x4] sm:$0x3] %vm1431, %v1445
        %1455 = vst.msk [vmem:[%s1044 + $0x6] sm:$0x3] %vm1431, %v1447
        %v1456 = vld [vmem:[#allocation2] sm:$0x3]
        %v1457 = vld [vmem:[#allocation2 + $0x2] sm:$0x3]
        %v1458 = vld [vmem:[#allocation2 + $0x4] sm:$0x3]
        %v1459 = vld [vmem:[#allocation2 + $0x6] sm:$0x3]
        %v1460 = vpack.c.bf16 %v1456, %v1456
        %v1461 = vpack.c.bf16 %v1457, %v1457
        %v1462 = vpack.c.bf16 %v1458, %v1458
        %v1463 = vpack.c.bf16 %v1459, %v1459
        %v1464 = vld [vmem:[%s1044] sm:$0x3]
        %v1465 = vld [vmem:[%s1044 + $0x2] sm:$0x3]
        %v1466 = vld [vmem:[%s1044 + $0x4] sm:$0x3]
        %v1467 = vld [vmem:[%s1044 + $0x6] sm:$0x3]
        %v1468 = vpack.c.bf16 %v1464, %v1464
        %v1469 = vpack.c.bf16 %v1465, %v1465
        %v1470 = vpack.c.bf16 %v1466, %v1466
        %v1471 = vpack.c.bf16 %v1467, %v1467
        %s1472 = scalar_lea.vmem %s5, 16
        %v1473 = vld [vmem:[%s1472] sm:$0xf]
        %v1474 = vld [vmem:[%s1472 + $0x4] sm:$0xf]
        %v1475 = vld [vmem:[%s1472 + $0x8] sm:$0xf]
        %v1476 = vld [vmem:[%s1472 + $0xc] sm:$0xf]
        %s1477 = scalar_lea.vmem [#allocation14], 16
        %v1478 = vld [vmem:[%s1477] sm:$0xf]
        %v1479 = vld [vmem:[%s1477 + $0x4] sm:$0xf]
        %v1480 = vld [vmem:[%s1477 + $0x8] sm:$0xf]
        %v1481 = vld [vmem:[%s1477 + $0xc] sm:$0xf]
        %1483 = vrot.lane.b32.xlu0 %v1468, 120
        %v1484 = vpop.permute.xlu0 %1483
        %v1486 = vsel %vm1061, %v1484, 0
        %v1489 = vsel %vm1065, %v1478, 0
        %1491 = vmatprep.subr.bf16.mxu0 0
        %1492 = vmatpush1.bf16.msra.mxu0 %v1489
        %1493 = vmatprep.subr.bf16.mxu0 0
        %1494 = vmatpush1.bf16.msra.mxu0 0
        %1495 = vmatprep.subr.bf16.mxu0 0
        %1496 = vmatpush1.bf16.msra.mxu0 0
        %1497 = vmatprep.subr.bf16.mxu0 0
        %1498 = vmatpush1.bf16.msra.mxu0 0
        %1499 = vmatprep.subr.bf16.mxu0 0
        %1500 = vmatpush1.bf16.msra.mxu0 0
        %1501 = vmatprep.subr.bf16.mxu0 0
        %1502 = vmatpush1.bf16.msra.mxu0 0
        %1503 = vmatprep.subr.bf16.mxu0 0
        %1504 = vmatpush1.bf16.msra.mxu0 0
        %1505 = vmatprep.subr.bf16.mxu0 0
        %1506 = vmatpush1.bf16.msra.mxu0 0
        %1507 = vmatprep.subr.bf16.mxu0 0
        %1508 = vmatpush1.bf16.msra.mxu0 0
        %1509 = vmatprep.subr.bf16.mxu0 0
        %1510 = vmatpush1.bf16.msra.mxu0 0
        %1511 = vmatprep.subr.bf16.mxu0 0
        %1512 = vmatpush1.bf16.msra.mxu0 0
        %1513 = vmatprep.subr.bf16.mxu0 0
        %1514 = vmatpush1.bf16.msra.mxu0 0
        %1515 = vmatprep.subr.bf16.mxu0 0
        %1516 = vmatpush1.bf16.msra.mxu0 0
        %1517 = vmatprep.subr.bf16.mxu0 0
        %1518 = vmatpush1.bf16.msra.mxu0 0
        %1519 = vmatprep.subr.bf16.mxu0 0
        %1520 = vmatpush1.bf16.msra.mxu0 0
        %1521 = vmatprep.subr.bf16.mxu0 0
        %1522 = vmatpush1.bf16.msra.mxu0 0
        %1523 = vmatprep.mubr.bf16.mxu0 0
        %1524 = vmatmul.mubr.bf16.gmra.mrb[0].mxu0 %v1486
        %v1525 = vpop.f32.mrb[0].mxu0
        %v1526 = vadd.f32 0.0, %v1525
        %v1527 = vpop.f32.mrb[0].mxu0
        %v1528 = vpop.f32.mrb[0].mxu0
        %v1529 = vpop.f32.mrb[0].mxu0
        %1530 = vdwg.mxu0
        %1532 = vrot.lane.b32.xlu0 %v1469, 120
        %v1533 = vpop.permute.xlu0 %1532
        %v1535 = vsel %vm1061, %v1533, 0
        %v1538 = vsel %vm1065, %v1479, 0
        %1540 = vmatprep.subr.bf16.mxu0 0
        %1541 = vmatpush1.bf16.msra.mxu0 %v1538
        %1542 = vmatprep.subr.bf16.mxu0 0
        %1543 = vmatpush1.bf16.msra.mxu0 0
        %1544 = vmatprep.subr.bf16.mxu0 0
        %1545 = vmatpush1.bf16.msra.mxu0 0
        %1546 = vmatprep.subr.bf16.mxu0 0
        %1547 = vmatpush1.bf16.msra.mxu0 0
        %1548 = vmatprep.subr.bf16.mxu0 0
        %1549 = vmatpush1.bf16.msra.mxu0 0
        %1550 = vmatprep.subr.bf16.mxu0 0
        %1551 = vmatpush1.bf16.msra.mxu0 0
        %1552 = vmatprep.subr.bf16.mxu0 0
        %1553 = vmatpush1.bf16.msra.mxu0 0
        %1554 = vmatprep.subr.bf16.mxu0 0
        %1555 = vmatpush1.bf16.msra.mxu0 0
        %1556 = vmatprep.subr.bf16.mxu0 0
        %1557 = vmatpush1.bf16.msra.mxu0 0
        %1558 = vmatprep.subr.bf16.mxu0 0
        %1559 = vmatpush1.bf16.msra.mxu0 0
        %1560 = vmatprep.subr.bf16.mxu0 0
        %1561 = vmatpush1.bf16.msra.mxu0 0
        %1562 = vmatprep.subr.bf16.mxu0 0
        %1563 = vmatpush1.bf16.msra.mxu0 0
        %1564 = vmatprep.subr.bf16.mxu0 0
        %1565 = vmatpush1.bf16.msra.mxu0 0
        %1566 = vmatprep.subr.bf16.mxu0 0
        %1567 = vmatpush1.bf16.msra.mxu0 0
        %1568 = vmatprep.subr.bf16.mxu0 0
        %1569 = vmatpush1.bf16.msra.mxu0 0
        %1570 = vmatprep.subr.bf16.mxu0 0
        %1571 = vmatpush1.bf16.msra.mxu0 0
        %1572 = vmatprep.mubr.bf16.mxu0 0
        %1573 = vmatmul.mubr.bf16.gmra.mrb[0].mxu0 %v1535
        %v1574 = vpop.f32.mrb[0].mxu0
        %v1575 = vadd.f32 0.0, %v1574
        %v1576 = vpop.f32.mrb[0].mxu0
        %v1577 = vpop.f32.mrb[0].mxu0
        %v1578 = vpop.f32.mrb[0].mxu0
        %1579 = vdwg.mxu0
        %1581 = vrot.lane.b32.xlu0 %v1470, 120
        %v1582 = vpop.permute.xlu0 %1581
        %v1584 = vsel %vm1061, %v1582, 0
        %v1587 = vsel %vm1065, %v1480, 0
        %1589 = vmatprep.subr.bf16.mxu0 0
        %1590 = vmatpush1.bf16.msra.mxu0 %v1587
        %1591 = vmatprep.subr.bf16.mxu0 0
        %1592 = vmatpush1.bf16.msra.mxu0 0
        %1593 = vmatprep.subr.bf16.mxu0 0
        %1594 = vmatpush1.bf16.msra.mxu0 0
        %1595 = vmatprep.subr.bf16.mxu0 0
        %1596 = vmatpush1.bf16.msra.mxu0 0
        %1597 = vmatprep.subr.bf16.mxu0 0
        %1598 = vmatpush1.bf16.msra.mxu0 0
        %1599 = vmatprep.subr.bf16.mxu0 0
        %1600 = vmatpush1.bf16.msra.mxu0 0
        %1601 = vmatprep.subr.bf16.mxu0 0
        %1602 = vmatpush1.bf16.msra.mxu0 0
        %1603 = vmatprep.subr.bf16.mxu0 0
        %1604 = vmatpush1.bf16.msra.mxu0 0
        %1605 = vmatprep.subr.bf16.mxu0 0
        %1606 = vmatpush1.bf16.msra.mxu0 0
        %1607 = vmatprep.subr.bf16.mxu0 0
        %1608 = vmatpush1.bf16.msra.mxu0 0
        %1609 = vmatprep.subr.bf16.mxu0 0
        %1610 = vmatpush1.bf16.msra.mxu0 0
        %1611 = vmatprep.subr.bf16.mxu0 0
        %1612 = vmatpush1.bf16.msra.mxu0 0
        %1613 = vmatprep.subr.bf16.mxu0 0
        %1614 = vmatpush1.bf16.msra.mxu0 0
        %1615 = vmatprep.subr.bf16.mxu0 0
        %1616 = vmatpush1.bf16.msra.mxu0 0
        %1617 = vmatprep.subr.bf16.mxu0 0
        %1618 = vmatpush1.bf16.msra.mxu0 0
        %1619 = vmatprep.subr.bf16.mxu0 0
        %1620 = vmatpush1.bf16.msra.mxu0 0
        %1621 = vmatprep.mubr.bf16.mxu0 0
        %1622 = vmatmul.mubr.bf16.gmra.mrb[0].mxu0 %v1584
        %v1623 = vpop.f32.mrb[0].mxu0
        %v1624 = vadd.f32 0.0, %v1623
        %v1625 = vpop.f32.mrb[0].mxu0
        %v1626 = vpop.f32.mrb[0].mxu0
        %v1627 = vpop.f32.mrb[0].mxu0
        %1628 = vdwg.mxu0
        %1630 = vrot.lane.b32.xlu0 %v1471, 120
        %v1631 = vpop.permute.xlu0 %1630
        %v1633 = vsel %vm1061, %v1631, 0
        %v1636 = vsel %vm1065, %v1481, 0
        %1638 = vmatprep.subr.bf16.mxu0 0
        %1639 = vmatpush1.bf16.msra.mxu0 %v1636
        %1640 = vmatprep.subr.bf16.mxu0 0
        %1641 = vmatpush1.bf16.msra.mxu0 0
        %1642 = vmatprep.subr.bf16.mxu0 0
        %1643 = vmatpush1.bf16.msra.mxu0 0
        %1644 = vmatprep.subr.bf16.mxu0 0
        %1645 = vmatpush1.bf16.msra.mxu0 0
        %1646 = vmatprep.subr.bf16.mxu0 0
        %1647 = vmatpush1.bf16.msra.mxu0 0
        %1648 = vmatprep.subr.bf16.mxu0 0
        %1649 = vmatpush1.bf16.msra.mxu0 0
        %1650 = vmatprep.subr.bf16.mxu0 0
        %1651 = vmatpush1.bf16.msra.mxu0 0
        %1652 = vmatprep.subr.bf16.mxu0 0
        %1653 = vmatpush1.bf16.msra.mxu0 0
        %1654 = vmatprep.subr.bf16.mxu0 0
        %1655 = vmatpush1.bf16.msra.mxu0 0
        %1656 = vmatprep.subr.bf16.mxu0 0
        %1657 = vmatpush1.bf16.msra.mxu0 0
        %1658 = vmatprep.subr.bf16.mxu0 0
        %1659 = vmatpush1.bf16.msra.mxu0 0
        %1660 = vmatprep.subr.bf16.mxu0 0
        %1661 = vmatpush1.bf16.msra.mxu0 0
        %1662 = vmatprep.subr.bf16.mxu0 0
        %1663 = vmatpush1.bf16.msra.mxu0 0
        %1664 = vmatprep.subr.bf16.mxu0 0
        %1665 = vmatpush1.bf16.msra.mxu0 0
        %1666 = vmatprep.subr.bf16.mxu0 0
        %1667 = vmatpush1.bf16.msra.mxu0 0
        %1668 = vmatprep.subr.bf16.mxu0 0
        %1669 = vmatpush1.bf16.msra.mxu0 0
        %1670 = vmatprep.mubr.bf16.mxu0 0
        %1671 = vmatmul.mubr.bf16.gmra.mrb[0].mxu0 %v1633
        %v1672 = vpop.f32.mrb[0].mxu0
        %v1673 = vadd.f32 0.0, %v1672
        %v1674 = vpop.f32.mrb[0].mxu0
        %v1675 = vpop.f32.mrb[0].mxu0
        %v1676 = vpop.f32.mrb[0].mxu0
        %1677 = vdwg.mxu0
        %1679 = vrot.lane.b32.xlu0 %v1460, 120
        %v1680 = vpop.permute.xlu0 %1679
        %v1682 = vsel %vm1061, %v1680, 0
        %v1685 = vsel %vm1065, %v1473, 0
        %1687 = vmatprep.subr.bf16.mxu0 0
        %1688 = vmatpush1.bf16.msra.mxu0 %v1685
        %1689 = vmatprep.subr.bf16.mxu0 0
        %1690 = vmatpush1.bf16.msra.mxu0 0
        %1691 = vmatprep.subr.bf16.mxu0 0
        %1692 = vmatpush1.bf16.msra.mxu0 0
        %1693 = vmatprep.subr.bf16.mxu0 0
        %1694 = vmatpush1.bf16.msra.mxu0 0
        %1695 = vmatprep.subr.bf16.mxu0 0
        %1696 = vmatpush1.bf16.msra.mxu0 0
        %1697 = vmatprep.subr.bf16.mxu0 0
        %1698 = vmatpush1.bf16.msra.mxu0 0
        %1699 = vmatprep.subr.bf16.mxu0 0
        %1700 = vmatpush1.bf16.msra.mxu0 0
        %1701 = vmatprep.subr.bf16.mxu0 0
        %1702 = vmatpush1.bf16.msra.mxu0 0
        %1703 = vmatprep.subr.bf16.mxu0 0
        %1704 = vmatpush1.bf16.msra.mxu0 0
        %1705 = vmatprep.subr.bf16.mxu0 0
        %1706 = vmatpush1.bf16.msra.mxu0 0
        %1707 = vmatprep.subr.bf16.mxu0 0
        %1708 = vmatpush1.bf16.msra.mxu0 0
        %1709 = vmatprep.subr.bf16.mxu0 0
        %1710 = vmatpush1.bf16.msra.mxu0 0
        %1711 = vmatprep.subr.bf16.mxu0 0
        %1712 = vmatpush1.bf16.msra.mxu0 0
        %1713 = vmatprep.subr.bf16.mxu0 0
        %1714 = vmatpush1.bf16.msra.mxu0 0
        %1715 = vmatprep.subr.bf16.mxu0 0
        %1716 = vmatpush1.bf16.msra.mxu0 0
        %1717 = vmatprep.subr.bf16.mxu0 0
        %1718 = vmatpush1.bf16.msra.mxu0 0
        %1719 = vmatprep.mubr.bf16.mxu0 0
        %1720 = vmatmul.mubr.bf16.gmra.mrb[0].mxu0 %v1682
        %v1721 = vpop.f32.mrb[0].mxu0
        %v1722 = vadd.f32 %v1526, %v1721
        %v1723 = vpop.f32.mrb[0].mxu0
        %v1724 = vpop.f32.mrb[0].mxu0
        %v1725 = vpop.f32.mrb[0].mxu0
        %1726 = vdwg.mxu0
        %1728 = vrot.lane.b32.xlu0 %v1461, 120
        %v1729 = vpop.permute.xlu0 %1728
        %v1731 = vsel %vm1061, %v1729, 0
        %v1734 = vsel %vm1065, %v1474, 0
        %1736 = vmatprep.subr.bf16.mxu0 0
        %1737 = vmatpush1.bf16.msra.mxu0 %v1734
        %1738 = vmatprep.subr.bf16.mxu0 0
        %1739 = vmatpush1.bf16.msra.mxu0 0
        %1740 = vmatprep.subr.bf16.mxu0 0
        %1741 = vmatpush1.bf16.msra.mxu0 0
        %1742 = vmatprep.subr.bf16.mxu0 0
        %1743 = vmatpush1.bf16.msra.mxu0 0
        %1744 = vmatprep.subr.bf16.mxu0 0
        %1745 = vmatpush1.bf16.msra.mxu0 0
        %1746 = vmatprep.subr.bf16.mxu0 0
        %1747 = vmatpush1.bf16.msra.mxu0 0
        %1748 = vmatprep.subr.bf16.mxu0 0
        %1749 = vmatpush1.bf16.msra.mxu0 0
        %1750 = vmatprep.subr.bf16.mxu0 0
        %1751 = vmatpush1.bf16.msra.mxu0 0
        %1752 = vmatprep.subr.bf16.mxu0 0
        %1753 = vmatpush1.bf16.msra.mxu0 0
        %1754 = vmatprep.subr.bf16.mxu0 0
        %1755 = vmatpush1.bf16.msra.mxu0 0
        %1756 = vmatprep.subr.bf16.mxu0 0
        %1757 = vmatpush1.bf16.msra.mxu0 0
        %1758 = vmatprep.subr.bf16.mxu0 0
        %1759 = vmatpush1.bf16.msra.mxu0 0
        %1760 = vmatprep.subr.bf16.mxu0 0
        %1761 = vmatpush1.bf16.msra.mxu0 0
        %1762 = vmatprep.subr.bf16.mxu0 0
        %1763 = vmatpush1.bf16.msra.mxu0 0
        %1764 = vmatprep.subr.bf16.mxu0 0
        %1765 = vmatpush1.bf16.msra.mxu0 0
        %1766 = vmatprep.subr.bf16.mxu0 0
        %1767 = vmatpush1.bf16.msra.mxu0 0
        %1768 = vmatprep.mubr.bf16.mxu0 0
        %1769 = vmatmul.mubr.bf16.gmra.mrb[0].mxu0 %v1731
        %v1770 = vpop.f32.mrb[0].mxu0
        %v1771 = vadd.f32 %v1575, %v1770
        %v1772 = vpop.f32.mrb[0].mxu0
        %v1773 = vpop.f32.mrb[0].mxu0
        %v1774 = vpop.f32.mrb[0].mxu0
        %1775 = vdwg.mxu0
        %1777 = vrot.lane.b32.xlu0 %v1462, 120
        %v1778 = vpop.permute.xlu0 %1777
        %v1780 = vsel %vm1061, %v1778, 0
        %v1783 = vsel %vm1065, %v1475, 0
        %1785 = vmatprep.subr.bf16.mxu0 0
        %1786 = vmatpush1.bf16.msra.mxu0 %v1783
        %1787 = vmatprep.subr.bf16.mxu0 0
        %1788 = vmatpush1.bf16.msra.mxu0 0
        %1789 = vmatprep.subr.bf16.mxu0 0
        %1790 = vmatpush1.bf16.msra.mxu0 0
        %1791 = vmatprep.subr.bf16.mxu0 0
        %1792 = vmatpush1.bf16.msra.mxu0 0
        %1793 = vmatprep.subr.bf16.mxu0 0
        %1794 = vmatpush1.bf16.msra.mxu0 0
        %1795 = vmatprep.subr.bf16.mxu0 0
        %1796 = vmatpush1.bf16.msra.mxu0 0
        %1797 = vmatprep.subr.bf16.mxu0 0
        %1798 = vmatpush1.bf16.msra.mxu0 0
        %1799 = vmatprep.subr.bf16.mxu0 0
        %1800 = vmatpush1.bf16.msra.mxu0 0
        %1801 = vmatprep.subr.bf16.mxu0 0
        %1802 = vmatpush1.bf16.msra.mxu0 0
        %1803 = vmatprep.subr.bf16.mxu0 0
        %1804 = vmatpush1.bf16.msra.mxu0 0
        %1805 = vmatprep.subr.bf16.mxu0 0
        %1806 = vmatpush1.bf16.msra.mxu0 0
        %1807 = vmatprep.subr.bf16.mxu0 0
        %1808 = vmatpush1.bf16.msra.mxu0 0
        %1809 = vmatprep.subr.bf16.mxu0 0
        %1810 = vmatpush1.bf16.msra.mxu0 0
        %1811 = vmatprep.subr.bf16.mxu0 0
        %1812 = vmatpush1.bf16.msra.mxu0 0
        %1813 = vmatprep.subr.bf16.mxu0 0
        %1814 = vmatpush1.bf16.msra.mxu0 0
        %1815 = vmatprep.subr.bf16.mxu0 0
        %1816 = vmatpush1.bf16.msra.mxu0 0
        %1817 = vmatprep.mubr.bf16.mxu0 0
        %1818 = vmatmul.mubr.bf16.gmra.mrb[0].mxu0 %v1780
        %v1819 = vpop.f32.mrb[0].mxu0
        %v1820 = vadd.f32 %v1624, %v1819
        %v1821 = vpop.f32.mrb[0].mxu0
        %v1822 = vpop.f32.mrb[0].mxu0
        %v1823 = vpop.f32.mrb[0].mxu0
        %1824 = vdwg.mxu0
        %1826 = vrot.lane.b32.xlu0 %v1463, 120
        %v1827 = vpop.permute.xlu0 %1826
        %v1829 = vsel %vm1061, %v1827, 0
        %v1832 = vsel %vm1065, %v1476, 0
        %1834 = vmatprep.subr.bf16.mxu0 0
        %1835 = vmatpush1.bf16.msra.mxu0 %v1832
        %1836 = vmatprep.subr.bf16.mxu0 0
        %1837 = vmatpush1.bf16.msra.mxu0 0
        %1838 = vmatprep.subr.bf16.mxu0 0
        %1839 = vmatpush1.bf16.msra.mxu0 0
        %1840 = vmatprep.subr.bf16.mxu0 0
        %1841 = vmatpush1.bf16.msra.mxu0 0
        %1842 = vmatprep.subr.bf16.mxu0 0
        %1843 = vmatpush1.bf16.msra.mxu0 0
        %1844 = vmatprep.subr.bf16.mxu0 0
        %1845 = vmatpush1.bf16.msra.mxu0 0
        %1846 = vmatprep.subr.bf16.mxu0 0
        %1847 = vmatpush1.bf16.msra.mxu0 0
        %1848 = vmatprep.subr.bf16.mxu0 0
        %1849 = vmatpush1.bf16.msra.mxu0 0
        %1850 = vmatprep.subr.bf16.mxu0 0
        %1851 = vmatpush1.bf16.msra.mxu0 0
        %1852 = vmatprep.subr.bf16.mxu0 0
        %1853 = vmatpush1.bf16.msra.mxu0 0
        %1854 = vmatprep.subr.bf16.mxu0 0
        %1855 = vmatpush1.bf16.msra.mxu0 0
        %1856 = vmatprep.subr.bf16.mxu0 0
        %1857 = vmatpush1.bf16.msra.mxu0 0
        %1858 = vmatprep.subr.bf16.mxu0 0
        %1859 = vmatpush1.bf16.msra.mxu0 0
        %1860 = vmatprep.subr.bf16.mxu0 0
        %1861 = vmatpush1.bf16.msra.mxu0 0
        %1862 = vmatprep.subr.bf16.mxu0 0
        %1863 = vmatpush1.bf16.msra.mxu0 0
        %1864 = vmatprep.subr.bf16.mxu0 0
        %1865 = vmatpush1.bf16.msra.mxu0 0
        %1866 = vmatprep.mubr.bf16.mxu0 0
        %1867 = vmatmul.mubr.bf16.gmra.mrb[0].mxu0 %v1829
        %v1868 = vpop.f32.mrb[0].mxu0
        %v1869 = vadd.f32 %v1673, %v1868
        %v1870 = vpop.f32.mrb[0].mxu0
        %v1871 = vpop.f32.mrb[0].mxu0
        %v1872 = vpop.f32.mrb[0].mxu0
        %1873 = vdwg.mxu0
        %1878 = vrot.lane.b32.xlu0 %v1722, 8
        %v1879 = vpop.permute.xlu0 %1878
        %1880 = vrot.lane.b32.xlu0 %v1771, 8
        %v1881 = vpop.permute.xlu0 %1880
        %1882 = vrot.lane.b32.xlu0 %v1820, 8
        %v1883 = vpop.permute.xlu0 %1882
        %1884 = vrot.lane.b32.xlu0 %v1869, 8
        %v1885 = vpop.permute.xlu0 %1884
        %vm1890 = vcmask 123968
        %1891 = vst.msk [vmem:[#allocation2] sm:$0x3] %vm1890, %v1879
        %1892 = vst.msk [vmem:[#allocation2 + $0x2] sm:$0x3] %vm1890, %v1881
        %1893 = vst.msk [vmem:[#allocation2 + $0x4] sm:$0x3] %vm1890, %v1883
        %1894 = vst.msk [vmem:[#allocation2 + $0x6] sm:$0x3] %vm1890, %v1885
        %1895 = vst.msk [vmem:[%s1044] sm:$0x3] %vm1890, %v1722
        %1896 = vst.msk [vmem:[%s1044 + $0x2] sm:$0x3] %vm1890, %v1771
        %1897 = vst.msk [vmem:[%s1044 + $0x4] sm:$0x3] %vm1890, %v1820
        %1898 = vst.msk [vmem:[%s1044 + $0x6] sm:$0x3] %vm1890, %v1869
        %v1899 = vld [vmem:[#allocation2] sm:$0x3]
        %v1900 = vld [vmem:[#allocation2 + $0x2] sm:$0x3]
        %v1901 = vld [vmem:[#allocation2 + $0x4] sm:$0x3]
        %v1902 = vld [vmem:[#allocation2 + $0x6] sm:$0x3]
        %v1903 = vpack.c.bf16 %v1899, %v1899
        %v1904 = vpack.c.bf16 %v1900, %v1900
        %v1905 = vpack.c.bf16 %v1901, %v1901
        %v1906 = vpack.c.bf16 %v1902, %v1902
        %v1907 = vld [vmem:[%s1044] sm:$0x3]
        %v1908 = vld [vmem:[%s1044 + $0x2] sm:$0x3]
        %v1909 = vld [vmem:[%s1044 + $0x4] sm:$0x3]
        %v1910 = vld [vmem:[%s1044 + $0x6] sm:$0x3]
        %v1911 = vpack.c.bf16 %v1907, %v1907
        %v1912 = vpack.c.bf16 %v1908, %v1908
        %v1913 = vpack.c.bf16 %v1909, %v1909
        %v1914 = vpack.c.bf16 %v1910, %v1910
        %s1915 = scalar_lea.vmem %s5, 32
        %v1916 = vld [vmem:[%s1915] sm:$0xf]
        %v1917 = vld [vmem:[%s1915 + $0x4] sm:$0xf]
        %v1918 = vld [vmem:[%s1915 + $0x8] sm:$0xf]
        %v1919 = vld [vmem:[%s1915 + $0xc] sm:$0xf]
        %s1920 = scalar_lea.vmem [#allocation14], 32
        %v1921 = vld [vmem:[%s1920] sm:$0xf]
        %v1922 = vld [vmem:[%s1920 + $0x4] sm:$0xf]
        %v1923 = vld [vmem:[%s1920 + $0x8] sm:$0xf]
        %v1924 = vld [vmem:[%s1920 + $0xc] sm:$0xf]
        %1926 = vrot.lane.b32.xlu0 %v1911, 112
        %v1927 = vpop.permute.xlu0 %1926
        %v1929 = vsel %vm1061, %v1927, 0
        %v1932 = vsel %vm1065, %v1921, 0
        %1934 = vmatprep.subr.bf16.mxu0 0
        %1935 = vmatpush1.bf16.msra.mxu0 %v1932
        %1936 = vmatprep.subr.bf16.mxu0 0
        %1937 = vmatpush1.bf16.msra.mxu0 0
        %1938 = vmatprep.subr.bf16.mxu0 0
        %1939 = vmatpush1.bf16.msra.mxu0 0
        %1940 = vmatprep.subr.bf16.mxu0 0
        %1941 = vmatpush1.bf16.msra.mxu0 0
        %1942 = vmatprep.subr.bf16.mxu0 0
        %1943 = vmatpush1.bf16.msra.mxu0 0
        %1944 = vmatprep.subr.bf16.mxu0 0
        %1945 = vmatpush1.bf16.msra.mxu0 0
        %1946 = vmatprep.subr.bf16.mxu0 0
        %1947 = vmatpush1.bf16.msra.mxu0 0
        %1948 = vmatprep.subr.bf16.mxu0 0
        %1949 = vmatpush1.bf16.msra.mxu0 0
        %1950 = vmatprep.subr.bf16.mxu0 0
        %1951 = vmatpush1.bf16.msra.mxu0 0
        %1952 = vmatprep.subr.bf16.mxu0 0
        %1953 = vmatpush1.bf16.msra.mxu0 0
        %1954 = vmatprep.subr.bf16.mxu0 0
        %1955 = vmatpush1.bf16.msra.mxu0 0
        %1956 = vmatprep.subr.bf16.mxu0 0
        %1957 = vmatpush1.bf16.msra.mxu0 0
        %1958 = vmatprep.subr.bf16.mxu0 0
        %1959 = vmatpush1.bf16.msra.mxu0 0
        %1960 = vmatprep.subr.bf16.mxu0 0
        %1961 = vmatpush1.bf16.msra.mxu0 0
        %1962 = vmatprep.subr.bf16.mxu0 0
        %1963 = vmatpush1.bf16.msra.mxu0 0
        %1964 = vmatprep.subr.bf16.mxu0 0
        %1965 = vmatpush1.bf16.msra.mxu0 0
        %1966 = vmatprep.mubr.bf16.mxu0 0
        %1967 = vmatmul.mubr.bf16.gmra.mrb[0].mxu0 %v1929
        %v1968 = vpop.f32.mrb[0].mxu0
        %v1969 = vadd.f32 0.0, %v1968
        %v1970 = vpop.f32.mrb[0].mxu0
        %v1971 = vpop.f32.mrb[0].mxu0
        %v1972 = vpop.f32.mrb[0].mxu0
        %1973 = vdwg.mxu0
        %1975 = vrot.lane.b32.xlu0 %v1912, 112
        %v1976 = vpop.permute.xlu0 %1975
        %v1978 = vsel %vm1061, %v1976, 0
        %v1981 = vsel %vm1065, %v1922, 0
        %1983 = vmatprep.subr.bf16.mxu0 0
        %1984 = vmatpush1.bf16.msra.mxu0 %v1981
        %1985 = vmatprep.subr.bf16.mxu0 0
        %1986 = vmatpush1.bf16.msra.mxu0 0
        %1987 = vmatprep.subr.bf16.mxu0 0
        %1988 = vmatpush1.bf16.msra.mxu0 0
        %1989 = vmatprep.subr.bf16.mxu0 0
        %1990 = vmatpush1.bf16.msra.mxu0 0
        %1991 = vmatprep.subr.bf16.mxu0 0
        %1992 = vmatpush1.bf16.msra.mxu0 0
        %1993 = vmatprep.subr.bf16.mxu0 0
        %1994 = vmatpush1.bf16.msra.mxu0 0
        %1995 = vmatprep.subr.bf16.mxu0 0
        %1996 = vmatpush1.bf16.msra.mxu0 0
        %1997 = vmatprep.subr.bf16.mxu0 0
        %1998 = vmatpush1.bf16.msra.mxu0 0
        %1999 = vmatprep.subr.bf16.mxu0 0
        %2000 = vmatpush1.bf16.msra.mxu0 0
        %2001 = vmatprep.subr.bf16.mxu0 0
        %2002 = vmatpush1.bf16.msra.mxu0 0
        %2003 = vmatprep.subr.bf16.mxu0 0
        %2004 = vmatpush1.bf16.msra.mxu0 0
        %2005 = vmatprep.subr.bf16.mxu0 0
        %2006 = vmatpush1.bf16.msra.mxu0 0
        %2007 = vmatprep.subr.bf16.mxu0 0
        %2008 = vmatpush1.bf16.msra.mxu0 0
        %2009 = vmatprep.subr.bf16.mxu0 0
        %2010 = vmatpush1.bf16.msra.mxu0 0
        %2011 = vmatprep.subr.bf16.mxu0 0
        %2012 = vmatpush1.bf16.msra.mxu0 0
        %2013 = vmatprep.subr.bf16.mxu0 0
        %2014 = vmatpush1.bf16.msra.mxu0 0
        %2015 = vmatprep.mubr.bf16.mxu0 0
        %2016 = vmatmul.mubr.bf16.gmra.mrb[0].mxu0 %v1978
        %v2017 = vpop.f32.mrb[0].mxu0
        %v2018 = vadd.f32 0.0, %v2017
        %v2019 = vpop.f32.mrb[0].mxu0
        %v2020 = vpop.f32.mrb[0].mxu0
        %v2021 = vpop.f32.mrb[0].mxu0
        %2022 = vdwg.mxu0
        %2024 = vrot.lane.b32.xlu0 %v1913, 112
        %v2025 = vpop.permute.xlu0 %2024
        %v2027 = vsel %vm1061, %v2025, 0
        %v2030 = vsel %vm1065, %v1923, 0
        %2032 = vmatprep.subr.bf16.mxu0 0
        %2033 = vmatpush1.bf16.msra.mxu0 %v2030
        %2034 = vmatprep.subr.bf16.mxu0 0
        %2035 = vmatpush1.bf16.msra.mxu0 0
        %2036 = vmatprep.subr.bf16.mxu0 0
        %2037 = vmatpush1.bf16.msra.mxu0 0
        %2038 = vmatprep.subr.bf16.mxu0 0
        %2039 = vmatpush1.bf16.msra.mxu0 0
        %2040 = vmatprep.subr.bf16.mxu0 0
        %2041 = vmatpush1.bf16.msra.mxu0 0
        %2042 = vmatprep.subr.bf16.mxu0 0
        %2043 = vmatpush1.bf16.msra.mxu0 0
        %2044 = vmatprep.subr.bf16.mxu0 0
        %2045 = vmatpush1.bf16.msra.mxu0 0
        %2046 = vmatprep.subr.bf16.mxu0 0
        %2047 = vmatpush1.bf16.msra.mxu0 0
        %2048 = vmatprep.subr.bf16.mxu0 0
        %2049 = vmatpush1.bf16.msra.mxu0 0
        %2050 = vmatprep.subr.bf16.mxu0 0
        %2051 = vmatpush1.bf16.msra.mxu0 0
        %2052 = vmatprep.subr.bf16.mxu0 0
        %2053 = vmatpush1.bf16.msra.mxu0 0
        %2054 = vmatprep.subr.bf16.mxu0 0
        %2055 = vmatpush1.bf16.msra.mxu0 0
        %2056 = vmatprep.subr.bf16.mxu0 0
        %2057 = vmatpush1.bf16.msra.mxu0 0
        %2058 = vmatprep.subr.bf16.mxu0 0
        %2059 = vmatpush1.bf16.msra.mxu0 0
        %2060 = vmatprep.subr.bf16.mxu0 0
        %2061 = vmatpush1.bf16.msra.mxu0 0
        %2062 = vmatprep.subr.bf16.mxu0 0
        %2063 = vmatpush1.bf16.msra.mxu0 0
        %2064 = vmatprep.mubr.bf16.mxu0 0
        %2065 = vmatmul.mubr.bf16.gmra.mrb[0].mxu0 %v2027
        %v2066 = vpop.f32.mrb[0].mxu0
        %v2067 = vadd.f32 0.0, %v2066
        %v2068 = vpop.f32.mrb[0].mxu0
        %v2069 = vpop.f32.mrb[0].mxu0
        %v2070 = vpop.f32.mrb[0].mxu0
        %2071 = vdwg.mxu0
        %2073 = vrot.lane.b32.xlu0 %v1914, 112
        %v2074 = vpop.permute.xlu0 %2073
        %v2076 = vsel %vm1061, %v2074, 0
        %v2079 = vsel %vm1065, %v1924, 0
        %2081 = vmatprep.subr.bf16.mxu0 0
        %2082 = vmatpush1.bf16.msra.mxu0 %v2079
        %2083 = vmatprep.subr.bf16.mxu0 0
        %2084 = vmatpush1.bf16.msra.mxu0 0
        %2085 = vmatprep.subr.bf16.mxu0 0
        %2086 = vmatpush1.bf16.msra.mxu0 0
        %2087 = vmatprep.subr.bf16.mxu0 0
        %2088 = vmatpush1.bf16.msra.mxu0 0
        %2089 = vmatprep.subr.bf16.mxu0 0
        %2090 = vmatpush1.bf16.msra.mxu0 0
        %2091 = vmatprep.subr.bf16.mxu0 0
        %2092 = vmatpush1.bf16.msra.mxu0 0
        %2093 = vmatprep.subr.bf16.mxu0 0
        %2094 = vmatpush1.bf16.msra.mxu0 0
        %2095 = vmatprep.subr.bf16.mxu0 0
        %2096 = vmatpush1.bf16.msra.mxu0 0
        %2097 = vmatprep.subr.bf16.mxu0 0
        %2098 = vmatpush1.bf16.msra.mxu0 0
        %2099 = vmatprep.subr.bf16.mxu0 0
        %2100 = vmatpush1.bf16.msra.mxu0 0
        %2101 = vmatprep.subr.bf16.mxu0 0
        %2102 = vmatpush1.bf16.msra.mxu0 0
        %2103 = vmatprep.subr.bf16.mxu0 0
        %2104 = vmatpush1.bf16.msra.mxu0 0
        %2105 = vmatprep.subr.bf16.mxu0 0
        %2106 = vmatpush1.bf16.msra.mxu0 0
        %2107 = vmatprep.subr.bf16.mxu0 0
        %2108 = vmatpush1.bf16.msra.mxu0 0
        %2109 = vmatprep.subr.bf16.mxu0 0
        %2110 = vmatpush1.bf16.msra.mxu0 0
        %2111 = vmatprep.subr.bf16.mxu0 0
        %2112 = vmatpush1.bf16.msra.mxu0 0
        %2113 = vmatprep.mubr.bf16.mxu0 0
        %2114 = vmatmul.mubr.bf16.gmra.mrb[0].mxu0 %v2076
        %v2115 = vpop.f32.mrb[0].mxu0
        %v2116 = vadd.f32 0.0, %v2115
        %v2117 = vpop.f32.mrb[0].mxu0
        %v2118 = vpop.f32.mrb[0].mxu0
        %v2119 = vpop.f32.mrb[0].mxu0
        %2120 = vdwg.mxu0
        %2122 = vrot.lane.b32.xlu0 %v1903, 112
        %v2123 = vpop.permute.xlu0 %2122
        %v2125 = vsel %vm1061, %v2123, 0
        %v2128 = vsel %vm1065, %v1916, 0
        %2130 = vmatprep.subr.bf16.mxu0 0
        %2131 = vmatpush1.bf16.msra.mxu0 %v2128
        %2132 = vmatprep.subr.bf16.mxu0 0
        %2133 = vmatpush1.bf16.msra.mxu0 0
        %2134 = vmatprep.subr.bf16.mxu0 0
        %2135 = vmatpush1.bf16.msra.mxu0 0
        %2136 = vmatprep.subr.bf16.mxu0 0
        %2137 = vmatpush1.bf16.msra.mxu0 0
        %2138 = vmatprep.subr.bf16.mxu0 0
        %2139 = vmatpush1.bf16.msra.mxu0 0
        %2140 = vmatprep.subr.bf16.mxu0 0
        %2141 = vmatpush1.bf16.msra.mxu0 0
        %2142 = vmatprep.subr.bf16.mxu0 0
        %2143 = vmatpush1.bf16.msra.mxu0 0
        %2144 = vmatprep.subr.bf16.mxu0 0
        %2145 = vmatpush1.bf16.msra.mxu0 0
        %2146 = vmatprep.subr.bf16.mxu0 0
        %2147 = vmatpush1.bf16.msra.mxu0 0
        %2148 = vmatprep.subr.bf16.mxu0 0
        %2149 = vmatpush1.bf16.msra.mxu0 0
        %2150 = vmatprep.subr.bf16.mxu0 0
        %2151 = vmatpush1.bf16.msra.mxu0 0
        %2152 = vmatprep.subr.bf16.mxu0 0
        %2153 = vmatpush1.bf16.msra.mxu0 0
        %2154 = vmatprep.subr.bf16.mxu0 0
        %2155 = vmatpush1.bf16.msra.mxu0 0
        %2156 = vmatprep.subr.bf16.mxu0 0
        %2157 = vmatpush1.bf16.msra.mxu0 0
        %2158 = vmatprep.subr.bf16.mxu0 0
        %2159 = vmatpush1.bf16.msra.mxu0 0
        %2160 = vmatprep.subr.bf16.mxu0 0
        %2161 = vmatpush1.bf16.msra.mxu0 0
        %2162 = vmatprep.mubr.bf16.mxu0 0
        %2163 = vmatmul.mubr.bf16.gmra.mrb[0].mxu0 %v2125
        %v2164 = vpop.f32.mrb[0].mxu0
        %v2165 = vadd.f32 %v1969, %v2164
        %v2166 = vpop.f32.mrb[0].mxu0
        %v2167 = vpop.f32.mrb[0].mxu0
        %v2168 = vpop.f32.mrb[0].mxu0
        %2169 = vdwg.mxu0
        %2171 = vrot.lane.b32.xlu0 %v1904, 112
        %v2172 = vpop.permute.xlu0 %2171
        %v2174 = vsel %vm1061, %v2172, 0
        %v2177 = vsel %vm1065, %v1917, 0
        %2179 = vmatprep.subr.bf16.mxu0 0
        %2180 = vmatpush1.bf16.msra.mxu0 %v2177
        %2181 = vmatprep.subr.bf16.mxu0 0
        %2182 = vmatpush1.bf16.msra.mxu0 0
        %2183 = vmatprep.subr.bf16.mxu0 0
        %2184 = vmatpush1.bf16.msra.mxu0 0
        %2185 = vmatprep.subr.bf16.mxu0 0
        %2186 = vmatpush1.bf16.msra.mxu0 0
        %2187 = vmatprep.subr.bf16.mxu0 0
        %2188 = vmatpush1.bf16.msra.mxu0 0
        %2189 = vmatprep.subr.bf16.mxu0 0
        %2190 = vmatpush1.bf16.msra.mxu0 0
        %2191 = vmatprep.subr.bf16.mxu0 0
        %2192 = vmatpush1.bf16.msra.mxu0 0
        %2193 = vmatprep.subr.bf16.mxu0 0
        %2194 = vmatpush1.bf16.msra.mxu0 0
        %2195 = vmatprep.subr.bf16.mxu0 0
        %2196 = vmatpush1.bf16.msra.mxu0 0
        %2197 = vmatprep.subr.bf16.mxu0 0
        %2198 = vmatpush1.bf16.msra.mxu0 0
        %2199 = vmatprep.subr.bf16.mxu0 0
        %2200 = vmatpush1.bf16.msra.mxu0 0
        %2201 = vmatprep.subr.bf16.mxu0 0
        %2202 = vmatpush1.bf16.msra.mxu0 0
        %2203 = vmatprep.subr.bf16.mxu0 0
        %2204 = vmatpush1.bf16.msra.mxu0 0
        %2205 = vmatprep.subr.bf16.mxu0 0
        %2206 = vmatpush1.bf16.msra.mxu0 0
        %2207 = vmatprep.subr.bf16.mxu0 0
        %2208 = vmatpush1.bf16.msra.mxu0 0
        %2209 = vmatprep.subr.bf16.mxu0 0
        %2210 = vmatpush1.bf16.msra.mxu0 0
        %2211 = vmatprep.mubr.bf16.mxu0 0
        %2212 = vmatmul.mubr.bf16.gmra.mrb[0].mxu0 %v2174
        %v2213 = vpop.f32.mrb[0].mxu0
        %v2214 = vadd.f32 %v2018, %v2213
        %v2215 = vpop.f32.mrb[0].mxu0
        %v2216 = vpop.f32.mrb[0].mxu0
        %v2217 = vpop.f32.mrb[0].mxu0
        %2218 = vdwg.mxu0
        %2220 = vrot.lane.b32.xlu0 %v1905, 112
        %v2221 = vpop.permute.xlu0 %2220
        %v2223 = vsel %vm1061, %v2221, 0
        %v2226 = vsel %vm1065, %v1918, 0
        %2228 = vmatprep.subr.bf16.mxu0 0
        %2229 = vmatpush1.bf16.msra.mxu0 %v2226
        %2230 = vmatprep.subr.bf16.mxu0 0
        %2231 = vmatpush1.bf16.msra.mxu0 0
        %2232 = vmatprep.subr.bf16.mxu0 0
        %2233 = vmatpush1.bf16.msra.mxu0 0
        %2234 = vmatprep.subr.bf16.mxu0 0
        %2235 = vmatpush1.bf16.msra.mxu0 0
        %2236 = vmatprep.subr.bf16.mxu0 0
        %2237 = vmatpush1.bf16.msra.mxu0 0
        %2238 = vmatprep.subr.bf16.mxu0 0
        %2239 = vmatpush1.bf16.msra.mxu0 0
        %2240 = vmatprep.subr.bf16.mxu0 0
        %2241 = vmatpush1.bf16.msra.mxu0 0
        %2242 = vmatprep.subr.bf16.mxu0 0
        %2243 = vmatpush1.bf16.msra.mxu0 0
        %2244 = vmatprep.subr.bf16.mxu0 0
        %2245 = vmatpush1.bf16.msra.mxu0 0
        %2246 = vmatprep.subr.bf16.mxu0 0
        %2247 = vmatpush1.bf16.msra.mxu0 0
        %2248 = vmatprep.subr.bf16.mxu0 0
        %2249 = vmatpush1.bf16.msra.mxu0 0
        %2250 = vmatprep.subr.bf16.mxu0 0
        %2251 = vmatpush1.bf16.msra.mxu0 0
        %2252 = vmatprep.subr.bf16.mxu0 0
        %2253 = vmatpush1.bf16.msra.mxu0 0
        %2254 = vmatprep.subr.bf16.mxu0 0
        %2255 = vmatpush1.bf16.msra.mxu0 0
        %2256 = vmatprep.subr.bf16.mxu0 0
        %2257 = vmatpush1.bf16.msra.mxu0 0
        %2258 = vmatprep.subr.bf16.mxu0 0
        %2259 = vmatpush1.bf16.msra.mxu0 0
        %2260 = vmatprep.mubr.bf16.mxu0 0
        %2261 = vmatmul.mubr.bf16.gmra.mrb[0].mxu0 %v2223
        %v2262 = vpop.f32.mrb[0].mxu0
        %v2263 = vadd.f32 %v2067, %v2262
        %v2264 = vpop.f32.mrb[0].mxu0
        %v2265 = vpop.f32.mrb[0].mxu0
        %v2266 = vpop.f32.mrb[0].mxu0
        %2267 = vdwg.mxu0
        %2269 = vrot.lane.b32.xlu0 %v1906, 112
        %v2270 = vpop.permute.xlu0 %2269
        %v2272 = vsel %vm1061, %v2270, 0
        %v2275 = vsel %vm1065, %v1919, 0
        %2277 = vmatprep.subr.bf16.mxu0 0
        %2278 = vmatpush1.bf16.msra.mxu0 %v2275
        %2279 = vmatprep.subr.bf16.mxu0 0
        %2280 = vmatpush1.bf16.msra.mxu0 0
        %2281 = vmatprep.subr.bf16.mxu0 0
        %2282 = vmatpush1.bf16.msra.mxu0 0
        %2283 = vmatprep.subr.bf16.mxu0 0
        %2284 = vmatpush1.bf16.msra.mxu0 0
        %2285 = vmatprep.subr.bf16.mxu0 0
        %2286 = vmatpush1.bf16.msra.mxu0 0
        %2287 = vmatprep.subr.bf16.mxu0 0
        %2288 = vmatpush1.bf16.msra.mxu0 0
        %2289 = vmatprep.subr.bf16.mxu0 0
        %2290 = vmatpush1.bf16.msra.mxu0 0
        %2291 = vmatprep.subr.bf16.mxu0 0
        %2292 = vmatpush1.bf16.msra.mxu0 0
        %2293 = vmatprep.subr.bf16.mxu0 0
        %2294 = vmatpush1.bf16.msra.mxu0 0
        %2295 = vmatprep.subr.bf16.mxu0 0
        %2296 = vmatpush1.bf16.msra.mxu0 0
        %2297 = vmatprep.subr.bf16.mxu0 0
        %2298 = vmatpush1.bf16.msra.mxu0 0
        %2299 = vmatprep.subr.bf16.mxu0 0
        %2300 = vmatpush1.bf16.msra.mxu0 0
        %2301 = vmatprep.subr.bf16.mxu0 0
        %2302 = vmatpush1.bf16.msra.mxu0 0
        %2303 = vmatprep.subr.bf16.mxu0 0
        %2304 = vmatpush1.bf16.msra.mxu0 0
        %2305 = vmatprep.subr.bf16.mxu0 0
        %2306 = vmatpush1.bf16.msra.mxu0 0
        %2307 = vmatprep.subr.bf16.mxu0 0
        %2308 = vmatpush1.bf16.msra.mxu0 0
        %2309 = vmatprep.mubr.bf16.mxu0 0
        %2310 = vmatmul.mubr.bf16.gmra.mrb[0].mxu0 %v2272
        %v2311 = vpop.f32.mrb[0].mxu0
        %v2312 = vadd.f32 %v2116, %v2311
        %v2313 = vpop.f32.mrb[0].mxu0
        %v2314 = vpop.f32.mrb[0].mxu0
        %v2315 = vpop.f32.mrb[0].mxu0
        %2316 = vdwg.mxu0
        %2321 = vrot.lane.b32.xlu0 %v2165, 16
        %v2322 = vpop.permute.xlu0 %2321
        %2323 = vrot.lane.b32.xlu0 %v2214, 16
        %v2324 = vpop.permute.xlu0 %2323
        %2325 = vrot.lane.b32.xlu0 %v2263, 16
        %v2326 = vpop.permute.xlu0 %2325
        %2327 = vrot.lane.b32.xlu0 %v2312, 16
        %v2328 = vpop.permute.xlu0 %2327
        %vm2333 = vcmask 189568
        %2334 = vst.msk [vmem:[#allocation2] sm:$0x3] %vm2333, %v2322
        %2335 = vst.msk [vmem:[#allocation2 + $0x2] sm:$0x3] %vm2333, %v2324
        %2336 = vst.msk [vmem:[#allocation2 + $0x4] sm:$0x3] %vm2333, %v2326
        %2337 = vst.msk [vmem:[#allocation2 + $0x6] sm:$0x3] %vm2333, %v2328
        %2338 = vrot.lane.b32.xlu0 %v2165, 8
        %v2339 = vpop.permute.xlu0 %2338
        %2340 = vrot.lane.b32.xlu0 %v2214, 8
        %v2341 = vpop.permute.xlu0 %2340
        %2342 = vrot.lane.b32.xlu0 %v2263, 8
        %v2343 = vpop.permute.xlu0 %2342
        %2344 = vrot.lane.b32.xlu0 %v2312, 8
        %v2345 = vpop.permute.xlu0 %2344
        %2350 = vst.msk [vmem:[%s1044] sm:$0x3] %vm2333, %v2339
        %2351 = vst.msk [vmem:[%s1044 + $0x2] sm:$0x3] %vm2333, %v2341
        %2352 = vst.msk [vmem:[%s1044 + $0x4] sm:$0x3] %vm2333, %v2343
        %2353 = vst.msk [vmem:[%s1044 + $0x6] sm:$0x3] %vm2333, %v2345
        %v2354 = vld [vmem:[#allocation2] sm:$0x3]
        %v2355 = vld [vmem:[#allocation2 + $0x2] sm:$0x3]
        %v2356 = vld [vmem:[#allocation2 + $0x4] sm:$0x3]
        %v2357 = vld [vmem:[#allocation2 + $0x6] sm:$0x3]
        %v2358 = vpack.c.bf16 %v2354, %v2354
        %v2359 = vpack.c.bf16 %v2355, %v2355
        %v2360 = vpack.c.bf16 %v2356, %v2356
        %v2361 = vpack.c.bf16 %v2357, %v2357
        %v2362 = vld [vmem:[%s1044] sm:$0x3]
        %v2363 = vld [vmem:[%s1044 + $0x2] sm:$0x3]
        %v2364 = vld [vmem:[%s1044 + $0x4] sm:$0x3]
        %v2365 = vld [vmem:[%s1044 + $0x6] sm:$0x3]
        %v2366 = vpack.c.bf16 %v2362, %v2362
        %v2367 = vpack.c.bf16 %v2363, %v2363
        %v2368 = vpack.c.bf16 %v2364, %v2364
        %v2369 = vpack.c.bf16 %v2365, %v2365
        %s2370 = scalar_lea.vmem %s5, 48
        %v2371 = vld [vmem:[%s2370] sm:$0xf]
        %v2372 = vld [vmem:[%s2370 + $0x4] sm:$0xf]
        %v2373 = vld [vmem:[%s2370 + $0x8] sm:$0xf]
        %v2374 = vld [vmem:[%s2370 + $0xc] sm:$0xf]
        %s2375 = scalar_lea.vmem [#allocation14], 48
        %v2376 = vld [vmem:[%s2375] sm:$0xf]
        %v2377 = vld [vmem:[%s2375 + $0x4] sm:$0xf]
        %v2378 = vld [vmem:[%s2375 + $0x8] sm:$0xf]
        %v2379 = vld [vmem:[%s2375 + $0xc] sm:$0xf]
        %2381 = vrot.lane.b32.xlu0 %v2366, 104
        %v2382 = vpop.permute.xlu0 %2381
        %v2384 = vsel %vm1061, %v2382, 0
        %v2387 = vsel %vm1065, %v2376, 0
        %2389 = vmatprep.subr.bf16.mxu0 0
        %2390 = vmatpush1.bf16.msra.mxu0 %v2387
        %2391 = vmatprep.subr.bf16.mxu0 0
        %2392 = vmatpush1.bf16.msra.mxu0 0
        %2393 = vmatprep.subr.bf16.mxu0 0
        %2394 = vmatpush1.bf16.msra.mxu0 0
        %2395 = vmatprep.subr.bf16.mxu0 0
        %2396 = vmatpush1.bf16.msra.mxu0 0
        %2397 = vmatprep.subr.bf16.mxu0 0
        %2398 = vmatpush1.bf16.msra.mxu0 0
        %2399 = vmatprep.subr.bf16.mxu0 0
        %2400 = vmatpush1.bf16.msra.mxu0 0
        %2401 = vmatprep.subr.bf16.mxu0 0
        %2402 = vmatpush1.bf16.msra.mxu0 0
        %2403 = vmatprep.subr.bf16.mxu0 0
        %2404 = vmatpush1.bf16.msra.mxu0 0
        %2405 = vmatprep.subr.bf16.mxu0 0
        %2406 = vmatpush1.bf16.msra.mxu0 0
        %2407 = vmatprep.subr.bf16.mxu0 0
        %2408 = vmatpush1.bf16.msra.mxu0 0
        %2409 = vmatprep.subr.bf16.mxu0 0
        %2410 = vmatpush1.bf16.msra.mxu0 0
        %2411 = vmatprep.subr.bf16.mxu0 0
        %2412 = vmatpush1.bf16.msra.mxu0 0
        %2413 = vmatprep.subr.bf16.mxu0 0
        %2414 = vmatpush1.bf16.msra.mxu0 0
        %2415 = vmatprep.subr.bf16.mxu0 0
        %2416 = vmatpush1.bf16.msra.mxu0 0
        %2417 = vmatprep.subr.bf16.mxu0 0
        %2418 = vmatpush1.bf16.msra.mxu0 0
        %2419 = vmatprep.subr.bf16.mxu0 0
        %2420 = vmatpush1.bf16.msra.mxu0 0
        %2421 = vmatprep.mubr.bf16.mxu0 0
        %2422 = vmatmul.mubr.bf16.gmra.mrb[0].mxu0 %v2384
        %v2423 = vpop.f32.mrb[0].mxu0
        %v2424 = vadd.f32 0.0, %v2423
        %v2425 = vpop.f32.mrb[0].mxu0
        %v2426 = vpop.f32.mrb[0].mxu0
        %v2427 = vpop.f32.mrb[0].mxu0
        %2428 = vdwg.mxu0
        %2430 = vrot.lane.b32.xlu0 %v2367, 104
        %v2431 = vpop.permute.xlu0 %2430
        %v2433 = vsel %vm1061, %v2431, 0
        %v2436 = vsel %vm1065, %v2377, 0
        %2438 = vmatprep.subr.bf16.mxu0 0
        %2439 = vmatpush1.bf16.msra.mxu0 %v2436
        %2440 = vmatprep.subr.bf16.mxu0 0
        %2441 = vmatpush1.bf16.msra.mxu0 0
        %2442 = vmatprep.subr.bf16.mxu0 0
        %2443 = vmatpush1.bf16.msra.mxu0 0
        %2444 = vmatprep.subr.bf16.mxu0 0
        %2445 = vmatpush1.bf16.msra.mxu0 0
        %2446 = vmatprep.subr.bf16.mxu0 0
        %2447 = vmatpush1.bf16.msra.mxu0 0
        %2448 = vmatprep.subr.bf16.mxu0 0
        %2449 = vmatpush1.bf16.msra.mxu0 0
        %2450 = vmatprep.subr.bf16.mxu0 0
        %2451 = vmatpush1.bf16.msra.mxu0 0
        %2452 = vmatprep.subr.bf16.mxu0 0
        %2453 = vmatpush1.bf16.msra.mxu0 0
        %2454 = vmatprep.subr.bf16.mxu0 0
        %2455 = vmatpush1.bf16.msra.mxu0 0
        %2456 = vmatprep.subr.bf16.mxu0 0
        %2457 = vmatpush1.bf16.msra.mxu0 0
        %2458 = vmatprep.subr.bf16.mxu0 0
        %2459 = vmatpush1.bf16.msra.mxu0 0
        %2460 = vmatprep.subr.bf16.mxu0 0
        %2461 = vmatpush1.bf16.msra.mxu0 0
        %2462 = vmatprep.subr.bf16.mxu0 0
        %2463 = vmatpush1.bf16.msra.mxu0 0
        %2464 = vmatprep.subr.bf16.mxu0 0
        %2465 = vmatpush1.bf16.msra.mxu0 0
        %2466 = vmatprep.subr.bf16.mxu0 0
        %2467 = vmatpush1.bf16.msra.mxu0 0
        %2468 = vmatprep.subr.bf16.mxu0 0
        %2469 = vmatpush1.bf16.msra.mxu0 0
        %2470 = vmatprep.mubr.bf16.mxu0 0
        %2471 = vmatmul.mubr.bf16.gmra.mrb[0].mxu0 %v2433
        %v2472 = vpop.f32.mrb[0].mxu0
        %v2473 = vadd.f32 0.0, %v2472
        %v2474 = vpop.f32.mrb[0].mxu0
        %v2475 = vpop.f32.mrb[0].mxu0
        %v2476 = vpop.f32.mrb[0].mxu0
        %2477 = vdwg.mxu0
        %2479 = vrot.lane.b32.xlu0 %v2368, 104
        %v2480 = vpop.permute.xlu0 %2479
        %v2482 = vsel %vm1061, %v2480, 0
        %v2485 = vsel %vm1065, %v2378, 0
        %2487 = vmatprep.subr.bf16.mxu0 0
        %2488 = vmatpush1.bf16.msra.mxu0 %v2485
        %2489 = vmatprep.subr.bf16.mxu0 0
        %2490 = vmatpush1.bf16.msra.mxu0 0
        %2491 = vmatprep.subr.bf16.mxu0 0
        %2492 = vmatpush1.bf16.msra.mxu0 0
        %2493 = vmatprep.subr.bf16.mxu0 0
        %2494 = vmatpush1.bf16.msra.mxu0 0
        %2495 = vmatprep.subr.bf16.mxu0 0
        %2496 = vmatpush1.bf16.msra.mxu0 0
        %2497 = vmatprep.subr.bf16.mxu0 0
        %2498 = vmatpush1.bf16.msra.mxu0 0
        %2499 = vmatprep.subr.bf16.mxu0 0
        %2500 = vmatpush1.bf16.msra.mxu0 0
        %2501 = vmatprep.subr.bf16.mxu0 0
        %2502 = vmatpush1.bf16.msra.mxu0 0
        %2503 = vmatprep.subr.bf16.mxu0 0
        %2504 = vmatpush1.bf16.msra.mxu0 0
        %2505 = vmatprep.subr.bf16.mxu0 0
        %2506 = vmatpush1.bf16.msra.mxu0 0
        %2507 = vmatprep.subr.bf16.mxu0 0
        %2508 = vmatpush1.bf16.msra.mxu0 0
        %2509 = vmatprep.subr.bf16.mxu0 0
        %2510 = vmatpush1.bf16.msra.mxu0 0
        %2511 = vmatprep.subr.bf16.mxu0 0
        %2512 = vmatpush1.bf16.msra.mxu0 0
        %2513 = vmatprep.subr.bf16.mxu0 0
        %2514 = vmatpush1.bf16.msra.mxu0 0
        %2515 = vmatprep.subr.bf16.mxu0 0
        %2516 = vmatpush1.bf16.msra.mxu0 0
        %2517 = vmatprep.subr.bf16.mxu0 0
        %2518 = vmatpush1.bf16.msra.mxu0 0
        %2519 = vmatprep.mubr.bf16.mxu0 0
        %2520 = vmatmul.mubr.bf16.gmra.mrb[0].mxu0 %v2482
        %v2521 = vpop.f32.mrb[0].mxu0
        %v2522 = vadd.f32 0.0, %v2521
        %v2523 = vpop.f32.mrb[0].mxu0
        %v2524 = vpop.f32.mrb[0].mxu0
        %v2525 = vpop.f32.mrb[0].mxu0
        %2526 = vdwg.mxu0
        %2528 = vrot.lane.b32.xlu0 %v2369, 104
        %v2529 = vpop.permute.xlu0 %2528
        %v2531 = vsel %vm1061, %v2529, 0
        %v2534 = vsel %vm1065, %v2379, 0
        %2536 = vmatprep.subr.bf16.mxu0 0
        %2537 = vmatpush1.bf16.msra.mxu0 %v2534
        %2538 = vmatprep.subr.bf16.mxu0 0
        %2539 = vmatpush1.bf16.msra.mxu0 0
        %2540 = vmatprep.subr.bf16.mxu0 0
        %2541 = vmatpush1.bf16.msra.mxu0 0
        %2542 = vmatprep.subr.bf16.mxu0 0
        %2543 = vmatpush1.bf16.msra.mxu0 0
        %2544 = vmatprep.subr.bf16.mxu0 0
        %2545 = vmatpush1.bf16.msra.mxu0 0
        %2546 = vmatprep.subr.bf16.mxu0 0
        %2547 = vmatpush1.bf16.msra.mxu0 0
        %2548 = vmatprep.subr.bf16.mxu0 0
        %2549 = vmatpush1.bf16.msra.mxu0 0
        %2550 = vmatprep.subr.bf16.mxu0 0
        %2551 = vmatpush1.bf16.msra.mxu0 0
        %2552 = vmatprep.subr.bf16.mxu0 0
        %2553 = vmatpush1.bf16.msra.mxu0 0
        %2554 = vmatprep.subr.bf16.mxu0 0
        %2555 = vmatpush1.bf16.msra.mxu0 0
        %2556 = vmatprep.subr.bf16.mxu0 0
        %2557 = vmatpush1.bf16.msra.mxu0 0
        %2558 = vmatprep.subr.bf16.mxu0 0
        %2559 = vmatpush1.bf16.msra.mxu0 0
        %2560 = vmatprep.subr.bf16.mxu0 0
        %2561 = vmatpush1.bf16.msra.mxu0 0
        %2562 = vmatprep.subr.bf16.mxu0 0
        %2563 = vmatpush1.bf16.msra.mxu0 0
        %2564 = vmatprep.subr.bf16.mxu0 0
        %2565 = vmatpush1.bf16.msra.mxu0 0
        %2566 = vmatprep.subr.bf16.mxu0 0
        %2567 = vmatpush1.bf16.msra.mxu0 0
        %2568 = vmatprep.mubr.bf16.mxu0 0
        %2569 = vmatmul.mubr.bf16.gmra.mrb[0].mxu0 %v2531
        %v2570 = vpop.f32.mrb[0].mxu0
        %v2571 = vadd.f32 0.0, %v2570
        %v2572 = vpop.f32.mrb[0].mxu0
        %v2573 = vpop.f32.mrb[0].mxu0
        %v2574 = vpop.f32.mrb[0].mxu0
        %2575 = vdwg.mxu0
        %2577 = vrot.lane.b32.xlu0 %v2358, 104
        %v2578 = vpop.permute.xlu0 %2577
        %v2580 = vsel %vm1061, %v2578, 0
        %v2583 = vsel %vm1065, %v2371, 0
        %2585 = vmatprep.subr.bf16.mxu0 0
        %2586 = vmatpush1.bf16.msra.mxu0 %v2583
        %2587 = vmatprep.subr.bf16.mxu0 0
        %2588 = vmatpush1.bf16.msra.mxu0 0
        %2589 = vmatprep.subr.bf16.mxu0 0
        %2590 = vmatpush1.bf16.msra.mxu0 0
        %2591 = vmatprep.subr.bf16.mxu0 0
        %2592 = vmatpush1.bf16.msra.mxu0 0
        %2593 = vmatprep.subr.bf16.mxu0 0
        %2594 = vmatpush1.bf16.msra.mxu0 0
        %2595 = vmatprep.subr.bf16.mxu0 0
        %2596 = vmatpush1.bf16.msra.mxu0 0
        %2597 = vmatprep.subr.bf16.mxu0 0
        %2598 = vmatpush1.bf16.msra.mxu0 0
        %2599 = vmatprep.subr.bf16.mxu0 0
        %2600 = vmatpush1.bf16.msra.mxu0 0
        %2601 = vmatprep.subr.bf16.mxu0 0
        %2602 = vmatpush1.bf16.msra.mxu0 0
        %2603 = vmatprep.subr.bf16.mxu0 0
        %2604 = vmatpush1.bf16.msra.mxu0 0
        %2605 = vmatprep.subr.bf16.mxu0 0
        %2606 = vmatpush1.bf16.msra.mxu0 0
        %2607 = vmatprep.subr.bf16.mxu0 0
        %2608 = vmatpush1.bf16.msra.mxu0 0
        %2609 = vmatprep.subr.bf16.mxu0 0
        %2610 = vmatpush1.bf16.msra.mxu0 0
        %2611 = vmatprep.subr.bf16.mxu0 0
        %2612 = vmatpush1.bf16.msra.mxu0 0
        %2613 = vmatprep.subr.bf16.mxu0 0
        %2614 = vmatpush1.bf16.msra.mxu0 0
        %2615 = vmatprep.subr.bf16.mxu0 0
        %2616 = vmatpush1.bf16.msra.mxu0 0
        %2617 = vmatprep.mubr.bf16.mxu0 0
        %2618 = vmatmul.mubr.bf16.gmra.mrb[0].mxu0 %v2580
        %v2619 = vpop.f32.mrb[0].mxu0
        %v2620 = vadd.f32 %v2424, %v2619
        %v2621 = vpop.f32.mrb[0].mxu0
        %v2622 = vpop.f32.mrb[0].mxu0
        %v2623 = vpop.f32.mrb[0].mxu0
        %2624 = vdwg.mxu0
        %2626 = vrot.lane.b32.xlu0 %v2359, 104
        %v2627 = vpop.permute.xlu0 %2626
        %v2629 = vsel %vm1061, %v2627, 0
        %v2632 = vsel %vm1065, %v2372, 0
        %2634 = vmatprep.subr.bf16.mxu0 0
        %2635 = vmatpush1.bf16.msra.mxu0 %v2632
        %2636 = vmatprep.subr.bf16.mxu0 0
        %2637 = vmatpush1.bf16.msra.mxu0 0
        %2638 = vmatprep.subr.bf16.mxu0 0
        %2639 = vmatpush1.bf16.msra.mxu0 0
        %2640 = vmatprep.subr.bf16.mxu0 0
        %2641 = vmatpush1.bf16.msra.mxu0 0
        %2642 = vmatprep.subr.bf16.mxu0 0
        %2643 = vmatpush1.bf16.msra.mxu0 0
        %2644 = vmatprep.subr.bf16.mxu0 0
        %2645 = vmatpush1.bf16.msra.mxu0 0
        %2646 = vmatprep.subr.bf16.mxu0 0
        %2647 = vmatpush1.bf16.msra.mxu0 0
        %2648 = vmatprep.subr.bf16.mxu0 0
        %2649 = vmatpush1.bf16.msra.mxu0 0
        %2650 = vmatprep.subr.bf16.mxu0 0
        %2651 = vmatpush1.bf16.msra.mxu0 0
        %2652 = vmatprep.subr.bf16.mxu0 0
        %2653 = vmatpush1.bf16.msra.mxu0 0
        %2654 = vmatprep.subr.bf16.mxu0 0
        %2655 = vmatpush1.bf16.msra.mxu0 0
        %2656 = vmatprep.subr.bf16.mxu0 0
        %2657 = vmatpush1.bf16.msra.mxu0 0
        %2658 = vmatprep.subr.bf16.mxu0 0
        %2659 = vmatpush1.bf16.msra.mxu0 0
        %2660 = vmatprep.subr.bf16.mxu0 0
        %2661 = vmatpush1.bf16.msra.mxu0 0
        %2662 = vmatprep.subr.bf16.mxu0 0
        %2663 = vmatpush1.bf16.msra.mxu0 0
        %2664 = vmatprep.subr.bf16.mxu0 0
        %2665 = vmatpush1.bf16.msra.mxu0 0
        %2666 = vmatprep.mubr.bf16.mxu0 0
        %2667 = vmatmul.mubr.bf16.gmra.mrb[0].mxu0 %v2629
        %v2668 = vpop.f32.mrb[0].mxu0
        %v2669 = vadd.f32 %v2473, %v2668
        %v2670 = vpop.f32.mrb[0].mxu0
        %v2671 = vpop.f32.mrb[0].mxu0
        %v2672 = vpop.f32.mrb[0].mxu0
        %2673 = vdwg.mxu0
        %2675 = vrot.lane.b32.xlu0 %v2360, 104
        %v2676 = vpop.permute.xlu0 %2675
        %v2678 = vsel %vm1061, %v2676, 0
        %v2681 = vsel %vm1065, %v2373, 0
        %2683 = vmatprep.subr.bf16.mxu0 0
        %2684 = vmatpush1.bf16.msra.mxu0 %v2681
        %2685 = vmatprep.subr.bf16.mxu0 0
        %2686 = vmatpush1.bf16.msra.mxu0 0
        %2687 = vmatprep.subr.bf16.mxu0 0
        %2688 = vmatpush1.bf16.msra.mxu0 0
        %2689 = vmatprep.subr.bf16.mxu0 0
        %2690 = vmatpush1.bf16.msra.mxu0 0
        %2691 = vmatprep.subr.bf16.mxu0 0
        %2692 = vmatpush1.bf16.msra.mxu0 0
        %2693 = vmatprep.subr.bf16.mxu0 0
        %2694 = vmatpush1.bf16.msra.mxu0 0
        %2695 = vmatprep.subr.bf16.mxu0 0
        %2696 = vmatpush1.bf16.msra.mxu0 0
        %2697 = vmatprep.subr.bf16.mxu0 0
        %2698 = vmatpush1.bf16.msra.mxu0 0
        %2699 = vmatprep.subr.bf16.mxu0 0
        %2700 = vmatpush1.bf16.msra.mxu0 0
        %2701 = vmatprep.subr.bf16.mxu0 0
        %2702 = vmatpush1.bf16.msra.mxu0 0
        %2703 = vmatprep.subr.bf16.mxu0 0
        %2704 = vmatpush1.bf16.msra.mxu0 0
        %2705 = vmatprep.subr.bf16.mxu0 0
        %2706 = vmatpush1.bf16.msra.mxu0 0
        %2707 = vmatprep.subr.bf16.mxu0 0
        %2708 = vmatpush1.bf16.msra.mxu0 0
        %2709 = vmatprep.subr.bf16.mxu0 0
        %2710 = vmatpush1.bf16.msra.mxu0 0
        %2711 = vmatprep.subr.bf16.mxu0 0
        %2712 = vmatpush1.bf16.msra.mxu0 0
        %2713 = vmatprep.subr.bf16.mxu0 0
        %2714 = vmatpush1.bf16.msra.mxu0 0
        %2715 = vmatprep.mubr.bf16.mxu0 0
        %2716 = vmatmul.mubr.bf16.gmra.mrb[0].mxu0 %v2678
        %v2717 = vpop.f32.mrb[0].mxu0
        %v2718 = vadd.f32 %v2522, %v2717
        %v2719 = vpop.f32.mrb[0].mxu0
        %v2720 = vpop.f32.mrb[0].mxu0
        %v2721 = vpop.f32.mrb[0].mxu0
        %2722 = vdwg.mxu0
        %2724 = vrot.lane.b32.xlu0 %v2361, 104
        %v2725 = vpop.permute.xlu0 %2724
        %v2727 = vsel %vm1061, %v2725, 0
        %v2730 = vsel %vm1065, %v2374, 0
        %2732 = vmatprep.subr.bf16.mxu0 0
        %2733 = vmatpush1.bf16.msra.mxu0 %v2730
        %2734 = vmatprep.subr.bf16.mxu0 0
        %2735 = vmatpush1.bf16.msra.mxu0 0
        %2736 = vmatprep.subr.bf16.mxu0 0
        %2737 = vmatpush1.bf16.msra.mxu0 0
        %2738 = vmatprep.subr.bf16.mxu0 0
        %2739 = vmatpush1.bf16.msra.mxu0 0
        %2740 = vmatprep.subr.bf16.mxu0 0
        %2741 = vmatpush1.bf16.msra.mxu0 0
        %2742 = vmatprep.subr.bf16.mxu0 0
        %2743 = vmatpush1.bf16.msra.mxu0 0
        %2744 = vmatprep.subr.bf16.mxu0 0
        %2745 = vmatpush1.bf16.msra.mxu0 0
        %2746 = vmatprep.subr.bf16.mxu0 0
        %2747 = vmatpush1.bf16.msra.mxu0 0
        %2748 = vmatprep.subr.bf16.mxu0 0
        %2749 = vmatpush1.bf16.msra.mxu0 0
        %2750 = vmatprep.subr.bf16.mxu0 0
        %2751 = vmatpush1.bf16.msra.mxu0 0
        %2752 = vmatprep.subr.bf16.mxu0 0
        %2753 = vmatpush1.bf16.msra.mxu0 0
        %2754 = vmatprep.subr.bf16.mxu0 0
        %2755 = vmatpush1.bf16.msra.mxu0 0
        %2756 = vmatprep.subr.bf16.mxu0 0
        %2757 = vmatpush1.bf16.msra.mxu0 0
        %2758 = vmatprep.subr.bf16.mxu0 0
        %2759 = vmatpush1.bf16.msra.mxu0 0
        %2760 = vmatprep.subr.bf16.mxu0 0
        %2761 = vmatpush1.bf16.msra.mxu0 0
        %2762 = vmatprep.subr.bf16.mxu0 0
        %2763 = vmatpush1.bf16.msra.mxu0 0
        %2764 = vmatprep.mubr.bf16.mxu0 0
        %2765 = vmatmul.mubr.bf16.gmra.mrb[0].mxu0 %v2727
        %v2766 = vpop.f32.mrb[0].mxu0
        %v2767 = vadd.f32 %v2571, %v2766
        %v2768 = vpop.f32.mrb[0].mxu0
        %v2769 = vpop.f32.mrb[0].mxu0
        %v2770 = vpop.f32.mrb[0].mxu0
        %2771 = vdwg.mxu0
        %2776 = vrot.lane.b32.xlu0 %v2620, 24
        %v2777 = vpop.permute.xlu0 %2776
        %2778 = vrot.lane.b32.xlu0 %v2669, 24
        %v2779 = vpop.permute.xlu0 %2778
        %2780 = vrot.lane.b32.xlu0 %v2718, 24
        %v2781 = vpop.permute.xlu0 %2780
        %2782 = vrot.lane.b32.xlu0 %v2767, 24
        %v2783 = vpop.permute.xlu0 %2782
        %vm2788 = vcmask 255168
        %2789 = vst.msk [vmem:[#allocation2] sm:$0x3] %vm2788, %v2777
        %2790 = vst.msk [vmem:[#allocation2 + $0x2] sm:$0x3] %vm2788, %v2779
        %2791 = vst.msk [vmem:[#allocation2 + $0x4] sm:$0x3] %vm2788, %v2781
        %2792 = vst.msk [vmem:[#allocation2 + $0x6] sm:$0x3] %vm2788, %v2783
        %2793 = vrot.lane.b32.xlu0 %v2620, 16
        %v2794 = vpop.permute.xlu0 %2793
        %2795 = vrot.lane.b32.xlu0 %v2669, 16
        %v2796 = vpop.permute.xlu0 %2795
        %2797 = vrot.lane.b32.xlu0 %v2718, 16
        %v2798 = vpop.permute.xlu0 %2797
        %2799 = vrot.lane.b32.xlu0 %v2767, 16
        %v2800 = vpop.permute.xlu0 %2799
        %2805 = vst.msk [vmem:[%s1044] sm:$0x3] %vm2788, %v2794
        %2806 = vst.msk [vmem:[%s1044 + $0x2] sm:$0x3] %vm2788, %v2796
        %2807 = vst.msk [vmem:[%s1044 + $0x4] sm:$0x3] %vm2788, %v2798
        %2808 = vst.msk [vmem:[%s1044 + $0x6] sm:$0x3] %vm2788, %v2800
        %v2809 = vld [vmem:[%s8] sm:$0xf]
        %v2810 = vld [vmem:[%s8 + $0x4] sm:$0xf]
        %v2811 = vld [vmem:[#allocation2] sm:$0x1]
        %v2812 = vld [vmem:[#allocation2 + $0x2] sm:$0x1]
        %v2813 = vld [vmem:[#allocation2 + $0x4] sm:$0x1]
        %v2814 = vld [vmem:[#allocation2 + $0x6] sm:$0x1]
        %v2815 = vld [vmem:[#allocation2 + $0x8] sm:$0x1]
        %v2816 = vld [vmem:[#allocation2 + $0xa] sm:$0x1]
        %v2817 = vld [vmem:[#allocation2 + $0xc] sm:$0x1]
        %v2818 = vld [vmem:[#allocation2 + $0xe] sm:$0x1]
        %v2819 = vpack.c.bf16 %v2811, %v2811
        %v2820 = vpack.c.bf16 %v2812, %v2812
        %v2821 = vpack.c.bf16 %v2813, %v2813
        %v2822 = vpack.c.bf16 %v2814, %v2814
        %v2823 = vpack.c.bf16 %v2815, %v2815
        %v2824 = vpack.c.bf16 %v2816, %v2816
        %v2825 = vpack.c.bf16 %v2817, %v2817
        %v2826 = vpack.c.bf16 %v2818, %v2818
        %v2829 = vunpack.c.l.b16 %v2809
        %v2830 = vunpack.c.l.b16 %v2810
        %v2831 = vpack.c.b16 %v2830, %v2829
        %v2840 = vunpack.c.l.b16 %v2819
        %v2841 = vunpack.c.l.b16 %v2820
        %v2842 = vunpack.c.l.b16 %v2821
        %v2843 = vunpack.c.l.b16 %v2822
        %v2844 = vunpack.c.l.b16 %v2823
        %v2845 = vunpack.c.l.b16 %v2824
        %v2846 = vunpack.c.l.b16 %v2825
        %v2847 = vunpack.c.l.b16 %v2826
        %v2848 = vrot.slane %v2841, 7
        %vm2849 = vcmask 1041409
        %v2850 = vsel %vm2849, %v2848, %v2840
        %v2851 = vrot.slane %v2842, 6
        %vm2852 = vcmask 1042434
        %v2853 = vsel %vm2852, %v2851, %v2850
        %v2854 = vrot.slane %v2843, 5
        %vm2855 = vcmask 1043459
        %v2856 = vsel %vm2855, %v2854, %v2853
        %v2857 = vrot.slane %v2844, 4
        %vm2858 = vcmask 1044484
        %v2859 = vsel %vm2858, %v2857, %v2856
        %v2860 = vrot.slane %v2845, 3
        %vm2861 = vcmask 1045509
        %v2862 = vsel %vm2861, %v2860, %v2859
        %v2863 = vrot.slane %v2846, 2
        %vm2864 = vcmask 1046534
        %v2865 = vsel %vm2864, %v2863, %v2862
        %v2866 = vrot.slane %v2847, 1
        %vm2867 = vcmask 1047559
        %v2868 = vsel %vm2867, %v2866, %v2865
        %v2869 = vpack.c.b16 %v2868, %v2868
        %v2871 = vsel %vm1061, %v2831, 0
        %v2874 = vsel %vm1065, %v2869, 0
        %2876 = vmatprep.subr.bf16.mxu0 0
        %2877 = vmatpush1.bf16.msra.mxu0 %v2874
        %2878 = vmatprep.subr.bf16.mxu0 0
        %2879 = vmatpush1.bf16.msra.mxu0 0
        %2880 = vmatprep.subr.bf16.mxu0 0
        %2881 = vmatpush1.bf16.msra.mxu0 0
        %2882 = vmatprep.subr.bf16.mxu0 0
        %2883 = vmatpush1.bf16.msra.mxu0 0
        %2884 = vmatprep.subr.bf16.mxu0 0
        %2885 = vmatpush1.bf16.msra.mxu0 0
        %2886 = vmatprep.subr.bf16.mxu0 0
        %2887 = vmatpush1.bf16.msra.mxu0 0
        %2888 = vmatprep.subr.bf16.mxu0 0
        %2889 = vmatpush1.bf16.msra.mxu0 0
        %2890 = vmatprep.subr.bf16.mxu0 0
        %2891 = vmatpush1.bf16.msra.mxu0 0
        %2892 = vmatprep.subr.bf16.mxu0 0
        %2893 = vmatpush1.bf16.msra.mxu0 0
        %2894 = vmatprep.subr.bf16.mxu0 0
        %2895 = vmatpush1.bf16.msra.mxu0 0
        %2896 = vmatprep.subr.bf16.mxu0 0
        %2897 = vmatpush1.bf16.msra.mxu0 0
        %2898 = vmatprep.subr.bf16.mxu0 0
        %2899 = vmatpush1.bf16.msra.mxu0 0
        %2900 = vmatprep.subr.bf16.mxu0 0
        %2901 = vmatpush1.bf16.msra.mxu0 0
        %2902 = vmatprep.subr.bf16.mxu0 0
        %2903 = vmatpush1.bf16.msra.mxu0 0
        %2904 = vmatprep.subr.bf16.mxu0 0
        %2905 = vmatpush1.bf16.msra.mxu0 0
        %2906 = vmatprep.subr.bf16.mxu0 0
        %2907 = vmatpush1.bf16.msra.mxu0 0
        %2908 = vmatprep.mubr.bf16.mxu0 0
        %2909 = vmatmul.mubr.bf16.gmra.mrb[0].mxu0 %v2871
        %v2910 = vpop.f32.mrb[0].mxu0
        %v2911 = vadd.f32 0.0, %v2910
        %v2912 = vpop.f32.mrb[0].mxu0
        %v2913 = vpop.f32.mrb[0].mxu0
        %v2914 = vadd.f32 0.0, %v2913
        %v2915 = vpop.f32.mrb[0].mxu0
        %2916 = vdwg.mxu0
        %2917 = vst.msk [vmem:[#allocation3] sm:$0xff] %vm760, %v2911
        %2918 = vst.msk [vmem:[#allocation3 + $0x8] sm:$0xff] %vm760, %v2914
        %v2919 = vld [vmem:[#allocation2 + $0x1] sm:$0x1]
        %v2920 = vld [vmem:[#allocation2 + $0x3] sm:$0x1]
        %v2921 = vld [vmem:[#allocation2 + $0x5] sm:$0x1]
        %v2922 = vld [vmem:[#allocation2 + $0x7] sm:$0x1]
        %v2923 = vld [vmem:[#allocation2 + $0x9] sm:$0x1]
        %v2924 = vld [vmem:[#allocation2 + $0xb] sm:$0x1]
        %v2925 = vld [vmem:[#allocation2 + $0xd] sm:$0x1]
        %v2926 = vld [vmem:[#allocation2 + $0xf] sm:$0x1]
        %v2927 = vpack.c.bf16 %v2919, %v2919
        %v2928 = vpack.c.bf16 %v2920, %v2920
        %v2929 = vpack.c.bf16 %v2921, %v2921
        %v2930 = vpack.c.bf16 %v2922, %v2922
        %v2931 = vpack.c.bf16 %v2923, %v2923
        %v2932 = vpack.c.bf16 %v2924, %v2924
        %v2933 = vpack.c.bf16 %v2925, %v2925
        %v2934 = vpack.c.bf16 %v2926, %v2926
        %v2943 = vunpack.c.l.b16 %v2927
        %v2944 = vunpack.c.l.b16 %v2928
        %v2945 = vunpack.c.l.b16 %v2929
        %v2946 = vunpack.c.l.b16 %v2930
        %v2947 = vunpack.c.l.b16 %v2931
        %v2948 = vunpack.c.l.b16 %v2932
        %v2949 = vunpack.c.l.b16 %v2933
        %v2950 = vunpack.c.l.b16 %v2934
        %v2951 = vrot.slane %v2944, 7
        %v2952 = vsel %vm2849, %v2951, %v2943
        %v2953 = vrot.slane %v2945, 6
        %v2954 = vsel %vm2852, %v2953, %v2952
        %v2955 = vrot.slane %v2946, 5
        %v2956 = vsel %vm2855, %v2955, %v2954
        %v2957 = vrot.slane %v2947, 4
        %v2958 = vsel %vm2858, %v2957, %v2956
        %v2959 = vrot.slane %v2948, 3
        %v2960 = vsel %vm2861, %v2959, %v2958
        %v2961 = vrot.slane %v2949, 2
        %v2962 = vsel %vm2864, %v2961, %v2960
        %v2963 = vrot.slane %v2950, 1
        %v2964 = vsel %vm2867, %v2963, %v2962
        %v2965 = vpack.c.b16 %v2964, %v2964
        %v2967 = vsel %vm1065, %v2965, 0
        %2969 = vmatprep.subr.bf16.mxu0 0
        %2970 = vmatpush1.bf16.msra.mxu0 %v2967
        %2971 = vmatprep.subr.bf16.mxu0 0
        %2972 = vmatpush1.bf16.msra.mxu0 0
        %2973 = vmatprep.subr.bf16.mxu0 0
        %2974 = vmatpush1.bf16.msra.mxu0 0
        %2975 = vmatprep.subr.bf16.mxu0 0
        %2976 = vmatpush1.bf16.msra.mxu0 0
        %2977 = vmatprep.subr.bf16.mxu0 0
        %2978 = vmatpush1.bf16.msra.mxu0 0
        %2979 = vmatprep.subr.bf16.mxu0 0
        %2980 = vmatpush1.bf16.msra.mxu0 0
        %2981 = vmatprep.subr.bf16.mxu0 0
        %2982 = vmatpush1.bf16.msra.mxu0 0
        %2983 = vmatprep.subr.bf16.mxu0 0
        %2984 = vmatpush1.bf16.msra.mxu0 0
        %2985 = vmatprep.subr.bf16.mxu0 0
        %2986 = vmatpush1.bf16.msra.mxu0 0
        %2987 = vmatprep.subr.bf16.mxu0 0
        %2988 = vmatpush1.bf16.msra.mxu0 0
        %2989 = vmatprep.subr.bf16.mxu0 0
        %2990 = vmatpush1.bf16.msra.mxu0 0
        %2991 = vmatprep.subr.bf16.mxu0 0
        %2992 = vmatpush1.bf16.msra.mxu0 0
        %2993 = vmatprep.subr.bf16.mxu0 0
        %2994 = vmatpush1.bf16.msra.mxu0 0
        %2995 = vmatprep.subr.bf16.mxu0 0
        %2996 = vmatpush1.bf16.msra.mxu0 0
        %2997 = vmatprep.subr.bf16.mxu0 0
        %2998 = vmatpush1.bf16.msra.mxu0 0
        %2999 = vmatprep.subr.bf16.mxu0 0
        %3000 = vmatpush1.bf16.msra.mxu0 0
        %3001 = vmatprep.mubr.bf16.mxu0 0
        %3002 = vmatmul.mubr.bf16.gmra.mrb[0].mxu0 %v2871
        %v3003 = vpop.f32.mrb[0].mxu0
        %v3004 = vadd.f32 0.0, %v3003
        %v3005 = vpop.f32.mrb[0].mxu0
        %v3006 = vpop.f32.mrb[0].mxu0
        %v3007 = vadd.f32 0.0, %v3006
        %v3008 = vpop.f32.mrb[0].mxu0
        %3009 = vdwg.mxu0
        %3010 = vst.msk [vmem:[#allocation3 + $0x10] sm:$0xff] %vm760, %v3004
        %3011 = vst.msk [vmem:[#allocation3 + $0x18] sm:$0xff] %vm760, %v3007
        %v3012 = vld [vmem:[#allocation3] sm:$0xff]
        %v3013 = vld [vmem:[#allocation3 + $0x8] sm:$0xff]
        %v3014 = vld [vmem:[#allocation3 + $0x10] sm:$0xff]
        %v3015 = vld [vmem:[#allocation3 + $0x18] sm:$0xff]
        %v3016 = vpack.c.bf16 %v3013, %v3012
        %v3017 = vpack.c.bf16 %v3015, %v3014
        %v3018 = vld [vmem:[#allocation11] sm:$0xf]
        %v3019 = vld [vmem:[#allocation11 + $0x4] sm:$0xf]
        %v3020 = vld [vmem:[#allocation11 + $0x8] sm:$0xf]
        %v3021 = vld [vmem:[#allocation11 + $0xc] sm:$0xf]
        %v3022 = vld [vmem:[#allocation12] sm:$0x1]
        %v3024 = vlaneseq
        %v3025 = vshrl.u32 %v3024, 7
        %v3026 = vsub.s32 0, %v3025
        %v3027 = vrot.slane %v3022, %v3026
        %v3033 = vunpack.c.l.b16 %v3018
        %v3034 = vunpack.c.l.b16 %v3019
        %v3035 = vunpack.c.l.b16 %v3020
        %v3036 = vunpack.c.l.b16 %v3021
        %v3037 = vpack.c.b16 %v3034, %v3033
        %v3038 = vpack.c.b16 %v3036, %v3035
        %v3042 = vsel %vm760, %v3016, 0
        %v3045 = vsel %vm760, %v3017, 0
        %3047 = vmatprep.subr.bf16.mxu0 0
        %3048 = vmatpush1.bf16.msra.mxu0 %v3037
        %3049 = vmatprep.subr.bf16.mxu0 0
        %3050 = vmatpush1.bf16.msra.mxu0 %v3038
        %3051 = vmatprep.subr.bf16.mxu0 0
        %3052 = vmatpush1.bf16.msra.mxu0 0
        %3053 = vmatprep.subr.bf16.mxu0 0
        %3054 = vmatpush1.bf16.msra.mxu0 0
        %3055 = vmatprep.subr.bf16.mxu0 0
        %3056 = vmatpush1.bf16.msra.mxu0 0
        %3057 = vmatprep.subr.bf16.mxu0 0
        %3058 = vmatpush1.bf16.msra.mxu0 0
        %3059 = vmatprep.subr.bf16.mxu0 0
        %3060 = vmatpush1.bf16.msra.mxu0 0
        %3061 = vmatprep.subr.bf16.mxu0 0
        %3062 = vmatpush1.bf16.msra.mxu0 0
        %3063 = vmatprep.subr.bf16.mxu0 0
        %3064 = vmatpush1.bf16.msra.mxu0 0
        %3065 = vmatprep.subr.bf16.mxu0 0
        %3066 = vmatpush1.bf16.msra.mxu0 0
        %3067 = vmatprep.subr.bf16.mxu0 0
        %3068 = vmatpush1.bf16.msra.mxu0 0
        %3069 = vmatprep.subr.bf16.mxu0 0
        %3070 = vmatpush1.bf16.msra.mxu0 0
        %3071 = vmatprep.subr.bf16.mxu0 0
        %3072 = vmatpush1.bf16.msra.mxu0 0
        %3073 = vmatprep.subr.bf16.mxu0 0
        %3074 = vmatpush1.bf16.msra.mxu0 0
        %3075 = vmatprep.subr.bf16.mxu0 0
        %3076 = vmatpush1.bf16.msra.mxu0 0
        %3077 = vmatprep.subr.bf16.mxu0 0
        %3078 = vmatpush1.bf16.msra.mxu0 0
        %3079 = vmatprep.mubr.bf16.mxu0 0
        %3080 = vmatmul.mubr.bf16.gmra.mrb[0].mxu0 %v3042
        %v3081 = vpop.f32.mrb[0].mxu0
        %v3082 = vadd.f32 %v3027, %v3081
        %v3083 = vpop.f32.mrb[0].mxu0
        %v3084 = vpop.f32.mrb[0].mxu0
        %v3085 = vadd.f32 %v3027, %v3084
        %v3086 = vpop.f32.mrb[0].mxu0
        %3087 = vmatprep.mubr.bf16.mxu0 0
        %3088 = vmatmul.mubr.bf16.gmra.mrb[0].mxu0 %v3045
        %v3089 = vpop.f32.mrb[0].mxu0
        %v3090 = vadd.f32 %v3027, %v3089
        %v3091 = vpop.f32.mrb[0].mxu0
        %v3092 = vpop.f32.mrb[0].mxu0
        %v3093 = vadd.f32 %v3027, %v3092
        %v3094 = vpop.f32.mrb[0].mxu0
        %3095 = vdwg.mxu0
        %v3096 = vadd.f32 %v731, %v3082
        %v3097 = vadd.f32 %v732, %v3085
        %v3098 = vadd.f32 %v733, %v3090
        %v3099 = vadd.f32 %v734, %v3093
        %v3100 = vpack.c.bf16 %v3097, %v3096
        %v3101 = vpack.c.bf16 %v3099, %v3098
        %s3102 = sld [smem:[#allocation18]]
        %v3103 = vstv %s3102
        %v3104 = vmul.f32 %v3096, %v3103
        %v3105 = vmul.f32 %v3097, %v3103
        %v3106 = vmul.f32 %v3098, %v3103
        %v3107 = vmul.f32 %v3099, %v3103
        %s3108 = sld [smem:[#allocation19]]
        %v3109 = vstv %s3108
        %v3110 = vadd.f32 %v3104, %v3109
        %v3111 = vadd.f32 %v3105, %v3109
        %v3112 = vadd.f32 %v3106, %v3109
        %v3113 = vadd.f32 %v3107, %v3109
        %v3114 = vld [vmem:[#allocation17] sm:$0xf]
        %v3115 = vld [vmem:[#allocation17 + $0x4] sm:$0xf]
        %v3118 = vunpack.c.l.b16 %v3114
        %v3119 = vunpack.c.l.b16 %v3115
        %v3120 = vpack.c.b16 %v3119, %v3118
        %v3122 = vsel %vm819, %v3120, 0
        %3124 = vmatprep.subr.bf16.mxu0 0
        %3125 = vmatpush1.bf16.msra.mxu0 %v3100
        %3126 = vmatprep.subr.bf16.mxu0 0
        %3127 = vmatpush1.bf16.msra.mxu0 0
        %3128 = vmatprep.subr.bf16.mxu0 0
        %3129 = vmatpush1.bf16.msra.mxu0 0
        %3130 = vmatprep.subr.bf16.mxu0 0
        %3131 = vmatpush1.bf16.msra.mxu0 0
        %3132 = vmatprep.subr.bf16.mxu0 0
        %3133 = vmatpush1.bf16.msra.mxu0 0
        %3134 = vmatprep.subr.bf16.mxu0 0
        %3135 = vmatpush1.bf16.msra.mxu0 0
        %3136 = vmatprep.subr.bf16.mxu0 0
        %3137 = vmatpush1.bf16.msra.mxu0 0
        %3138 = vmatprep.subr.bf16.mxu0 0
        %3139 = vmatpush1.bf16.msra.mxu0 0
        %3140 = vmatprep.subr.bf16.mxu0 0
        %3141 = vmatpush1.bf16.msra.mxu0 0
        %3142 = vmatprep.subr.bf16.mxu0 0
        %3143 = vmatpush1.bf16.msra.mxu0 0
        %3144 = vmatprep.subr.bf16.mxu0 0
        %3145 = vmatpush1.bf16.msra.mxu0 0
        %3146 = vmatprep.subr.bf16.mxu0 0
        %3147 = vmatpush1.bf16.msra.mxu0 0
        %3148 = vmatprep.subr.bf16.mxu0 0
        %3149 = vmatpush1.bf16.msra.mxu0 0
        %3150 = vmatprep.subr.bf16.mxu0 0
        %3151 = vmatpush1.bf16.msra.mxu0 0
        %3152 = vmatprep.subr.bf16.mxu0 0
        %3153 = vmatpush1.bf16.msra.mxu0 0
        %3154 = vmatprep.subr.bf16.mxu0 0
        %3155 = vmatpush1.bf16.msra.mxu0 0
        %3156 = vmatprep.mubr.bf16.mxu0 0
        %3157 = vmatmul.mubr.bf16.gmra.mrb[0].mxu0 %v3122
        %v3158 = vpop.f32.mrb[0].mxu0
        %v3159 = vadd.f32 0.0, %v3158
        %v3160 = vpop.f32.mrb[0].mxu0
        %v3161 = vpop.f32.mrb[0].mxu0
        %v3162 = vadd.f32 0.0, %v3161
        %v3163 = vpop.f32.mrb[0].mxu0
        %3164 = vdwg.mxu0
        %3165 = vst.msk [vmem:[#allocation3] sm:$0xff] %vm760, %v3159
        %3166 = vst.msk [vmem:[#allocation3 + $0x8] sm:$0xff] %vm760, %v3162
        %v3167 = vld [vmem:[#allocation17] sm:$0xf]
        %v3168 = vld [vmem:[#allocation17 + $0x4] sm:$0xf]
        %v3171 = vunpack.c.l.b16 %v3167
        %v3172 = vunpack.c.l.b16 %v3168
        %v3173 = vpack.c.b16 %v3172, %v3171
        %v3175 = vsel %vm819, %v3173, 0
        %3177 = vmatprep.subr.bf16.mxu0 0
        %3178 = vmatpush1.bf16.msra.mxu0 %v3101
        %3179 = vmatprep.subr.bf16.mxu0 0
        %3180 = vmatpush1.bf16.msra.mxu0 0
        %3181 = vmatprep.subr.bf16.mxu0 0
        %3182 = vmatpush1.bf16.msra.mxu0 0
        %3183 = vmatprep.subr.bf16.mxu0 0
        %3184 = vmatpush1.bf16.msra.mxu0 0
        %3185 = vmatprep.subr.bf16.mxu0 0
        %3186 = vmatpush1.bf16.msra.mxu0 0
        %3187 = vmatprep.subr.bf16.mxu0 0
        %3188 = vmatpush1.bf16.msra.mxu0 0
        %3189 = vmatprep.subr.bf16.mxu0 0
        %3190 = vmatpush1.bf16.msra.mxu0 0
        %3191 = vmatprep.subr.bf16.mxu0 0
        %3192 = vmatpush1.bf16.msra.mxu0 0
        %3193 = vmatprep.subr.bf16.mxu0 0
        %3194 = vmatpush1.bf16.msra.mxu0 0
        %3195 = vmatprep.subr.bf16.mxu0 0
        %3196 = vmatpush1.bf16.msra.mxu0 0
        %3197 = vmatprep.subr.bf16.mxu0 0
        %3198 = vmatpush1.bf16.msra.mxu0 0
        %3199 = vmatprep.subr.bf16.mxu0 0
        %3200 = vmatpush1.bf16.msra.mxu0 0
        %3201 = vmatprep.subr.bf16.mxu0 0
        %3202 = vmatpush1.bf16.msra.mxu0 0
        %3203 = vmatprep.subr.bf16.mxu0 0
        %3204 = vmatpush1.bf16.msra.mxu0 0
        %3205 = vmatprep.subr.bf16.mxu0 0
        %3206 = vmatpush1.bf16.msra.mxu0 0
        %3207 = vmatprep.subr.bf16.mxu0 0
        %3208 = vmatpush1.bf16.msra.mxu0 0
        %3209 = vmatprep.mubr.bf16.mxu0 0
        %3210 = vmatmul.mubr.bf16.gmra.mrb[0].mxu0 %v3175
        %v3211 = vpop.f32.mrb[0].mxu0
        %v3212 = vadd.f32 0.0, %v3211
        %v3213 = vpop.f32.mrb[0].mxu0
        %v3214 = vpop.f32.mrb[0].mxu0
        %v3215 = vadd.f32 0.0, %v3214
        %v3216 = vpop.f32.mrb[0].mxu0
        %3217 = vdwg.mxu0
        %3218 = vst.msk [vmem:[#allocation3 + $0x10] sm:$0xff] %vm760, %v3212
        %3219 = vst.msk [vmem:[#allocation3 + $0x18] sm:$0xff] %vm760, %v3215
        %v3220 = vld [vmem:[#allocation3] sm:$0xff]
        %v3221 = vld [vmem:[#allocation3 + $0x8] sm:$0xff]
        %v3222 = vld [vmem:[#allocation3 + $0x10] sm:$0xff]
        %v3223 = vld [vmem:[#allocation3 + $0x18] sm:$0xff]
        %s3224 = sld [smem:[#allocation18 + $0x1]]
        %v3225 = vstv %s3224
        %v3226 = vmul.f32 %v3096, %v3225
        %v3227 = vmul.f32 %v3097, %v3225
        %v3228 = vmul.f32 %v3098, %v3225
        %v3229 = vmul.f32 %v3099, %v3225
        %s3230 = sld [smem:[#allocation19 + $0x1]]
        %v3231 = vstv %s3230
        %v3232 = vadd.f32 %v3226, %v3231
        %v3233 = vadd.f32 %v3227, %v3231
        %v3234 = vadd.f32 %v3228, %v3231
        %v3235 = vadd.f32 %v3229, %v3231
        %s3236 = scalar_lea.vmem [#allocation17], 8
        %v3237 = vld [vmem:[%s3236] sm:$0xf]
        %v3238 = vld [vmem:[%s3236 + $0x4] sm:$0xf]
        %v3241 = vunpack.c.l.b16 %v3237
        %v3242 = vunpack.c.l.b16 %v3238
        %v3243 = vpack.c.b16 %v3242, %v3241
        %v3245 = vsel %vm819, %v3243, 0
        %3247 = vmatprep.subr.bf16.mxu0 0
        %3248 = vmatpush1.bf16.msra.mxu0 %v3100
        %3249 = vmatprep.subr.bf16.mxu0 0
        %3250 = vmatpush1.bf16.msra.mxu0 0
        %3251 = vmatprep.subr.bf16.mxu0 0
        %3252 = vmatpush1.bf16.msra.mxu0 0
        %3253 = vmatprep.subr.bf16.mxu0 0
        %3254 = vmatpush1.bf16.msra.mxu0 0
        %3255 = vmatprep.subr.bf16.mxu0 0
        %3256 = vmatpush1.bf16.msra.mxu0 0
        %3257 = vmatprep.subr.bf16.mxu0 0
        %3258 = vmatpush1.bf16.msra.mxu0 0
        %3259 = vmatprep.subr.bf16.mxu0 0
        %3260 = vmatpush1.bf16.msra.mxu0 0
        %3261 = vmatprep.subr.bf16.mxu0 0
        %3262 = vmatpush1.bf16.msra.mxu0 0
        %3263 = vmatprep.subr.bf16.mxu0 0
        %3264 = vmatpush1.bf16.msra.mxu0 0
        %3265 = vmatprep.subr.bf16.mxu0 0
        %3266 = vmatpush1.bf16.msra.mxu0 0
        %3267 = vmatprep.subr.bf16.mxu0 0
        %3268 = vmatpush1.bf16.msra.mxu0 0
        %3269 = vmatprep.subr.bf16.mxu0 0
        %3270 = vmatpush1.bf16.msra.mxu0 0
        %3271 = vmatprep.subr.bf16.mxu0 0
        %3272 = vmatpush1.bf16.msra.mxu0 0
        %3273 = vmatprep.subr.bf16.mxu0 0
        %3274 = vmatpush1.bf16.msra.mxu0 0
        %3275 = vmatprep.subr.bf16.mxu0 0
        %3276 = vmatpush1.bf16.msra.mxu0 0
        %3277 = vmatprep.subr.bf16.mxu0 0
        %3278 = vmatpush1.bf16.msra.mxu0 0
        %3279 = vmatprep.mubr.bf16.mxu0 0
        %3280 = vmatmul.mubr.bf16.gmra.mrb[0].mxu0 %v3245
        %v3281 = vpop.f32.mrb[0].mxu0
        %v3282 = vadd.f32 0.0, %v3281
        %v3283 = vpop.f32.mrb[0].mxu0
        %v3284 = vpop.f32.mrb[0].mxu0
        %v3285 = vadd.f32 0.0, %v3284
        %v3286 = vpop.f32.mrb[0].mxu0
        %3287 = vdwg.mxu0
        %3288 = vst.msk [vmem:[#allocation3] sm:$0xff] %vm760, %v3282
        %3289 = vst.msk [vmem:[#allocation3 + $0x8] sm:$0xff] %vm760, %v3285
        %v3290 = vld [vmem:[%s3236] sm:$0xf]
        %v3291 = vld [vmem:[%s3236 + $0x4] sm:$0xf]
        %v3294 = vunpack.c.l.b16 %v3290
        %v3295 = vunpack.c.l.b16 %v3291
        %v3296 = vpack.c.b16 %v3295, %v3294
        %v3298 = vsel %vm819, %v3296, 0
        %3300 = vmatprep.subr.bf16.mxu0 0
        %3301 = vmatpush1.bf16.msra.mxu0 %v3101
        %3302 = vmatprep.subr.bf16.mxu0 0
        %3303 = vmatpush1.bf16.msra.mxu0 0
        %3304 = vmatprep.subr.bf16.mxu0 0
        %3305 = vmatpush1.bf16.msra.mxu0 0
        %3306 = vmatprep.subr.bf16.mxu0 0
        %3307 = vmatpush1.bf16.msra.mxu0 0
        %3308 = vmatprep.subr.bf16.mxu0 0
        %3309 = vmatpush1.bf16.msra.mxu0 0
        %3310 = vmatprep.subr.bf16.mxu0 0
        %3311 = vmatpush1.bf16.msra.mxu0 0
        %3312 = vmatprep.subr.bf16.mxu0 0
        %3313 = vmatpush1.bf16.msra.mxu0 0
        %3314 = vmatprep.subr.bf16.mxu0 0
        %3315 = vmatpush1.bf16.msra.mxu0 0
        %3316 = vmatprep.subr.bf16.mxu0 0
        %3317 = vmatpush1.bf16.msra.mxu0 0
        %3318 = vmatprep.subr.bf16.mxu0 0
        %3319 = vmatpush1.bf16.msra.mxu0 0
        %3320 = vmatprep.subr.bf16.mxu0 0
        %3321 = vmatpush1.bf16.msra.mxu0 0
        %3322 = vmatprep.subr.bf16.mxu0 0
        %3323 = vmatpush1.bf16.msra.mxu0 0
        %3324 = vmatprep.subr.bf16.mxu0 0
        %3325 = vmatpush1.bf16.msra.mxu0 0
        %3326 = vmatprep.subr.bf16.mxu0 0
        %3327 = vmatpush1.bf16.msra.mxu0 0
        %3328 = vmatprep.subr.bf16.mxu0 0
        %3329 = vmatpush1.bf16.msra.mxu0 0
        %3330 = vmatprep.subr.bf16.mxu0 0
        %3331 = vmatpush1.bf16.msra.mxu0 0
        %3332 = vmatprep.mubr.bf16.mxu0 0
        %3333 = vmatmul.mubr.bf16.gmra.mrb[0].mxu0 %v3298
        %v3334 = vpop.f32.mrb[0].mxu0
        %v3335 = vadd.f32 0.0, %v3334
        %v3336 = vpop.f32.mrb[0].mxu0
        %v3337 = vpop.f32.mrb[0].mxu0
        %v3338 = vadd.f32 0.0, %v3337
        %v3339 = vpop.f32.mrb[0].mxu0
        %3340 = vdwg.mxu0
        %3341 = vst.msk [vmem:[#allocation3 + $0x10] sm:$0xff] %vm760, %v3335
        %3342 = vst.msk [vmem:[#allocation3 + $0x18] sm:$0xff] %vm760, %v3338
        %v3343 = vld [vmem:[#allocation3] sm:$0xff]
        %v3344 = vld [vmem:[#allocation3 + $0x8] sm:$0xff]
        %v3345 = vld [vmem:[#allocation3 + $0x10] sm:$0xff]
        %v3346 = vld [vmem:[#allocation3 + $0x18] sm:$0xff]
        %v3347 = vmax.f32 %v3110, %v3232
        %v3348 = vmax.f32 %v3111, %v3233
        %v3349 = vmax.f32 %v3112, %v3234
        %v3350 = vmax.f32 %v3113, %v3235
        %v3351 = vsub.f32 %v3110, %v3347
        %v3352 = vsub.f32 %v3111, %v3348
        %v3353 = vsub.f32 %v3112, %v3349
        %v3354 = vsub.f32 %v3113, %v3350
        %v3355 = vmul.f32 %v3351, 1.442695
        %v3356 = vpow.pop %v3355
        %v3357 = vmul.f32 %v3352, 1.442695
        %v3358 = vpow.pop %v3357
        %v3359 = vmul.f32 %v3353, 1.442695
        %v3360 = vpow.pop %v3359
        %v3361 = vmul.f32 %v3354, 1.442695
        %v3362 = vpow.pop %v3361
        %v3363 = vsub.f32 %v3232, %v3347
        %v3364 = vsub.f32 %v3233, %v3348
        %v3365 = vsub.f32 %v3234, %v3349
        %v3366 = vsub.f32 %v3235, %v3350
        %v3367 = vmul.f32 %v3363, 1.442695
        %v3368 = vpow.pop %v3367
        %v3369 = vmul.f32 %v3364, 1.442695
        %v3370 = vpow.pop %v3369
        %v3371 = vmul.f32 %v3365, 1.442695
        %v3372 = vpow.pop %v3371
        %v3373 = vmul.f32 %v3366, 1.442695
        %v3374 = vpow.pop %v3373
        %v3375 = vadd.f32 %v3356, %v3368
        %v3376 = vadd.f32 %v3358, %v3370
        %v3377 = vadd.f32 %v3360, %v3372
        %v3378 = vadd.f32 %v3362, %v3374
        %v3379 = vmul.f32 %v3356, %v3220
        %v3380 = vmul.f32 %v3358, %v3221
        %v3381 = vmul.f32 %v3360, %v3222
        %v3382 = vmul.f32 %v3362, %v3223
        %v3383 = vmul.f32 %v3368, %v3343
        %v3384 = vmul.f32 %v3370, %v3344
        %v3385 = vmul.f32 %v3372, %v3345
        %v3386 = vmul.f32 %v3374, %v3346
        %v3387 = vadd.f32 %v3379, %v3383
        %v3388 = vadd.f32 %v3380, %v3384
        %v3389 = vadd.f32 %v3381, %v3385
        %v3390 = vadd.f32 %v3382, %v3386
        %v3391 = vrcp.pop %v3375
        %v3392 = vmul.f32 %v3387, %v3391
        %v3393 = vrcp.pop %v3376
        %v3394 = vmul.f32 %v3388, %v3393
        %v3395 = vrcp.pop %v3377
        %v3396 = vmul.f32 %v3389, %v3395
        %v3397 = vrcp.pop %v3378
        %v3398 = vmul.f32 %v3390, %v3397
        %v3399 = vsub.f32 %v3096, %v3392
        %v3400 = vsub.f32 %v3097, %v3394
        %v3401 = vsub.f32 %v3098, %v3396
        %v3402 = vsub.f32 %v3099, %v3398
        %v3403 = vpack.c.bf16 %v3400, %v3399
        %v3404 = vpack.c.bf16 %v3402, %v3401
        %v3405 = vld [vmem:[%s14] sm:$0xf]
        %v3406 = vld [vmem:[%s14 + $0x4] sm:$0xf]
        %v3407 = vld [vmem:[%s14 + $0x8] sm:$0xf]
        %v3408 = vld [vmem:[%s14 + $0xc] sm:$0xf]
        %v3413 = vunpack.c.l.b16 %v3405
        %v3414 = vunpack.c.l.b16 %v3406
        %v3415 = vunpack.c.l.b16 %v3407
        %v3416 = vunpack.c.l.b16 %v3408
        %v3417 = vpack.c.b16 %v3414, %v3413
        %v3418 = vpack.c.b16 %v3416, %v3415
        %v3422 = vsel %vm760, %v3403, 0
        %v3425 = vsel %vm760, %v3404, 0
        %3427 = vmatprep.subr.bf16.mxu0 0
        %3428 = vmatpush1.bf16.msra.mxu0 %v3417
        %3429 = vmatprep.subr.bf16.mxu0 0
        %3430 = vmatpush1.bf16.msra.mxu0 %v3418
        %3431 = vmatprep.subr.bf16.mxu0 0
        %3432 = vmatpush1.bf16.msra.mxu0 0
        %3433 = vmatprep.subr.bf16.mxu0 0
        %3434 = vmatpush1.bf16.msra.mxu0 0
        %3435 = vmatprep.subr.bf16.mxu0 0
        %3436 = vmatpush1.bf16.msra.mxu0 0
        %3437 = vmatprep.subr.bf16.mxu0 0
        %3438 = vmatpush1.bf16.msra.mxu0 0
        %3439 = vmatprep.subr.bf16.mxu0 0
        %3440 = vmatpush1.bf16.msra.mxu0 0
        %3441 = vmatprep.subr.bf16.mxu0 0
        %3442 = vmatpush1.bf16.msra.mxu0 0
        %3443 = vmatprep.subr.bf16.mxu0 0
        %3444 = vmatpush1.bf16.msra.mxu0 0
        %3445 = vmatprep.subr.bf16.mxu0 0
        %3446 = vmatpush1.bf16.msra.mxu0 0
        %3447 = vmatprep.subr.bf16.mxu0 0
        %3448 = vmatpush1.bf16.msra.mxu0 0
        %3449 = vmatprep.subr.bf16.mxu0 0
        %3450 = vmatpush1.bf16.msra.mxu0 0
        %3451 = vmatprep.subr.bf16.mxu0 0
        %3452 = vmatpush1.bf16.msra.mxu0 0
        %3453 = vmatprep.subr.bf16.mxu0 0
        %3454 = vmatpush1.bf16.msra.mxu0 0
        %3455 = vmatprep.subr.bf16.mxu0 0
        %3456 = vmatpush1.bf16.msra.mxu0 0
        %3457 = vmatprep.subr.bf16.mxu0 0
        %3458 = vmatpush1.bf16.msra.mxu0 0
        %3459 = vmatprep.mubr.bf16.mxu0 0
        %3460 = vmatmul.mubr.bf16.gmra.mrb[0].mxu0 %v3422
        %v3461 = vpop.f32.mrb[0].mxu0
        %v3462 = vadd.f32 0.0, %v3461
        %v3463 = vpop.f32.mrb[0].mxu0
        %v3464 = vpop.f32.mrb[0].mxu0
        %v3465 = vadd.f32 0.0, %v3464
        %v3466 = vpop.f32.mrb[0].mxu0
        %3467 = vmatprep.mubr.bf16.mxu0 0
        %3468 = vmatmul.mubr.bf16.gmra.mrb[0].mxu0 %v3425
        %v3469 = vpop.f32.mrb[0].mxu0
        %v3470 = vadd.f32 0.0, %v3469
        %v3471 = vpop.f32.mrb[0].mxu0
        %v3472 = vpop.f32.mrb[0].mxu0
        %v3473 = vadd.f32 0.0, %v3472
        %v3474 = vpop.f32.mrb[0].mxu0
        %3475 = vdwg.mxu0
        %v3476 = vmax.f32 %v3462, 0.0
        %v3477 = vmax.f32 %v3465, 0.0
        %v3478 = vmax.f32 %v3470, 0.0
        %v3479 = vmax.f32 %v3473, 0.0
        %v3480 = vpack.c.bf16 %v3477, %v3476
        %v3481 = vpack.c.bf16 %v3479, %v3478
        %v3482 = vld [vmem:[%s15] sm:$0xf]
        %v3483 = vld [vmem:[%s15 + $0x4] sm:$0xf]
        %v3484 = vld [vmem:[%s15 + $0x8] sm:$0xf]
        %v3485 = vld [vmem:[%s15 + $0xc] sm:$0xf]
        %v3486 = vld [vmem:[%s15 + $0x10] sm:$0xf]
        %v3487 = vld [vmem:[%s15 + $0x14] sm:$0xf]
        %v3488 = vld [vmem:[%s15 + $0x18] sm:$0xf]
        %v3489 = vld [vmem:[%s15 + $0x1c] sm:$0xf]
        %v3498 = vunpack.c.l.b16 %v3482
        %v3499 = vunpack.c.l.b16 %v3483
        %v3500 = vunpack.c.l.b16 %v3484
        %v3501 = vunpack.c.l.b16 %v3485
        %v3502 = vunpack.c.l.b16 %v3486
        %v3503 = vunpack.c.l.b16 %v3487
        %v3504 = vunpack.c.l.b16 %v3488
        %v3505 = vunpack.c.l.b16 %v3489
        %v3506 = vpack.c.b16 %v3499, %v3498
        %v3507 = vpack.c.b16 %v3501, %v3500
        %v3508 = vpack.c.b16 %v3503, %v3502
        %v3509 = vpack.c.b16 %v3505, %v3504
        %vm3514 = vcmask 523264
        %v3516 = vsel %vm3514, %v3480, 0
        %v3519 = vsel %vm3514, %v3481, 0
        %3521 = vmatprep.subr.bf16.mxu0 0
        %3522 = vmatpush1.bf16.msra.mxu0 %v3506
        %3523 = vmatprep.subr.bf16.mxu0 0
        %3524 = vmatpush1.bf16.msra.mxu0 %v3507
        %3525 = vmatprep.subr.bf16.mxu0 0
        %3526 = vmatpush1.bf16.msra.mxu0 %v3508
        %3527 = vmatprep.subr.bf16.mxu0 0
        %3528 = vmatpush1.bf16.msra.mxu0 %v3509
        %3529 = vmatprep.subr.bf16.mxu0 0
        %3530 = vmatpush1.bf16.msra.mxu0 0
        %3531 = vmatprep.subr.bf16.mxu0 0
        %3532 = vmatpush1.bf16.msra.mxu0 0
        %3533 = vmatprep.subr.bf16.mxu0 0
        %3534 = vmatpush1.bf16.msra.mxu0 0
        %3535 = vmatprep.subr.bf16.mxu0 0
        %3536 = vmatpush1.bf16.msra.mxu0 0
        %3537 = vmatprep.subr.bf16.mxu0 0
        %3538 = vmatpush1.bf16.msra.mxu0 0
        %3539 = vmatprep.subr.bf16.mxu0 0
        %3540 = vmatpush1.bf16.msra.mxu0 0
        %3541 = vmatprep.subr.bf16.mxu0 0
        %3542 = vmatpush1.bf16.msra.mxu0 0
        %3543 = vmatprep.subr.bf16.mxu0 0
        %3544 = vmatpush1.bf16.msra.mxu0 0
        %3545 = vmatprep.subr.bf16.mxu0 0
        %3546 = vmatpush1.bf16.msra.mxu0 0
        %3547 = vmatprep.subr.bf16.mxu0 0
        %3548 = vmatpush1.bf16.msra.mxu0 0
        %3549 = vmatprep.subr.bf16.mxu0 0
        %3550 = vmatpush1.bf16.msra.mxu0 0
        %3551 = vmatprep.subr.bf16.mxu0 0
        %3552 = vmatpush1.bf16.msra.mxu0 0
        %3553 = vmatprep.mubr.bf16.mxu0 0
        %3554 = vmatmul.mubr.bf16.gmra.mrb[0].mxu0 %v3516
        %v3555 = vpop.f32.mrb[0].mxu0
        %v3556 = vadd.f32 0.0, %v3555
        %v3557 = vpop.f32.mrb[0].mxu0
        %v3558 = vpop.f32.mrb[0].mxu0
        %v3559 = vadd.f32 0.0, %v3558
        %v3560 = vpop.f32.mrb[0].mxu0
        %3561 = vmatprep.mubr.bf16.mxu0 0
        %3562 = vmatmul.mubr.bf16.gmra.mrb[0].mxu0 %v3519
        %v3563 = vpop.f32.mrb[0].mxu0
        %v3564 = vadd.f32 0.0, %v3563
        %v3565 = vpop.f32.mrb[0].mxu0
        %v3566 = vpop.f32.mrb[0].mxu0
        %v3567 = vadd.f32 0.0, %v3566
        %v3568 = vpop.f32.mrb[0].mxu0
        %3569 = vdwg.mxu0
        %v3570 = vadd.f32 %v3399, %v3556
        %v3571 = vadd.f32 %v3400, %v3559
        %v3572 = vadd.f32 %v3401, %v3564
        %v3573 = vadd.f32 %v3402, %v3567
        %v3574 = vpack.c.bf16 %v3571, %v3570
        %v3575 = vpack.c.bf16 %v3573, %v3572
        %s3576 = sld [smem:[#allocation20]]
        %v3577 = vstv %s3576
        %v3578 = vmul.f32 %v3570, %v3577
        %v3579 = vmul.f32 %v3571, %v3577
        %v3580 = vmul.f32 %v3572, %v3577
        %v3581 = vmul.f32 %v3573, %v3577
        %s3582 = sld [smem:[#allocation22]]
        %v3583 = vstv %s3582
        %v3584 = vadd.f32 %v3578, %v3583
        %v3585 = vadd.f32 %v3579, %v3583
        %v3586 = vadd.f32 %v3580, %v3583
        %v3587 = vadd.f32 %v3581, %v3583
        %v3588 = vld [vmem:[#allocation17] sm:$0xf]
        %v3589 = vld [vmem:[#allocation17 + $0x4] sm:$0xf]
        %v3592 = vunpack.c.l.b16 %v3588
        %v3593 = vunpack.c.l.b16 %v3589
        %v3594 = vpack.c.b16 %v3593, %v3592
        %v3596 = vsel %vm819, %v3594, 0
        %3598 = vmatprep.subr.bf16.mxu0 0
        %3599 = vmatpush1.bf16.msra.mxu0 %v3574
        %3600 = vmatprep.subr.bf16.mxu0 0
        %3601 = vmatpush1.bf16.msra.mxu0 0
        %3602 = vmatprep.subr.bf16.mxu0 0
        %3603 = vmatpush1.bf16.msra.mxu0 0
        %3604 = vmatprep.subr.bf16.mxu0 0
        %3605 = vmatpush1.bf16.msra.mxu0 0
        %3606 = vmatprep.subr.bf16.mxu0 0
        %3607 = vmatpush1.bf16.msra.mxu0 0
        %3608 = vmatprep.subr.bf16.mxu0 0
        %3609 = vmatpush1.bf16.msra.mxu0 0
        %3610 = vmatprep.subr.bf16.mxu0 0
        %3611 = vmatpush1.bf16.msra.mxu0 0
        %3612 = vmatprep.subr.bf16.mxu0 0
        %3613 = vmatpush1.bf16.msra.mxu0 0
        %3614 = vmatprep.subr.bf16.mxu0 0
        %3615 = vmatpush1.bf16.msra.mxu0 0
        %3616 = vmatprep.subr.bf16.mxu0 0
        %3617 = vmatpush1.bf16.msra.mxu0 0
        %3618 = vmatprep.subr.bf16.mxu0 0
        %3619 = vmatpush1.bf16.msra.mxu0 0
        %3620 = vmatprep.subr.bf16.mxu0 0
        %3621 = vmatpush1.bf16.msra.mxu0 0
        %3622 = vmatprep.subr.bf16.mxu0 0
        %3623 = vmatpush1.bf16.msra.mxu0 0
        %3624 = vmatprep.subr.bf16.mxu0 0
        %3625 = vmatpush1.bf16.msra.mxu0 0
        %3626 = vmatprep.subr.bf16.mxu0 0
        %3627 = vmatpush1.bf16.msra.mxu0 0
        %3628 = vmatprep.subr.bf16.mxu0 0
        %3629 = vmatpush1.bf16.msra.mxu0 0
        %3630 = vmatprep.mubr.bf16.mxu0 0
        %3631 = vmatmul.mubr.bf16.gmra.mrb[0].mxu0 %v3596
        %v3632 = vpop.f32.mrb[0].mxu0
        %v3633 = vadd.f32 0.0, %v3632
        %v3634 = vpop.f32.mrb[0].mxu0
        %v3635 = vpop.f32.mrb[0].mxu0
        %v3636 = vadd.f32 0.0, %v3635
        %v3637 = vpop.f32.mrb[0].mxu0
        %3638 = vdwg.mxu0
        %3639 = vst.msk [vmem:[#allocation3] sm:$0xff] %vm760, %v3633
        %3640 = vst.msk [vmem:[#allocation3 + $0x8] sm:$0xff] %vm760, %v3636
        %v3641 = vld [vmem:[#allocation17] sm:$0xf]
        %v3642 = vld [vmem:[#allocation17 + $0x4] sm:$0xf]
        %v3645 = vunpack.c.l.b16 %v3641
        %v3646 = vunpack.c.l.b16 %v3642
        %v3647 = vpack.c.b16 %v3646, %v3645
        %v3649 = vsel %vm819, %v3647, 0
        %3651 = vmatprep.subr.bf16.mxu0 0
        %3652 = vmatpush1.bf16.msra.mxu0 %v3575
        %3653 = vmatprep.subr.bf16.mxu0 0
        %3654 = vmatpush1.bf16.msra.mxu0 0
        %3655 = vmatprep.subr.bf16.mxu0 0
        %3656 = vmatpush1.bf16.msra.mxu0 0
        %3657 = vmatprep.subr.bf16.mxu0 0
        %3658 = vmatpush1.bf16.msra.mxu0 0
        %3659 = vmatprep.subr.bf16.mxu0 0
        %3660 = vmatpush1.bf16.msra.mxu0 0
        %3661 = vmatprep.subr.bf16.mxu0 0
        %3662 = vmatpush1.bf16.msra.mxu0 0
        %3663 = vmatprep.subr.bf16.mxu0 0
        %3664 = vmatpush1.bf16.msra.mxu0 0
        %3665 = vmatprep.subr.bf16.mxu0 0
        %3666 = vmatpush1.bf16.msra.mxu0 0
        %3667 = vmatprep.subr.bf16.mxu0 0
        %3668 = vmatpush1.bf16.msra.mxu0 0
        %3669 = vmatprep.subr.bf16.mxu0 0
        %3670 = vmatpush1.bf16.msra.mxu0 0
        %3671 = vmatprep.subr.bf16.mxu0 0
        %3672 = vmatpush1.bf16.msra.mxu0 0
        %3673 = vmatprep.subr.bf16.mxu0 0
        %3674 = vmatpush1.bf16.msra.mxu0 0
        %3675 = vmatprep.subr.bf16.mxu0 0
        %3676 = vmatpush1.bf16.msra.mxu0 0
        %3677 = vmatprep.subr.bf16.mxu0 0
        %3678 = vmatpush1.bf16.msra.mxu0 0
        %3679 = vmatprep.subr.bf16.mxu0 0
        %3680 = vmatpush1.bf16.msra.mxu0 0
        %3681 = vmatprep.subr.bf16.mxu0 0
        %3682 = vmatpush1.bf16.msra.mxu0 0
        %3683 = vmatprep.mubr.bf16.mxu0 0
        %3684 = vmatmul.mubr.bf16.gmra.mrb[0].mxu0 %v3649
        %v3685 = vpop.f32.mrb[0].mxu0
        %v3686 = vadd.f32 0.0, %v3685
        %v3687 = vpop.f32.mrb[0].mxu0
        %v3688 = vpop.f32.mrb[0].mxu0
        %v3689 = vadd.f32 0.0, %v3688
        %v3690 = vpop.f32.mrb[0].mxu0
        %3691 = vdwg.mxu0
        %3692 = vst.msk [vmem:[#allocation3 + $0x10] sm:$0xff] %vm760, %v3686
        %3693 = vst.msk [vmem:[#allocation3 + $0x18] sm:$0xff] %vm760, %v3689
        %v3694 = vld [vmem:[#allocation3] sm:$0xff]
        %v3695 = vld [vmem:[#allocation3 + $0x8] sm:$0xff]
        %v3696 = vld [vmem:[#allocation3 + $0x10] sm:$0xff]
        %v3697 = vld [vmem:[#allocation3 + $0x18] sm:$0xff]
        %s3698 = sld [smem:[#allocation20 + $0x1]]
        %v3699 = vstv %s3698
        %v3700 = vmul.f32 %v3570, %v3699
        %v3701 = vmul.f32 %v3571, %v3699
        %v3702 = vmul.f32 %v3572, %v3699
        %v3703 = vmul.f32 %v3573, %v3699
        %s3704 = sld [smem:[#allocation22 + $0x1]]
        %v3705 = vstv %s3704
        %v3706 = vadd.f32 %v3700, %v3705
        %v3707 = vadd.f32 %v3701, %v3705
        %v3708 = vadd.f32 %v3702, %v3705
        %v3709 = vadd.f32 %v3703, %v3705
        %v3710 = vld [vmem:[%s3236] sm:$0xf]
        %v3711 = vld [vmem:[%s3236 + $0x4] sm:$0xf]
        %v3714 = vunpack.c.l.b16 %v3710
        %v3715 = vunpack.c.l.b16 %v3711
        %v3716 = vpack.c.b16 %v3715, %v3714
        %v3718 = vsel %vm819, %v3716, 0
        %3720 = vmatprep.subr.bf16.mxu0 0
        %3721 = vmatpush1.bf16.msra.mxu0 %v3574
        %3722 = vmatprep.subr.bf16.mxu0 0
        %3723 = vmatpush1.bf16.msra.mxu0 0
        %3724 = vmatprep.subr.bf16.mxu0 0
        %3725 = vmatpush1.bf16.msra.mxu0 0
        %3726 = vmatprep.subr.bf16.mxu0 0
        %3727 = vmatpush1.bf16.msra.mxu0 0
        %3728 = vmatprep.subr.bf16.mxu0 0
        %3729 = vmatpush1.bf16.msra.mxu0 0
        %3730 = vmatprep.subr.bf16.mxu0 0
        %3731 = vmatpush1.bf16.msra.mxu0 0
        %3732 = vmatprep.subr.bf16.mxu0 0
        %3733 = vmatpush1.bf16.msra.mxu0 0
        %3734 = vmatprep.subr.bf16.mxu0 0
        %3735 = vmatpush1.bf16.msra.mxu0 0
        %3736 = vmatprep.subr.bf16.mxu0 0
        %3737 = vmatpush1.bf16.msra.mxu0 0
        %3738 = vmatprep.subr.bf16.mxu0 0
        %3739 = vmatpush1.bf16.msra.mxu0 0
        %3740 = vmatprep.subr.bf16.mxu0 0
        %3741 = vmatpush1.bf16.msra.mxu0 0
        %3742 = vmatprep.subr.bf16.mxu0 0
        %3743 = vmatpush1.bf16.msra.mxu0 0
        %3744 = vmatprep.subr.bf16.mxu0 0
        %3745 = vmatpush1.bf16.msra.mxu0 0
        %3746 = vmatprep.subr.bf16.mxu0 0
        %3747 = vmatpush1.bf16.msra.mxu0 0
        %3748 = vmatprep.subr.bf16.mxu0 0
        %3749 = vmatpush1.bf16.msra.mxu0 0
        %3750 = vmatprep.subr.bf16.mxu0 0
        %3751 = vmatpush1.bf16.msra.mxu0 0
        %3752 = vmatprep.mubr.bf16.mxu0 0
        %3753 = vmatmul.mubr.bf16.gmra.mrb[0].mxu0 %v3718
        %v3754 = vpop.f32.mrb[0].mxu0
        %v3755 = vadd.f32 0.0, %v3754
        %v3756 = vpop.f32.mrb[0].mxu0
        %v3757 = vpop.f32.mrb[0].mxu0
        %v3758 = vadd.f32 0.0, %v3757
        %v3759 = vpop.f32.mrb[0].mxu0
        %3760 = vdwg.mxu0
        %3761 = vst.msk [vmem:[#allocation3] sm:$0xff] %vm760, %v3755
        %3762 = vst.msk [vmem:[#allocation3 + $0x8] sm:$0xff] %vm760, %v3758
        %v3763 = vld [vmem:[%s3236] sm:$0xf]
        %v3764 = vld [vmem:[%s3236 + $0x4] sm:$0xf]
        %v3767 = vunpack.c.l.b16 %v3763
        %v3768 = vunpack.c.l.b16 %v3764
        %v3769 = vpack.c.b16 %v3768, %v3767
        %v3771 = vsel %vm819, %v3769, 0
        %3773 = vmatprep.subr.bf16.mxu0 0
        %3774 = vmatpush1.bf16.msra.mxu0 %v3575
        %3775 = vmatprep.subr.bf16.mxu0 0
        %3776 = vmatpush1.bf16.msra.mxu0 0
        %3777 = vmatprep.subr.bf16.mxu0 0
        %3778 = vmatpush1.bf16.msra.mxu0 0
        %3779 = vmatprep.subr.bf16.mxu0 0
        %3780 = vmatpush1.bf16.msra.mxu0 0
        %3781 = vmatprep.subr.bf16.mxu0 0
        %3782 = vmatpush1.bf16.msra.mxu0 0
        %3783 = vmatprep.subr.bf16.mxu0 0
        %3784 = vmatpush1.bf16.msra.mxu0 0
        %3785 = vmatprep.subr.bf16.mxu0 0
        %3786 = vmatpush1.bf16.msra.mxu0 0
        %3787 = vmatprep.subr.bf16.mxu0 0
        %3788 = vmatpush1.bf16.msra.mxu0 0
        %3789 = vmatprep.subr.bf16.mxu0 0
        %3790 = vmatpush1.bf16.msra.mxu0 0
        %3791 = vmatprep.subr.bf16.mxu0 0
        %3792 = vmatpush1.bf16.msra.mxu0 0
        %3793 = vmatprep.subr.bf16.mxu0 0
        %3794 = vmatpush1.bf16.msra.mxu0 0
        %3795 = vmatprep.subr.bf16.mxu0 0
        %3796 = vmatpush1.bf16.msra.mxu0 0
        %3797 = vmatprep.subr.bf16.mxu0 0
        %3798 = vmatpush1.bf16.msra.mxu0 0
        %3799 = vmatprep.subr.bf16.mxu0 0
        %3800 = vmatpush1.bf16.msra.mxu0 0
        %3801 = vmatprep.subr.bf16.mxu0 0
        %3802 = vmatpush1.bf16.msra.mxu0 0
        %3803 = vmatprep.subr.bf16.mxu0 0
        %3804 = vmatpush1.bf16.msra.mxu0 0
        %3805 = vmatprep.mubr.bf16.mxu0 0
        %3806 = vmatmul.mubr.bf16.gmra.mrb[0].mxu0 %v3771
        %v3807 = vpop.f32.mrb[0].mxu0
        %v3808 = vadd.f32 0.0, %v3807
        %v3809 = vpop.f32.mrb[0].mxu0
        %v3810 = vpop.f32.mrb[0].mxu0
        %v3811 = vadd.f32 0.0, %v3810
        %v3812 = vpop.f32.mrb[0].mxu0
        %3813 = vdwg.mxu0
        %3814 = vst.msk [vmem:[#allocation3 + $0x10] sm:$0xff] %vm760, %v3808
        %3815 = vst.msk [vmem:[#allocation3 + $0x18] sm:$0xff] %vm760, %v3811
        %v3816 = vld [vmem:[#allocation3] sm:$0xff]
        %v3817 = vld [vmem:[#allocation3 + $0x8] sm:$0xff]
        %v3818 = vld [vmem:[#allocation3 + $0x10] sm:$0xff]
        %v3819 = vld [vmem:[#allocation3 + $0x18] sm:$0xff]
        %v3820 = vmax.f32 %v3584, %v3706
        %v3821 = vmax.f32 %v3585, %v3707
        %v3822 = vmax.f32 %v3586, %v3708
        %v3823 = vmax.f32 %v3587, %v3709
        %v3824 = vsub.f32 %v3584, %v3820
        %v3825 = vsub.f32 %v3585, %v3821
        %v3826 = vsub.f32 %v3586, %v3822
        %v3827 = vsub.f32 %v3587, %v3823
        %v3828 = vmul.f32 %v3824, 1.442695
        %v3829 = vpow.pop %v3828
        %v3830 = vmul.f32 %v3825, 1.442695
        %v3831 = vpow.pop %v3830
        %v3832 = vmul.f32 %v3826, 1.442695
        %v3833 = vpow.pop %v3832
        %v3834 = vmul.f32 %v3827, 1.442695
        %v3835 = vpow.pop %v3834
        %v3836 = vsub.f32 %v3706, %v3820
        %v3837 = vsub.f32 %v3707, %v3821
        %v3838 = vsub.f32 %v3708, %v3822
        %v3839 = vsub.f32 %v3709, %v3823
        %v3840 = vmul.f32 %v3836, 1.442695
        %v3841 = vpow.pop %v3840
        %v3842 = vmul.f32 %v3837, 1.442695
        %v3843 = vpow.pop %v3842
        %v3844 = vmul.f32 %v3838, 1.442695
        %v3845 = vpow.pop %v3844
        %v3846 = vmul.f32 %v3839, 1.442695
        %v3847 = vpow.pop %v3846
        %v3848 = vadd.f32 %v3829, %v3841
        %v3849 = vadd.f32 %v3831, %v3843
        %v3850 = vadd.f32 %v3833, %v3845
        %v3851 = vadd.f32 %v3835, %v3847
        %v3852 = vmul.f32 %v3829, %v3694
        %v3853 = vmul.f32 %v3831, %v3695
        %v3854 = vmul.f32 %v3833, %v3696
        %v3855 = vmul.f32 %v3835, %v3697
        %v3856 = vmul.f32 %v3841, %v3816
        %v3857 = vmul.f32 %v3843, %v3817
        %v3858 = vmul.f32 %v3845, %v3818
        %v3859 = vmul.f32 %v3847, %v3819
        %v3860 = vadd.f32 %v3852, %v3856
        %v3861 = vadd.f32 %v3853, %v3857
        %v3862 = vadd.f32 %v3854, %v3858
        %v3863 = vadd.f32 %v3855, %v3859
        %v3864 = vrcp.pop %v3848
        %v3865 = vmul.f32 %v3860, %v3864
        %v3866 = vrcp.pop %v3849
        %v3867 = vmul.f32 %v3861, %v3866
        %v3868 = vrcp.pop %v3850
        %v3869 = vmul.f32 %v3862, %v3868
        %v3870 = vrcp.pop %v3851
        %v3871 = vmul.f32 %v3863, %v3870
        %v3872 = vsub.f32 %v3570, %v3865
        %v3873 = vsub.f32 %v3571, %v3867
        %v3874 = vsub.f32 %v3572, %v3869
        %v3875 = vsub.f32 %v3573, %v3871
        %3876 = vst.msk [vmem:[%s727] sm:$0xff] %vm760, %v3872
        %3877 = vst.msk [vmem:[%s727 + $0x8] sm:$0xff] %vm760, %v3873
        %3878 = vst.msk [vmem:[%s727 + $0x10] sm:$0xff] %vm760, %v3874
        %3879 = vst.msk [vmem:[%s727 + $0x18] sm:$0xff] %vm760, %v3875
        %s3880 = sand.u32 %s432, 1
        %s3881 = scalar_lea.sflag [#allocation6], %s3880
        %s3882 = sand.u32 %s432, 1
        %s3883 = smul.addr %s3882, 32
        %s3884 = scalar_lea.vmem [#allocation23], %s3883
        // Predicated region
        $region137: #{tpu_custom_call.1} parent=91 // pred_check
          %p3885 = pneg %p442
        $region138: #{tpu_custom_call.1} parent=91 // pred_check_branch
          %3887 = sbr.rel (%p3885) target = $region140
        $region139: #{tpu_custom_call.1} parent=91 // pred_region
          %s3888 = smul.u32 2, %s41
          %s3890 = ssub.s32 512, 512
          %3891 = vsyncadd %s3881, %s3890
          %s3892 = smul.addr %s3888, 2
          %s3893 = smul.addr %s3892, 128
          %s3894 = scalar_lea.hbm %s18, %s3893
          %s3895 = sshll.u32 %s3884, 4
          %s3896 = int_to_ptr.vmem [resolvable:$true] %s3895
          %3901 = dma.vmem_to_hbm [thread:$0]  %s3896, 512, %s3894, %s3881, 128, 128, 8
        $region140: #{tpu_custom_call.1} parent=91 // pred_fallthru
          _
      $region92: #{tpu_custom_call.1} parent=5 // pred_fallthru
        _
      %p3902 = scmp.le.s32.totalorder 2, %s36
      // Predicated region
      $region141: #{tpu_custom_call.1} parent=5 // pred_check
        %p3903 = pneg %p3902
      $region142: #{tpu_custom_call.1} parent=5 // pred_check_branch
        %3905 = sbr.rel (%p3903) target = $region144
      $region143: #{tpu_custom_call.1} parent=5 // pred_region
        %s3906 = ssub.s32 %s36, 2
        // Predicated region
        $region145: #{tpu_custom_call.1} parent=143 // pred_check
          %p3907 = pneg %p448
        $region146: #{tpu_custom_call.1} parent=143 // pred_check_branch
          %3909 = sbr.rel (%p3907) target = $region148
        $region147: #{tpu_custom_call.1} parent=143 // pred_region
          %s3910 = sand.u32 %s433, 1
          %s3911 = scalar_lea.sflag [#allocation6], %s3910
          %s3912 = sand.u32 %s433, 1
          %s3913 = smul.addr %s3912, 32
          %s3914 = scalar_lea.vmem [#allocation23], %s3913
          %3915 = dma.done %s3911, 512
        $region148: #{tpu_custom_call.1} parent=143 // pred_fallthru
          _
      $region144: #{tpu_custom_call.1} parent=5 // pred_fallthru
        _
    $region6: #{tpu_custom_call.1} parent=1 // loop_footer
      %s40 = sadd.s32 1, %s36
    $region7: #{tpu_custom_call.1} parent=1 // loop_footer_branch
      %35 = sbr.rel target = $region3
    $region8: #{tpu_custom_call.1} parent=1 // loop_exit
      _
    %3916 = vsyncpa [#allocation5], 1
    %s3917 = scalar_lea.sflag [#allocation5], 1
    %3918 = vsyncpa %s3917, 1
    %3919 = vsyncpa [#allocation10], 1
    %3920 = vsyncpa [#allocation13], 1
    %3921 = vsyncpa [#allocation16], 1
    %3922 = vsyncpa [#allocation6], 1
    %s3923 = scalar_lea.sflag [#allocation6], 1
    %3924 = vsyncpa %s3923, 1
    %3925 = vsyncpa [#allocation7], 1
    %s3926 = scalar_lea.sflag [#allocation7], 1
    %3927 = vsyncpa %s3926, 1
    %3928 = vsyncpa [#allocation8], 1
    %s3929 = scalar_lea.sflag [#allocation8], 1
    %3930 = vsyncpa %s3929, 1
    %3931 = vsyncpa [#allocation21], 1

</llo_original>
